<compile_context>
chip_gen: v7x
topology: tpu7x:2x2x1
jax: 0.10.0
libtpu: 0.0.40
codegen_flags: <defaults>
</compile_context>

<pallas_src>
import numpy as np

import jax
import jax.numpy as jnp
from jax.experimental import pallas as pl
from jax.experimental.pallas import tpu as pltpu

# Set to jnp.bfloat16 on v6e/v7x for higher MXU throughput (f32 accumulation is
# kept either way).  Left at None (f32 operands) for exact parity with PyTorch.
_MXU_DTYPE = None


def _round_up(x, m):
    return (x + m - 1) // m * m


def _erf(x):
    # Abramowitz & Stegun 7.1.26 rational approximation, |err| <= 1.5e-7.
    # The divide uses the EUP approximate reciprocal + one Newton step.
    a1, a2, a3, a4, a5 = 0.254829592, -0.284496736, 1.421413741, -1.453152027, 1.061405429
    p = 0.3275911
    sgn = jnp.where(x >= 0.0, 1.0, -1.0)
    ax = jnp.abs(x)
    den = 1.0 + p * ax
    t = pl.reciprocal(den, approx=True)
    t = t * (2.0 - den * t)                      # Newton refinement -> ~f32 accurate
    poly = ((((a5 * t + a4) * t + a3) * t + a2) * t + a1) * t
    return sgn * (1.0 - poly * jnp.exp(-ax * ax))


def _gelu(x):
    return 0.5 * x * (1.0 + _erf(x * 0.7071067811865476))


def _instance_norm(acc, mask, inv_count):
    # InstanceNorm3d(affine=False, eps=1e-5), biased variance, stats over the
    # valid voxels only (mask selects the D*H*W real output columns).
    mean = jnp.sum(acc * mask, axis=1, keepdims=True) * inv_count
    cen = acc - mean
    var = jnp.sum(cen * cen * mask, axis=1, keepdims=True) * inv_count
    return cen * jax.lax.rsqrt(var + 1e-5)


def _make_stage1_kernel(tap_offsets, cin, cout, qc, o_center, inv_count):
    """conv1 + conv3 (fused, shared patch matrix) -> norm -> gelu(h1) / residual."""

    def kernel(x_ref, w13_ref, mask_ref, h1p_ref, r_ref, p_ref):
        # Build the im2col patch matrix: row block t holds the input shifted by
        # flat offset tap_offsets[t]  (P[t*cin + c, q] = x[c, q + off_t]).
        for t, off in enumerate(tap_offsets):
            p_ref[t * cin:(t + 1) * cin, :] = x_ref[:, off:off + qc]

        patches = p_ref[...]
        wmat = w13_ref[...]
        if _MXU_DTYPE is not None:
            patches = patches.astype(_MXU_DTYPE)
            wmat = wmat.astype(_MXU_DTYPE)

        # Single MXU matmul produces conv1 and conv3 together: (2*Cout, Qc).
        acc = jnp.dot(wmat, patches, preferred_element_type=jnp.float32)

        m = mask_ref[...]
        h1 = _gelu(_instance_norm(acc[:cout, :], m, inv_count))
        r_ref[...] = _instance_norm(acc[cout:2 * cout, :], m, inv_count)

        # Emit h1 already zero-padded in flat layout (ready for conv2): zero the
        # whole buffer, then drop the masked values at the interior offset.
        h1p_ref[...] = jnp.zeros_like(h1p_ref)
        h1p_ref[:, o_center:o_center + qc] = h1 * m

    return kernel


def _make_stage2_kernel(tap_offsets, cmid, qc, inv_count):
    """conv2 -> norm -> + residual -> gelu."""

    def kernel(h_ref, r_ref, w2_ref, mask_ref, o_ref, p_ref):
        for t, off in enumerate(tap_offsets):
            p_ref[t * cmid:(t + 1) * cmid, :] = h_ref[:, off:off + qc]

        patches = p_ref[...]
        wmat = w2_ref[...]
        if _MXU_DTYPE is not None:
            patches = patches.astype(_MXU_DTYPE)
            wmat = wmat.astype(_MXU_DTYPE)

        acc = jnp.dot(wmat, patches, preferred_element_type=jnp.float32)

        m = mask_ref[...]
        y = _instance_norm(acc, m, inv_count) + r_ref[...]
        o_ref[...] = _gelu(y)

    return kernel


def _pack_conv_weight(w):
    # PyTorch Conv3d weight (Cout, Cin, K, K, K) -> (Cout, K^3*Cin) with rows of
    # the patch matrix ordered tap-major / channel-minor (matches kernel P).
    cout, cin, k = w.shape[0], w.shape[1], w.shape[2]
    return jnp.transpose(w, (0, 2, 3, 4, 1)).reshape(cout, k * k * k * cin)


@jax.jit
def res_conv_block(x, w1, b1, w2, b2, w3, b3):
    """Forward of ResConvBlock.

    x : (N, in_ch, D, H, W) float32, weights in PyTorch layout (Cout, Cin, K, K, K),
    biases (Cout,).  Returns (N, out_ch, D, H, W).
    The conv biases are mathematically cancelled by InstanceNorm3d(affine=False)
    (per-channel mean subtraction), so they never reach the kernels.
    """
    del b1, b2, b3

    N, Cin, D, H, W = x.shape
    Cout = w1.shape[0]
    K = w1.shape[2]
    assert K % 2 == 1, "padding='same' implemented for odd kernel sizes"
    p = K // 2

    Dp, Hp, Wp = D + 2 * p, H + 2 * p, W + 2 * p
    sHW, sW = Hp * Wp, Wp                         # flat strides of the padded volume
    Qc = _round_up(D * sHW, 128)                  # lane-dense compute width
    o_max = (K - 1) * (sHW + sW + 1)              # largest flat tap offset
    Sp_pad = _round_up(Qc + o_max, 128)           # flat padded+extended input length
    o_center = p * (sHW + sW + 1)                 # flat offset of the (p,p,p) corner
    inv_count = 1.0 / float(D * H * W)
    K3Cin = K * K * K * Cin
    K3Cmid = K * K * K * Cout

    tap_offsets = [kd * sHW + kh * sW + kw
                   for kd in range(K) for kh in range(K) for kw in range(K)]

    # ---- wrapper-side layout plumbing (channels on sublanes, flat spatial on lanes)
    xp = jnp.pad(x, ((0, 0), (0, 0), (p, p), (p, p), (p, p)))
    xflat = xp.reshape(N, Cin, Dp * Hp * Wp)
    xflat = jnp.pad(xflat, ((0, 0), (0, 0), (0, Sp_pad - Dp * Hp * Wp)))

    # Mask of "real" output columns q = d*sHW + h*sW + w (d<D, h<H, w<W).
    q = np.arange(Qc)
    d_i, rem = q // sHW, q % sHW
    h_i, w_i = rem // sW, rem % sW
    mask = jnp.asarray(
        ((d_i < D) & (h_i < H) & (w_i < W)).astype(np.float32).reshape(1, Qc))

    # Packed weights; conv1 and conv3 are stacked for a single fused matmul.
    w13 = jnp.concatenate([_pack_conv_weight(w1), _pack_conv_weight(w3)], axis=0)
    w2m = _pack_conv_weight(w2)

    cparams = pltpu.CompilerParams(
        dimension_semantics=("parallel",),
        # Explicit VMEM budget: ~2 MiB/step actually used -> safe on v7x (64 MiB
        # physical / 32 MiB default scoped) as well as v5e/v6e.
        vmem_limit_bytes=32 * 1024 * 1024,
    )

    # ---- stage 1: h1 = gelu(norm1(conv1(x)));  r = norm3(conv3(x))  (fused) ----
    h1p, resid = pl.pallas_call(
        _make_stage1_kernel(tap_offsets, Cin, Cout, Qc, o_center, inv_count),
        grid=(N,),
        in_specs=[
            pl.BlockSpec((None, Cin, Sp_pad), lambda n: (n, 0, 0)),
            pl.BlockSpec((2 * Cout, K3Cin), lambda n: (0, 0)),
            pl.BlockSpec((1, Qc), lambda n: (0, 0)),
        ],
        out_specs=[
            pl.BlockSpec((None, Cout, Sp_pad), lambda n: (n, 0, 0)),
            pl.BlockSpec((None, Cout, Qc), lambda n: (n, 0, 0)),
        ],
        out_shape=[
            jax.ShapeDtypeStruct((N, Cout, Sp_pad), jnp.float32),  # zero-padded h1
            jax.ShapeDtypeStruct((N, Cout, Qc), jnp.float32),      # residual
        ],
        scratch_shapes=[pltpu.VMEM((K3Cin, Qc), jnp.float32)],
        compiler_params=cparams,
    )(xflat, w13, mask)

    # ---- stage 2: out = gelu(norm2(conv2(h1)) + r) ----
    out_flat = pl.pallas_call(
        _make_stage2_kernel(tap_offsets, Cout, Qc, inv_count),
        grid=(N,),
        in_specs=[
            pl.BlockSpec((None, Cout, Sp_pad), lambda n: (n, 0, 0)),
            pl.BlockSpec((None, Cout, Qc), lambda n: (n, 0, 0)),
            pl.BlockSpec((Cout, K3Cmid), lambda n: (0, 0)),
            pl.BlockSpec((1, Qc), lambda n: (0, 0)),
        ],
        out_specs=pl.BlockSpec((None, Cout, Qc), lambda n: (n, 0, 0)),
        out_shape=jax.ShapeDtypeStruct((N, Cout, Qc), jnp.float32),
        scratch_shapes=[pltpu.VMEM((K3Cmid, Qc), jnp.float32)],
        compiler_params=cparams,
    )(h1p, resid, w2m, mask)

    # Extract the valid voxels (wrapper-side layout plumbing, not compute).
    out = out_flat[:, :, :D * sHW].reshape(N, Cout, D, Hp, Wp)[:, :, :, :H, :W]
    # nn.Dropout3d(drop_rate=0.0) is the identity.
    return out


def _reference_forward(x, w1, b1, w2, b2, w3, b3):
    """Pure-JAX (XLA) reference of the PyTorch ResConvBlock forward."""
    def conv(v, w, b):
        y = jax.lax.conv_general_dilated(
            v, w, window_strides=(1, 1, 1), padding="SAME",
            dimension_numbers=("NCDHW", "OIDHW", "NCDHW"),
            precision=jax.lax.Precision.HIGHEST)
        return y + b.reshape(1, -1, 1, 1, 1)

    def inorm(v):
        mean = jnp.mean(v, axis=(2, 3, 4), keepdims=True)
        var = jnp.mean((v - mean) ** 2, axis=(2, 3, 4), keepdims=True)
        return (v - mean) * jax.lax.rsqrt(var + 1e-5)

    def gelu(v):
        return 0.5 * v * (1.0 + jax.lax.erf(v * 0.7071067811865476))

    h = gelu(inorm(conv(x, w1, b1)))
    r = inorm(conv(x, w3, b3))
    return gelu(inorm(conv(h, w2, b2)) + r)


if __name__ == "__main__":
    N, in_ch, out_ch = 2, 4, 8
    D = H = W = 8
    K = 3

    key = jax.random.PRNGKey(0)
    ks = jax.random.split(key, 7)
    x = jax.random.normal(ks[0], (N, in_ch, D, H, W), jnp.float32)

    # PyTorch Conv3d parameter layout: weight (Cout, Cin, K, K, K), bias (Cout,).
    w1 = 0.1 * jax.random.normal(ks[1], (out_ch, in_ch, K, K, K), jnp.float32)
    b1 = 0.1 * jax.random.normal(ks[2], (out_ch,), jnp.float32)
    w2 = 0.1 * jax.random.normal(ks[3], (out_ch, out_ch, K, K, K), jnp.float32)
    b2 = 0.1 * jax.random.normal(ks[4], (out_ch,), jnp.float32)
    w3 = 0.1 * jax.random.normal(ks[5], (out_ch, in_ch, K, K, K), jnp.float32)
    b3 = 0.1 * jax.random.normal(ks[6], (out_ch,), jnp.float32)

    out = res_conv_block(x, w1, b1, w2, b2, w3, b3)
    out = jax.block_until_ready(out)
    assert out.shape == (N, out_ch, D, H, W)
    assert bool(jnp.all(jnp.isfinite(out)))

    # Correctness vs an XLA reference of the same forward pass.
    ref = _reference_forward(x, w1, b1, w2, b2, w3, b3)
    max_err = float(jnp.max(jnp.abs(out - ref)))
    assert max_err < 2e-2, f"mismatch vs reference: max abs err {max_err}"

    print("KERNEL_OK")
</pallas_src>

<mosaic_0001>
module attributes {stable_mosaic.version = 11 : i64} {
  func.func @kernel(%arg0: i32, %arg1: memref<1x4x1152xf32, #tpu.memory_space<vmem>>, %arg2: memref<16x108xf32, #tpu.memory_space<vmem>>, %arg3: memref<1x896xf32, #tpu.memory_space<vmem>>, %arg4: memref<1x8x1152xf32, #tpu.memory_space<vmem>>, %arg5: memref<1x8x896xf32, #tpu.memory_space<vmem>>, %arg6: memref<108x896xf32, #tpu.memory_space<vmem>>) attributes {dimension_semantics = [#tpu.dimension_semantics<parallel>], iteration_bounds = array<i64: 2>, scalar_prefetch = 0 : i64, scratch_operands = 1 : i64, tpu.core_type = #tpu.core_type<tc>, window_params = [{transform_indices = @transform_0, window_bounds = array<i64: 1, 4, 1152>}, {pipeline_mode = #tpu.pipeline_mode<synchronous>, transform_indices = @transform_1, window_bounds = array<i64: 16, 108>}, {pipeline_mode = #tpu.pipeline_mode<synchronous>, transform_indices = @transform_2, window_bounds = array<i64: 1, 896>}, {transform_indices = @transform_3, window_bounds = array<i64: 1, 8, 1152>}, {transform_indices = @transform_4, window_bounds = array<i64: 1, 8, 896>}]} {
    %c0 = arith.constant 0 : index
    %c0_0 = arith.constant 0 : index
    %c0_1 = arith.constant 0 : index
    %0 = vector.load %arg1[%c0, %c0_0, %c0_1] : memref<1x4x1152xf32, #tpu.memory_space<vmem>>, vector<1x4x896xf32>
    %1 = vector.shape_cast %0 : vector<1x4x896xf32> to vector<4x896xf32>
    %c0_2 = arith.constant 0 : index
    %c0_3 = arith.constant 0 : index
    %2 = vector.load %arg6[%c0_2, %c0_3] : memref<108x896xf32, #tpu.memory_space<vmem>>, vector<4x896xf32>
    tpu.vector_store %arg6[%c0_2, %c0_3], %1 {strides = array<i32>} : memref<108x896xf32, #tpu.memory_space<vmem>>, vector<4x896xf32>,
    %c0_4 = arith.constant 0 : index
    %c0_5 = arith.constant 0 : index
    %c1 = arith.constant 1 : index
    %3 = vector.load %arg1[%c0_4, %c0_5, %c1] : memref<1x4x1152xf32, #tpu.memory_space<vmem>>, vector<1x4x896xf32>
    %4 = vector.shape_cast %3 : vector<1x4x896xf32> to vector<4x896xf32>
    %c4 = arith.constant 4 : index
    %c0_6 = arith.constant 0 : index
    %5 = vector.load %arg6[%c4, %c0_6] : memref<108x896xf32, #tpu.memory_space<vmem>>, vector<4x896xf32>
    tpu.vector_store %arg6[%c4, %c0_6], %4 {strides = array<i32>} : memref<108x896xf32, #tpu.memory_space<vmem>>, vector<4x896xf32>,
    %c0_7 = arith.constant 0 : index
    %c0_8 = arith.constant 0 : index
    %c2 = arith.constant 2 : index
    %6 = vector.load %arg1[%c0_7, %c0_8, %c2] : memref<1x4x1152xf32, #tpu.memory_space<vmem>>, vector<1x4x896xf32>
    %7 = vector.shape_cast %6 : vector<1x4x896xf32> to vector<4x896xf32>
    %c8 = arith.constant 8 : index
    %c0_9 = arith.constant 0 : index
    %8 = vector.load %arg6[%c8, %c0_9] : memref<108x896xf32, #tpu.memory_space<vmem>>, vector<4x896xf32>
    tpu.vector_store %arg6[%c8, %c0_9], %7 {strides = array<i32>} : memref<108x896xf32, #tpu.memory_space<vmem>>, vector<4x896xf32>,
    %c0_10 = arith.constant 0 : index
    %c0_11 = arith.constant 0 : index
    %c10 = arith.constant 10 : index
    %9 = vector.load %arg1[%c0_10, %c0_11, %c10] : memref<1x4x1152xf32, #tpu.memory_space<vmem>>, vector<1x4x896xf32>
    %10 = vector.shape_cast %9 : vector<1x4x896xf32> to vector<4x896xf32>
    %c12 = arith.constant 12 : index
    %c0_12 = arith.constant 0 : index
    %11 = vector.load %arg6[%c12, %c0_12] : memref<108x896xf32, #tpu.memory_space<vmem>>, vector<4x896xf32>
    tpu.vector_store %arg6[%c12, %c0_12], %10 {strides = array<i32>} : memref<108x896xf32, #tpu.memory_space<vmem>>, vector<4x896xf32>,
    %c0_13 = arith.constant 0 : index
    %c0_14 = arith.constant 0 : index
    %c11 = arith.constant 11 : index
    %12 = vector.load %arg1[%c0_13, %c0_14, %c11] : memref<1x4x1152xf32, #tpu.memory_space<vmem>>, vector<1x4x896xf32>
    %13 = vector.shape_cast %12 : vector<1x4x896xf32> to vector<4x896xf32>
    %c16 = arith.constant 16 : index
    %c0_15 = arith.constant 0 : index
    %14 = vector.load %arg6[%c16, %c0_15] : memref<108x896xf32, #tpu.memory_space<vmem>>, vector<4x896xf32>
    tpu.vector_store %arg6[%c16, %c0_15], %13 {strides = array<i32>} : memref<108x896xf32, #tpu.memory_space<vmem>>, vector<4x896xf32>,
    %c0_16 = arith.constant 0 : index
    %c0_17 = arith.constant 0 : index
    %c12_18 = arith.constant 12 : index
    %15 = vector.load %arg1[%c0_16, %c0_17, %c12_18] : memref<1x4x1152xf32, #tpu.memory_space<vmem>>, vector<1x4x896xf32>
    %16 = vector.shape_cast %15 : vector<1x4x896xf32> to vector<4x896xf32>
    %c20 = arith.constant 20 : index
    %c0_19 = arith.constant 0 : index
    %17 = vector.load %arg6[%c20, %c0_19] : memref<108x896xf32, #tpu.memory_space<vmem>>, vector<4x896xf32>
    tpu.vector_store %arg6[%c20, %c0_19], %16 {strides = array<i32>} : memref<108x896xf32, #tpu.memory_space<vmem>>, vector<4x896xf32>,
    %c0_20 = arith.constant 0 : index
    %c0_21 = arith.constant 0 : index
    %c20_22 = arith.constant 20 : index
    %18 = vector.load %arg1[%c0_20, %c0_21, %c20_22] : memref<1x4x1152xf32, #tpu.memory_space<vmem>>, vector<1x4x896xf32>
    %19 = vector.shape_cast %18 : vector<1x4x896xf32> to vector<4x896xf32>
    %c24 = arith.constant 24 : index
    %c0_23 = arith.constant 0 : index
    %20 = vector.load %arg6[%c24, %c0_23] : memref<108x896xf32, #tpu.memory_space<vmem>>, vector<4x896xf32>
    tpu.vector_store %arg6[%c24, %c0_23], %19 {strides = array<i32>} : memref<108x896xf32, #tpu.memory_space<vmem>>, vector<4x896xf32>,
    %c0_24 = arith.constant 0 : index
    %c0_25 = arith.constant 0 : index
    %c21 = arith.constant 21 : index
    %21 = vector.load %arg1[%c0_24, %c0_25, %c21] : memref<1x4x1152xf32, #tpu.memory_space<vmem>>, vector<1x4x896xf32>
    %22 = vector.shape_cast %21 : vector<1x4x896xf32> to vector<4x896xf32>
    %c28 = arith.constant 28 : index
    %c0_26 = arith.constant 0 : index
    %23 = vector.load %arg6[%c28, %c0_26] : memref<108x896xf32, #tpu.memory_space<vmem>>, vector<4x896xf32>
    tpu.vector_store %arg6[%c28, %c0_26], %22 {strides = array<i32>} : memref<108x896xf32, #tpu.memory_space<vmem>>, vector<4x896xf32>,
    %c0_27 = arith.constant 0 : index
    %c0_28 = arith.constant 0 : index
    %c22 = arith.constant 22 : index
    %24 = vector.load %arg1[%c0_27, %c0_28, %c22] : memref<1x4x1152xf32, #tpu.memory_space<vmem>>, vector<1x4x896xf32>
    %25 = vector.shape_cast %24 : vector<1x4x896xf32> to vector<4x896xf32>
    %c32 = arith.constant 32 : index
    %c0_29 = arith.constant 0 : index
    %26 = vector.load %arg6[%c32, %c0_29] : memref<108x896xf32, #tpu.memory_space<vmem>>, vector<4x896xf32>
    tpu.vector_store %arg6[%c32, %c0_29], %25 {strides = array<i32>} : memref<108x896xf32, #tpu.memory_space<vmem>>, vector<4x896xf32>,
    %c0_30 = arith.constant 0 : index
    %c0_31 = arith.constant 0 : index
    %c100 = arith.constant 100 : index
    %27 = vector.load %arg1[%c0_30, %c0_31, %c100] : memref<1x4x1152xf32, #tpu.memory_space<vmem>>, vector<1x4x896xf32>
    %28 = vector.shape_cast %27 : vector<1x4x896xf32> to vector<4x896xf32>
    %c36 = arith.constant 36 : index
    %c0_32 = arith.constant 0 : index
    %29 = vector.load %arg6[%c36, %c0_32] : memref<108x896xf32, #tpu.memory_space<vmem>>, vector<4x896xf32>
    tpu.vector_store %arg6[%c36, %c0_32], %28 {strides = array<i32>} : memref<108x896xf32, #tpu.memory_space<vmem>>, vector<4x896xf32>,
    %c0_33 = arith.constant 0 : index
    %c0_34 = arith.constant 0 : index
    %c101 = arith.constant 101 : index
    %30 = vector.load %arg1[%c0_33, %c0_34, %c101] : memref<1x4x1152xf32, #tpu.memory_space<vmem>>, vector<1x4x896xf32>
    %31 = vector.shape_cast %30 : vector<1x4x896xf32> to vector<4x896xf32>
    %c40 = arith.constant 40 : index
    %c0_35 = arith.constant 0 : index
    %32 = vector.load %arg6[%c40, %c0_35] : memref<108x896xf32, #tpu.memory_space<vmem>>, vector<4x896xf32>
    tpu.vector_store %arg6[%c40, %c0_35], %31 {strides = array<i32>} : memref<108x896xf32, #tpu.memory_space<vmem>>, vector<4x896xf32>,
    %c0_36 = arith.constant 0 : index
    %c0_37 = arith.constant 0 : index
    %c102 = arith.constant 102 : index
    %33 = vector.load %arg1[%c0_36, %c0_37, %c102] : memref<1x4x1152xf32, #tpu.memory_space<vmem>>, vector<1x4x896xf32>
    %34 = vector.shape_cast %33 : vector<1x4x896xf32> to vector<4x896xf32>
    %c44 = arith.constant 44 : index
    %c0_38 = arith.constant 0 : index
    %35 = vector.load %arg6[%c44, %c0_38] : memref<108x896xf32, #tpu.memory_space<vmem>>, vector<4x896xf32>
    tpu.vector_store %arg6[%c44, %c0_38], %34 {strides = array<i32>} : memref<108x896xf32, #tpu.memory_space<vmem>>, vector<4x896xf32>,
    %c0_39 = arith.constant 0 : index
    %c0_40 = arith.constant 0 : index
    %c110 = arith.constant 110 : index
    %36 = vector.load %arg1[%c0_39, %c0_40, %c110] : memref<1x4x1152xf32, #tpu.memory_space<vmem>>, vector<1x4x896xf32>
    %37 = vector.shape_cast %36 : vector<1x4x896xf32> to vector<4x896xf32>
    %c48 = arith.constant 48 : index
    %c0_41 = arith.constant 0 : index
    %38 = vector.load %arg6[%c48, %c0_41] : memref<108x896xf32, #tpu.memory_space<vmem>>, vector<4x896xf32>
    tpu.vector_store %arg6[%c48, %c0_41], %37 {strides = array<i32>} : memref<108x896xf32, #tpu.memory_space<vmem>>, vector<4x896xf32>,
    %c0_42 = arith.constant 0 : index
    %c0_43 = arith.constant 0 : index
    %c111 = arith.constant 111 : index
    %39 = vector.load %arg1[%c0_42, %c0_43, %c111] : memref<1x4x1152xf32, #tpu.memory_space<vmem>>, vector<1x4x896xf32>
    %40 = vector.shape_cast %39 : vector<1x4x896xf32> to vector<4x896xf32>
    %c52 = arith.constant 52 : index
    %c0_44 = arith.constant 0 : index
    %41 = vector.load %arg6[%c52, %c0_44] : memref<108x896xf32, #tpu.memory_space<vmem>>, vector<4x896xf32>
    tpu.vector_store %arg6[%c52, %c0_44], %40 {strides = array<i32>} : memref<108x896xf32, #tpu.memory_space<vmem>>, vector<4x896xf32>,
    %c0_45 = arith.constant 0 : index
    %c0_46 = arith.constant 0 : index
    %c112 = arith.constant 112 : index
    %42 = vector.load %arg1[%c0_45, %c0_46, %c112] : memref<1x4x1152xf32, #tpu.memory_space<vmem>>, vector<1x4x896xf32>
    %43 = vector.shape_cast %42 : vector<1x4x896xf32> to vector<4x896xf32>
    %c56 = arith.constant 56 : index
    %c0_47 = arith.constant 0 : index
    %44 = vector.load %arg6[%c56, %c0_47] : memref<108x896xf32, #tpu.memory_space<vmem>>, vector<4x896xf32>
    tpu.vector_store %arg6[%c56, %c0_47], %43 {strides = array<i32>} : memref<108x896xf32, #tpu.memory_space<vmem>>, vector<4x896xf32>,
    %c0_48 = arith.constant 0 : index
    %c0_49 = arith.constant 0 : index
    %c120 = arith.constant 120 : index
    %45 = vector.load %arg1[%c0_48, %c0_49, %c120] : memref<1x4x1152xf32, #tpu.memory_space<vmem>>, vector<1x4x896xf32>
    %46 = vector.shape_cast %45 : vector<1x4x896xf32> to vector<4x896xf32>
    %c60 = arith.constant 60 : index
    %c0_50 = arith.constant 0 : index
    %47 = vector.load %arg6[%c60, %c0_50] : memref<108x896xf32, #tpu.memory_space<vmem>>, vector<4x896xf32>
    tpu.vector_store %arg6[%c60, %c0_50], %46 {strides = array<i32>} : memref<108x896xf32, #tpu.memory_space<vmem>>, vector<4x896xf32>,
    %c0_51 = arith.constant 0 : index
    %c0_52 = arith.constant 0 : index
    %c121 = arith.constant 121 : index
    %48 = vector.load %arg1[%c0_51, %c0_52, %c121] : memref<1x4x1152xf32, #tpu.memory_space<vmem>>, vector<1x4x896xf32>
    %49 = vector.shape_cast %48 : vector<1x4x896xf32> to vector<4x896xf32>
    %c64 = arith.constant 64 : index
    %c0_53 = arith.constant 0 : index
    %50 = vector.load %arg6[%c64, %c0_53] : memref<108x896xf32, #tpu.memory_space<vmem>>, vector<4x896xf32>
    tpu.vector_store %arg6[%c64, %c0_53], %49 {strides = array<i32>} : memref<108x896xf32, #tpu.memory_space<vmem>>, vector<4x896xf32>,
    %c0_54 = arith.constant 0 : index
    %c0_55 = arith.constant 0 : index
    %c122 = arith.constant 122 : index
    %51 = vector.load %arg1[%c0_54, %c0_55, %c122] : memref<1x4x1152xf32, #tpu.memory_space<vmem>>, vector<1x4x896xf32>
    %52 = vector.shape_cast %51 : vector<1x4x896xf32> to vector<4x896xf32>
    %c68 = arith.constant 68 : index
    %c0_56 = arith.constant 0 : index
    %53 = vector.load %arg6[%c68, %c0_56] : memref<108x896xf32, #tpu.memory_space<vmem>>, vector<4x896xf32>
    tpu.vector_store %arg6[%c68, %c0_56], %52 {strides = array<i32>} : memref<108x896xf32, #tpu.memory_space<vmem>>, vector<4x896xf32>,
    %c0_57 = arith.constant 0 : index
    %c0_58 = arith.constant 0 : index
    %c200 = arith.constant 200 : index
    %54 = vector.load %arg1[%c0_57, %c0_58, %c200] : memref<1x4x1152xf32, #tpu.memory_space<vmem>>, vector<1x4x896xf32>
    %55 = vector.shape_cast %54 : vector<1x4x896xf32> to vector<4x896xf32>
    %c72 = arith.constant 72 : index
    %c0_59 = arith.constant 0 : index
    %56 = vector.load %arg6[%c72, %c0_59] : memref<108x896xf32, #tpu.memory_space<vmem>>, vector<4x896xf32>
    tpu.vector_store %arg6[%c72, %c0_59], %55 {strides = array<i32>} : memref<108x896xf32, #tpu.memory_space<vmem>>, vector<4x896xf32>,
    %c0_60 = arith.constant 0 : index
    %c0_61 = arith.constant 0 : index
    %c201 = arith.constant 201 : index
    %57 = vector.load %arg1[%c0_60, %c0_61, %c201] : memref<1x4x1152xf32, #tpu.memory_space<vmem>>, vector<1x4x896xf32>
    %58 = vector.shape_cast %57 : vector<1x4x896xf32> to vector<4x896xf32>
    %c76 = arith.constant 76 : index
    %c0_62 = arith.constant 0 : index
    %59 = vector.load %arg6[%c76, %c0_62] : memref<108x896xf32, #tpu.memory_space<vmem>>, vector<4x896xf32>
    tpu.vector_store %arg6[%c76, %c0_62], %58 {strides = array<i32>} : memref<108x896xf32, #tpu.memory_space<vmem>>, vector<4x896xf32>,
    %c0_63 = arith.constant 0 : index
    %c0_64 = arith.constant 0 : index
    %c202 = arith.constant 202 : index
    %60 = vector.load %arg1[%c0_63, %c0_64, %c202] : memref<1x4x1152xf32, #tpu.memory_space<vmem>>, vector<1x4x896xf32>
    %61 = vector.shape_cast %60 : vector<1x4x896xf32> to vector<4x896xf32>
    %c80 = arith.constant 80 : index
    %c0_65 = arith.constant 0 : index
    %62 = vector.load %arg6[%c80, %c0_65] : memref<108x896xf32, #tpu.memory_space<vmem>>, vector<4x896xf32>
    tpu.vector_store %arg6[%c80, %c0_65], %61 {strides = array<i32>} : memref<108x896xf32, #tpu.memory_space<vmem>>, vector<4x896xf32>,
    %c0_66 = arith.constant 0 : index
    %c0_67 = arith.constant 0 : index
    %c210 = arith.constant 210 : index
    %63 = vector.load %arg1[%c0_66, %c0_67, %c210] : memref<1x4x1152xf32, #tpu.memory_space<vmem>>, vector<1x4x896xf32>
    %64 = vector.shape_cast %63 : vector<1x4x896xf32> to vector<4x896xf32>
    %c84 = arith.constant 84 : index
    %c0_68 = arith.constant 0 : index
    %65 = vector.load %arg6[%c84, %c0_68] : memref<108x896xf32, #tpu.memory_space<vmem>>, vector<4x896xf32>
    tpu.vector_store %arg6[%c84, %c0_68], %64 {strides = array<i32>} : memref<108x896xf32, #tpu.memory_space<vmem>>, vector<4x896xf32>,
    %c0_69 = arith.constant 0 : index
    %c0_70 = arith.constant 0 : index
    %c211 = arith.constant 211 : index
    %66 = vector.load %arg1[%c0_69, %c0_70, %c211] : memref<1x4x1152xf32, #tpu.memory_space<vmem>>, vector<1x4x896xf32>
    %67 = vector.shape_cast %66 : vector<1x4x896xf32> to vector<4x896xf32>
    %c88 = arith.constant 88 : index
    %c0_71 = arith.constant 0 : index
    %68 = vector.load %arg6[%c88, %c0_71] : memref<108x896xf32, #tpu.memory_space<vmem>>, vector<4x896xf32>
    tpu.vector_store %arg6[%c88, %c0_71], %67 {strides = array<i32>} : memref<108x896xf32, #tpu.memory_space<vmem>>, vector<4x896xf32>,
    %c0_72 = arith.constant 0 : index
    %c0_73 = arith.constant 0 : index
    %c212 = arith.constant 212 : index
    %69 = vector.load %arg1[%c0_72, %c0_73, %c212] : memref<1x4x1152xf32, #tpu.memory_space<vmem>>, vector<1x4x896xf32>
    %70 = vector.shape_cast %69 : vector<1x4x896xf32> to vector<4x896xf32>
    %c92 = arith.constant 92 : index
    %c0_74 = arith.constant 0 : index
    %71 = vector.load %arg6[%c92, %c0_74] : memref<108x896xf32, #tpu.memory_space<vmem>>, vector<4x896xf32>
    tpu.vector_store %arg6[%c92, %c0_74], %70 {strides = array<i32>} : memref<108x896xf32, #tpu.memory_space<vmem>>, vector<4x896xf32>,
    %c0_75 = arith.constant 0 : index
    %c0_76 = arith.constant 0 : index
    %c220 = arith.constant 220 : index
    %72 = vector.load %arg1[%c0_75, %c0_76, %c220] : memref<1x4x1152xf32, #tpu.memory_space<vmem>>, vector<1x4x896xf32>
    %73 = vector.shape_cast %72 : vector<1x4x896xf32> to vector<4x896xf32>
    %c96 = arith.constant 96 : index
    %c0_77 = arith.constant 0 : index
    %74 = vector.load %arg6[%c96, %c0_77] : memref<108x896xf32, #tpu.memory_space<vmem>>, vector<4x896xf32>
    tpu.vector_store %arg6[%c96, %c0_77], %73 {strides = array<i32>} : memref<108x896xf32, #tpu.memory_space<vmem>>, vector<4x896xf32>,
    %c0_78 = arith.constant 0 : index
    %c0_79 = arith.constant 0 : index
    %c221 = arith.constant 221 : index
    %75 = vector.load %arg1[%c0_78, %c0_79, %c221] : memref<1x4x1152xf32, #tpu.memory_space<vmem>>, vector<1x4x896xf32>
    %76 = vector.shape_cast %75 : vector<1x4x896xf32> to vector<4x896xf32>
    %c100_80 = arith.constant 100 : index
    %c0_81 = arith.constant 0 : index
    %77 = vector.load %arg6[%c100_80, %c0_81] : memref<108x896xf32, #tpu.memory_space<vmem>>, vector<4x896xf32>
    tpu.vector_store %arg6[%c100_80, %c0_81], %76 {strides = array<i32>} : memref<108x896xf32, #tpu.memory_space<vmem>>, vector<4x896xf32>,
    %c0_82 = arith.constant 0 : index
    %c0_83 = arith.constant 0 : index
    %c222 = arith.constant 222 : index
    %78 = vector.load %arg1[%c0_82, %c0_83, %c222] : memref<1x4x1152xf32, #tpu.memory_space<vmem>>, vector<1x4x896xf32>
    %79 = vector.shape_cast %78 : vector<1x4x896xf32> to vector<4x896xf32>
    %c104 = arith.constant 104 : index
    %c0_84 = arith.constant 0 : index
    %80 = vector.load %arg6[%c104, %c0_84] : memref<108x896xf32, #tpu.memory_space<vmem>>, vector<4x896xf32>
    tpu.vector_store %arg6[%c104, %c0_84], %79 {strides = array<i32>} : memref<108x896xf32, #tpu.memory_space<vmem>>, vector<4x896xf32>,
    %c0_85 = arith.constant 0 : index
    %c0_86 = arith.constant 0 : index
    %81 = vector.load %arg6[%c0_85, %c0_86] : memref<108x896xf32, #tpu.memory_space<vmem>>, vector<108x896xf32>
    %c0_87 = arith.constant 0 : index
    %c0_88 = arith.constant 0 : index
    %82 = vector.load %arg2[%c0_87, %c0_88] : memref<16x108xf32, #tpu.memory_space<vmem>>, vector<16x108xf32>
    %cst = arith.constant dense<0.000000e+00> : vector<16x896xf32>
    %83 = tpu.matmul %82, %81, %cst {dimension_numbers = #tpu.dot_dimension_numbers<[1], [0], [0], [1], [0, 0, 1, 1], [], []>} : vector<16x108xf32>, vector<108x896xf32>, vector<16x896xf32> -> vector<16x896xf32>
    %c0_89 = arith.constant 0 : index
    %c0_90 = arith.constant 0 : index
    %84 = vector.load %arg3[%c0_89, %c0_90] : memref<1x896xf32, #tpu.memory_space<vmem>>, vector<1x896xf32>
    %85 = vector.extract_strided_slice %83 {offsets = [0, 0], sizes = [8, 896], strides = [1, 1]} : vector<16x896xf32> to vector<8x896xf32>
    %86 = vector.broadcast %84 : vector<1x896xf32> to vector<8x896xf32>
    %87 = arith.mulf %85, %86 : vector<8x896xf32>
    %cst_91 = arith.constant dense<0.000000e+00> : vector<8xf32>
    %88 = vector.multi_reduction <add>, %87, %cst_91 [1] : vector<8x896xf32> to vector<8xf32>
    %89 = vector.shape_cast %88 : vector<8xf32> to vector<8x1xf32>
    %cst_92 = arith.constant 0.001953125 : f32
    %90 = vector.broadcast %cst_92 : f32 to vector<8x1xf32>
    %91 = arith.mulf %89, %90 : vector<8x1xf32>
    %92 = vector.broadcast %91 : vector<8x1xf32> to vector<8x896xf32>
    %93 = arith.subf %85, %92 : vector<8x896xf32>
    %94 = arith.mulf %93, %93 : vector<8x896xf32>
    %95 = vector.broadcast %84 : vector<1x896xf32> to vector<8x896xf32>
    %96 = arith.mulf %94, %95 : vector<8x896xf32>
    %cst_93 = arith.constant dense<0.000000e+00> : vector<8xf32>
    %97 = vector.multi_reduction <add>, %96, %cst_93 [1] : vector<8x896xf32> to vector<8xf32>
    %98 = vector.shape_cast %97 : vector<8xf32> to vector<8x1xf32>
    %cst_94 = arith.constant 0.001953125 : f32
    %99 = vector.broadcast %cst_94 : f32 to vector<8x1xf32>
    %100 = arith.mulf %98, %99 : vector<8x1xf32>
    %cst_95 = arith.constant 9.99999974E-6 : f32
    %101 = vector.broadcast %cst_95 : f32 to vector<8x1xf32>
    %102 = arith.addf %100, %101 : vector<8x1xf32>
    %103 = math.rsqrt %102 : vector<8x1xf32>
    %104 = vector.broadcast %103 : vector<8x1xf32> to vector<8x896xf32>
    %105 = arith.mulf %93, %104 : vector<8x896xf32>
    %cst_96 = arith.constant 5.000000e-01 : f32
    %106 = vector.broadcast %cst_96 : f32 to vector<8x896xf32>
    %107 = arith.mulf %106, %105 : vector<8x896xf32>
    %cst_97 = arith.constant 0.707106769 : f32
    %108 = vector.broadcast %cst_97 : f32 to vector<8x896xf32>
    %109 = arith.mulf %105, %108 : vector<8x896xf32>
    %cst_98 = arith.constant 0.000000e+00 : f32
    %110 = vector.broadcast %cst_98 : f32 to vector<8x896xf32>
    %111 = arith.cmpf oge, %109, %110 : vector<8x896xf32>
    %cst_99 = arith.constant 1.000000e+00 : f32
    %cst_100 = arith.constant -1.000000e+00 : f32
    %112 = vector.broadcast %cst_99 : f32 to vector<8x896xf32>
    %113 = vector.broadcast %cst_100 : f32 to vector<8x896xf32>
    %114 = arith.select %111, %112, %113 : vector<8x896xi1>, vector<8x896xf32>
    %115 = math.absf %109 : vector<8x896xf32>
    %cst_101 = arith.constant 0.327591091 : f32
    %116 = vector.broadcast %cst_101 : f32 to vector<8x896xf32>
    %117 = arith.mulf %116, %115 : vector<8x896xf32>
    %cst_102 = arith.constant 1.000000e+00 : f32
    %118 = vector.broadcast %cst_102 : f32 to vector<8x896xf32>
    %119 = arith.addf %118, %117 : vector<8x896xf32>
    %120 = tpu.reciprocal %119 {approx = true} : vector<8x896xf32> -> vector<8x896xf32>
    %121 = arith.mulf %119, %120 : vector<8x896xf32>
    %cst_103 = arith.constant 2.000000e+00 : f32
    %122 = vector.broadcast %cst_103 : f32 to vector<8x896xf32>
    %123 = arith.subf %122, %121 : vector<8x896xf32>
    %124 = arith.mulf %120, %123 : vector<8x896xf32>
    %cst_104 = arith.constant 1.06140542 : f32
    %125 = vector.broadcast %cst_104 : f32 to vector<8x896xf32>
    %126 = arith.mulf %125, %124 : vector<8x896xf32>
    %cst_105 = arith.constant -1.45315206 : f32
    %127 = vector.broadcast %cst_105 : f32 to vector<8x896xf32>
    %128 = arith.addf %126, %127 : vector<8x896xf32>
    %129 = arith.mulf %128, %124 : vector<8x896xf32>
    %cst_106 = arith.constant 1.42141378 : f32
    %130 = vector.broadcast %cst_106 : f32 to vector<8x896xf32>
    %131 = arith.addf %129, %130 : vector<8x896xf32>
    %132 = arith.mulf %131, %124 : vector<8x896xf32>
    %cst_107 = arith.constant -0.284496725 : f32
    %133 = vector.broadcast %cst_107 : f32 to vector<8x896xf32>
    %134 = arith.addf %132, %133 : vector<8x896xf32>
    %135 = arith.mulf %134, %124 : vector<8x896xf32>
    %cst_108 = arith.constant 0.254829586 : f32
    %136 = vector.broadcast %cst_108 : f32 to vector<8x896xf32>
    %137 = arith.addf %135, %136 : vector<8x896xf32>
    %138 = arith.mulf %137, %124 : vector<8x896xf32>
    %cst_109 = arith.constant 0.000000e+00 : f32
    %139 = vector.broadcast %cst_109 : f32 to vector<8x896xf32>
    %140 = arith.subf %139, %115 : vector<8x896xf32>
    %141 = arith.mulf %140, %115 : vector<8x896xf32>
    %142 = math.exp %141 : vector<8x896xf32>
    %143 = arith.mulf %138, %142 : vector<8x896xf32>
    %cst_110 = arith.constant 1.000000e+00 : f32
    %144 = vector.broadcast %cst_110 : f32 to vector<8x896xf32>
    %145 = arith.subf %144, %143 : vector<8x896xf32>
    %146 = arith.mulf %114, %145 : vector<8x896xf32>
    %cst_111 = arith.constant 1.000000e+00 : f32
    %147 = vector.broadcast %cst_111 : f32 to vector<8x896xf32>
    %148 = arith.addf %147, %146 : vector<8x896xf32>
    %149 = arith.mulf %107, %148 : vector<8x896xf32>
    %150 = vector.extract_strided_slice %83 {offsets = [8, 0], sizes = [8, 896], strides = [1, 1]} : vector<16x896xf32> to vector<8x896xf32>
    %151 = vector.broadcast %84 : vector<1x896xf32> to vector<8x896xf32>
    %152 = arith.mulf %150, %151 : vector<8x896xf32>
    %cst_112 = arith.constant dense<0.000000e+00> : vector<8xf32>
    %153 = vector.multi_reduction <add>, %152, %cst_112 [1] : vector<8x896xf32> to vector<8xf32>
    %154 = vector.shape_cast %153 : vector<8xf32> to vector<8x1xf32>
    %cst_113 = arith.constant 0.001953125 : f32
    %155 = vector.broadcast %cst_113 : f32 to vector<8x1xf32>
    %156 = arith.mulf %154, %155 : vector<8x1xf32>
    %157 = vector.broadcast %156 : vector<8x1xf32> to vector<8x896xf32>
    %158 = arith.subf %150, %157 : vector<8x896xf32>
    %159 = arith.mulf %158, %158 : vector<8x896xf32>
    %160 = vector.broadcast %84 : vector<1x896xf32> to vector<8x896xf32>
    %161 = arith.mulf %159, %160 : vector<8x896xf32>
    %cst_114 = arith.constant dense<0.000000e+00> : vector<8xf32>
    %162 = vector.multi_reduction <add>, %161, %cst_114 [1] : vector<8x896xf32> to vector<8xf32>
    %163 = vector.shape_cast %162 : vector<8xf32> to vector<8x1xf32>
    %cst_115 = arith.constant 0.001953125 : f32
    %164 = vector.broadcast %cst_115 : f32 to vector<8x1xf32>
    %165 = arith.mulf %163, %164 : vector<8x1xf32>
    %cst_116 = arith.constant 9.99999974E-6 : f32
    %166 = vector.broadcast %cst_116 : f32 to vector<8x1xf32>
    %167 = arith.addf %165, %166 : vector<8x1xf32>
    %168 = math.rsqrt %167 : vector<8x1xf32>
    %169 = vector.broadcast %168 : vector<8x1xf32> to vector<8x896xf32>
    %170 = arith.mulf %158, %169 : vector<8x896xf32>
    %c0_117 = arith.constant 0 : index
    %c0_118 = arith.constant 0 : index
    %c0_119 = arith.constant 0 : index
    %171 = vector.load %arg5[%c0_117, %c0_118, %c0_119] : memref<1x8x896xf32, #tpu.memory_space<vmem>>, vector<1x8x896xf32>
    %172 = vector.shape_cast %171 : vector<1x8x896xf32> to vector<8x896xf32>
    %173 = vector.shape_cast %170 : vector<8x896xf32> to vector<1x8x896xf32>
    tpu.vector_store %arg5[%c0_117, %c0_118, %c0_119], %173 {strides = array<i32>} : memref<1x8x896xf32, #tpu.memory_space<vmem>>, vector<1x8x896xf32>,
    %cst_120 = arith.constant 0.000000e+00 : f32
    %174 = vector.broadcast %cst_120 : f32 to vector<8x1152xf32>
    %c0_121 = arith.constant 0 : index
    %c0_122 = arith.constant 0 : index
    %c0_123 = arith.constant 0 : index
    %175 = vector.load %arg4[%c0_121, %c0_122, %c0_123] : memref<1x8x1152xf32, #tpu.memory_space<vmem>>, vector<1x8x1152xf32>
    %176 = vector.shape_cast %175 : vector<1x8x1152xf32> to vector<8x1152xf32>
    %177 = vector.shape_cast %174 : vector<8x1152xf32> to vector<1x8x1152xf32>
    tpu.vector_store %arg4[%c0_121, %c0_122, %c0_123], %177 {strides = array<i32>} : memref<1x8x1152xf32, #tpu.memory_space<vmem>>, vector<1x8x1152xf32>,
    %178 = vector.broadcast %84 : vector<1x896xf32> to vector<8x896xf32>
    %179 = arith.mulf %149, %178 : vector<8x896xf32>
    %c0_124 = arith.constant 0 : index
    %c0_125 = arith.constant 0 : index
    %c111_126 = arith.constant 111 : index
    %180 = vector.load %arg4[%c0_124, %c0_125, %c111_126] : memref<1x8x1152xf32, #tpu.memory_space<vmem>>, vector<1x8x896xf32>
    %181 = vector.shape_cast %180 : vector<1x8x896xf32> to vector<8x896xf32>
    %182 = vector.shape_cast %179 : vector<8x896xf32> to vector<1x8x896xf32>
    tpu.vector_store %arg4[%c0_124, %c0_125, %c111_126], %182 {strides = array<i32>} : memref<1x8x1152xf32, #tpu.memory_space<vmem>>, vector<1x8x896xf32>,
    return
  }
  func.func @transform_0(%arg0: i32) -> (i32, i32, i32) {
    %c0_i32 = arith.constant 0 : i32
    %c0_i32_0 = arith.constant 0 : i32
    %c0_i32_1 = arith.constant 0 : i32
    return %arg0, %c0_i32, %c0_i32_0 : i32, i32, i32
  }
  func.func @transform_1(%arg0: i32) -> (i32, i32) {
    %c0_i32 = arith.constant 0 : i32
    %c0_i32_0 = arith.constant 0 : i32
    %c0_i32_1 = arith.constant 0 : i32
    return %c0_i32, %c0_i32_0 : i32, i32
  }
  func.func @transform_2(%arg0: i32) -> (i32, i32) {
    %c0_i32 = arith.constant 0 : i32
    %c0_i32_0 = arith.constant 0 : i32
    %c0_i32_1 = arith.constant 0 : i32
    return %c0_i32, %c0_i32_0 : i32, i32
  }
  func.func @transform_3(%arg0: i32) -> (i32, i32, i32) {
    %c0_i32 = arith.constant 0 : i32
    %c0_i32_0 = arith.constant 0 : i32
    %c0_i32_1 = arith.constant 0 : i32
    return %arg0, %c0_i32, %c0_i32_0 : i32, i32, i32
  }
  func.func @transform_4(%arg0: i32) -> (i32, i32, i32) {
    %c0_i32 = arith.constant 0 : i32
    %c0_i32_0 = arith.constant 0 : i32
    %c0_i32_1 = arith.constant 0 : i32
    return %arg0, %c0_i32, %c0_i32_0 : i32, i32, i32
  }
}

module attributes {stable_mosaic.version = 11 : i64} {
  func.func @kernel(%arg0: i32, %arg1: memref<1x8x1152xf32, #tpu.memory_space<vmem>>, %arg2: memref<1x8x896xf32, #tpu.memory_space<vmem>>, %arg3: memref<8x216xf32, #tpu.memory_space<vmem>>, %arg4: memref<1x896xf32, #tpu.memory_space<vmem>>, %arg5: memref<1x8x896xf32, #tpu.memory_space<vmem>>, %arg6: memref<216x896xf32, #tpu.memory_space<vmem>>) attributes {dimension_semantics = [#tpu.dimension_semantics<parallel>], iteration_bounds = array<i64: 2>, scalar_prefetch = 0 : i64, scratch_operands = 1 : i64, tpu.core_type = #tpu.core_type<tc>, window_params = [{transform_indices = @transform_0, window_bounds = array<i64: 1, 8, 1152>}, {transform_indices = @transform_1, window_bounds = array<i64: 1, 8, 896>}, {pipeline_mode = #tpu.pipeline_mode<synchronous>, transform_indices = @transform_2, window_bounds = array<i64: 8, 216>}, {pipeline_mode = #tpu.pipeline_mode<synchronous>, transform_indices = @transform_3, window_bounds = array<i64: 1, 896>}, {transform_indices = @transform_4, window_bounds = array<i64: 1, 8, 896>}]} {
    %c0 = arith.constant 0 : index
    %c0_0 = arith.constant 0 : index
    %c0_1 = arith.constant 0 : index
    %0 = vector.load %arg1[%c0, %c0_0, %c0_1] : memref<1x8x1152xf32, #tpu.memory_space<vmem>>, vector<1x8x896xf32>
    %1 = vector.shape_cast %0 : vector<1x8x896xf32> to vector<8x896xf32>
    %c0_2 = arith.constant 0 : index
    %c0_3 = arith.constant 0 : index
    %2 = vector.load %arg6[%c0_2, %c0_3] : memref<216x896xf32, #tpu.memory_space<vmem>>, vector<8x896xf32>
    tpu.vector_store %arg6[%c0_2, %c0_3], %1 {strides = array<i32>} : memref<216x896xf32, #tpu.memory_space<vmem>>, vector<8x896xf32>,
    %c0_4 = arith.constant 0 : index
    %c0_5 = arith.constant 0 : index
    %c1 = arith.constant 1 : index
    %3 = vector.load %arg1[%c0_4, %c0_5, %c1] : memref<1x8x1152xf32, #tpu.memory_space<vmem>>, vector<1x8x896xf32>
    %4 = vector.shape_cast %3 : vector<1x8x896xf32> to vector<8x896xf32>
    %c8 = arith.constant 8 : index
    %c0_6 = arith.constant 0 : index
    %5 = vector.load %arg6[%c8, %c0_6] : memref<216x896xf32, #tpu.memory_space<vmem>>, vector<8x896xf32>
    tpu.vector_store %arg6[%c8, %c0_6], %4 {strides = array<i32>} : memref<216x896xf32, #tpu.memory_space<vmem>>, vector<8x896xf32>,
    %c0_7 = arith.constant 0 : index
    %c0_8 = arith.constant 0 : index
    %c2 = arith.constant 2 : index
    %6 = vector.load %arg1[%c0_7, %c0_8, %c2] : memref<1x8x1152xf32, #tpu.memory_space<vmem>>, vector<1x8x896xf32>
    %7 = vector.shape_cast %6 : vector<1x8x896xf32> to vector<8x896xf32>
    %c16 = arith.constant 16 : index
    %c0_9 = arith.constant 0 : index
    %8 = vector.load %arg6[%c16, %c0_9] : memref<216x896xf32, #tpu.memory_space<vmem>>, vector<8x896xf32>
    tpu.vector_store %arg6[%c16, %c0_9], %7 {strides = array<i32>} : memref<216x896xf32, #tpu.memory_space<vmem>>, vector<8x896xf32>,
    %c0_10 = arith.constant 0 : index
    %c0_11 = arith.constant 0 : index
    %c10 = arith.constant 10 : index
    %9 = vector.load %arg1[%c0_10, %c0_11, %c10] : memref<1x8x1152xf32, #tpu.memory_space<vmem>>, vector<1x8x896xf32>
    %10 = vector.shape_cast %9 : vector<1x8x896xf32> to vector<8x896xf32>
    %c24 = arith.constant 24 : index
    %c0_12 = arith.constant 0 : index
    %11 = vector.load %arg6[%c24, %c0_12] : memref<216x896xf32, #tpu.memory_space<vmem>>, vector<8x896xf32>
    tpu.vector_store %arg6[%c24, %c0_12], %10 {strides = array<i32>} : memref<216x896xf32, #tpu.memory_space<vmem>>, vector<8x896xf32>,
    %c0_13 = arith.constant 0 : index
    %c0_14 = arith.constant 0 : index
    %c11 = arith.constant 11 : index
    %12 = vector.load %arg1[%c0_13, %c0_14, %c11] : memref<1x8x1152xf32, #tpu.memory_space<vmem>>, vector<1x8x896xf32>
    %13 = vector.shape_cast %12 : vector<1x8x896xf32> to vector<8x896xf32>
    %c32 = arith.constant 32 : index
    %c0_15 = arith.constant 0 : index
    %14 = vector.load %arg6[%c32, %c0_15] : memref<216x896xf32, #tpu.memory_space<vmem>>, vector<8x896xf32>
    tpu.vector_store %arg6[%c32, %c0_15], %13 {strides = array<i32>} : memref<216x896xf32, #tpu.memory_space<vmem>>, vector<8x896xf32>,
    %c0_16 = arith.constant 0 : index
    %c0_17 = arith.constant 0 : index
    %c12 = arith.constant 12 : index
    %15 = vector.load %arg1[%c0_16, %c0_17, %c12] : memref<1x8x1152xf32, #tpu.memory_space<vmem>>, vector<1x8x896xf32>
    %16 = vector.shape_cast %15 : vector<1x8x896xf32> to vector<8x896xf32>
    %c40 = arith.constant 40 : index
    %c0_18 = arith.constant 0 : index
    %17 = vector.load %arg6[%c40, %c0_18] : memref<216x896xf32, #tpu.memory_space<vmem>>, vector<8x896xf32>
    tpu.vector_store %arg6[%c40, %c0_18], %16 {strides = array<i32>} : memref<216x896xf32, #tpu.memory_space<vmem>>, vector<8x896xf32>,
    %c0_19 = arith.constant 0 : index
    %c0_20 = arith.constant 0 : index
    %c20 = arith.constant 20 : index
    %18 = vector.load %arg1[%c0_19, %c0_20, %c20] : memref<1x8x1152xf32, #tpu.memory_space<vmem>>, vector<1x8x896xf32>
    %19 = vector.shape_cast %18 : vector<1x8x896xf32> to vector<8x896xf32>
    %c48 = arith.constant 48 : index
    %c0_21 = arith.constant 0 : index
    %20 = vector.load %arg6[%c48, %c0_21] : memref<216x896xf32, #tpu.memory_space<vmem>>, vector<8x896xf32>
    tpu.vector_store %arg6[%c48, %c0_21], %19 {strides = array<i32>} : memref<216x896xf32, #tpu.memory_space<vmem>>, vector<8x896xf32>,
    %c0_22 = arith.constant 0 : index
    %c0_23 = arith.constant 0 : index
    %c21 = arith.constant 21 : index
    %21 = vector.load %arg1[%c0_22, %c0_23, %c21] : memref<1x8x1152xf32, #tpu.memory_space<vmem>>, vector<1x8x896xf32>
    %22 = vector.shape_cast %21 : vector<1x8x896xf32> to vector<8x896xf32>
    %c56 = arith.constant 56 : index
    %c0_24 = arith.constant 0 : index
    %23 = vector.load %arg6[%c56, %c0_24] : memref<216x896xf32, #tpu.memory_space<vmem>>, vector<8x896xf32>
    tpu.vector_store %arg6[%c56, %c0_24], %22 {strides = array<i32>} : memref<216x896xf32, #tpu.memory_space<vmem>>, vector<8x896xf32>,
    %c0_25 = arith.constant 0 : index
    %c0_26 = arith.constant 0 : index
    %c22 = arith.constant 22 : index
    %24 = vector.load %arg1[%c0_25, %c0_26, %c22] : memref<1x8x1152xf32, #tpu.memory_space<vmem>>, vector<1x8x896xf32>
    %25 = vector.shape_cast %24 : vector<1x8x896xf32> to vector<8x896xf32>
    %c64 = arith.constant 64 : index
    %c0_27 = arith.constant 0 : index
    %26 = vector.load %arg6[%c64, %c0_27] : memref<216x896xf32, #tpu.memory_space<vmem>>, vector<8x896xf32>
    tpu.vector_store %arg6[%c64, %c0_27], %25 {strides = array<i32>} : memref<216x896xf32, #tpu.memory_space<vmem>>, vector<8x896xf32>,
    %c0_28 = arith.constant 0 : index
    %c0_29 = arith.constant 0 : index
    %c100 = arith.constant 100 : index
    %27 = vector.load %arg1[%c0_28, %c0_29, %c100] : memref<1x8x1152xf32, #tpu.memory_space<vmem>>, vector<1x8x896xf32>
    %28 = vector.shape_cast %27 : vector<1x8x896xf32> to vector<8x896xf32>
    %c72 = arith.constant 72 : index
    %c0_30 = arith.constant 0 : index
    %29 = vector.load %arg6[%c72, %c0_30] : memref<216x896xf32, #tpu.memory_space<vmem>>, vector<8x896xf32>
    tpu.vector_store %arg6[%c72, %c0_30], %28 {strides = array<i32>} : memref<216x896xf32, #tpu.memory_space<vmem>>, vector<8x896xf32>,
    %c0_31 = arith.constant 0 : index
    %c0_32 = arith.constant 0 : index
    %c101 = arith.constant 101 : index
    %30 = vector.load %arg1[%c0_31, %c0_32, %c101] : memref<1x8x1152xf32, #tpu.memory_space<vmem>>, vector<1x8x896xf32>
    %31 = vector.shape_cast %30 : vector<1x8x896xf32> to vector<8x896xf32>
    %c80 = arith.constant 80 : index
    %c0_33 = arith.constant 0 : index
    %32 = vector.load %arg6[%c80, %c0_33] : memref<216x896xf32, #tpu.memory_space<vmem>>, vector<8x896xf32>
    tpu.vector_store %arg6[%c80, %c0_33], %31 {strides = array<i32>} : memref<216x896xf32, #tpu.memory_space<vmem>>, vector<8x896xf32>,
    %c0_34 = arith.constant 0 : index
    %c0_35 = arith.constant 0 : index
    %c102 = arith.constant 102 : index
    %33 = vector.load %arg1[%c0_34, %c0_35, %c102] : memref<1x8x1152xf32, #tpu.memory_space<vmem>>, vector<1x8x896xf32>
    %34 = vector.shape_cast %33 : vector<1x8x896xf32> to vector<8x896xf32>
    %c88 = arith.constant 88 : index
    %c0_36 = arith.constant 0 : index
    %35 = vector.load %arg6[%c88, %c0_36] : memref<216x896xf32, #tpu.memory_space<vmem>>, vector<8x896xf32>
    tpu.vector_store %arg6[%c88, %c0_36], %34 {strides = array<i32>} : memref<216x896xf32, #tpu.memory_space<vmem>>, vector<8x896xf32>,
    %c0_37 = arith.constant 0 : index
    %c0_38 = arith.constant 0 : index
    %c110 = arith.constant 110 : index
    %36 = vector.load %arg1[%c0_37, %c0_38, %c110] : memref<1x8x1152xf32, #tpu.memory_space<vmem>>, vector<1x8x896xf32>
    %37 = vector.shape_cast %36 : vector<1x8x896xf32> to vector<8x896xf32>
    %c96 = arith.constant 96 : index
    %c0_39 = arith.constant 0 : index
    %38 = vector.load %arg6[%c96, %c0_39] : memref<216x896xf32, #tpu.memory_space<vmem>>, vector<8x896xf32>
    tpu.vector_store %arg6[%c96, %c0_39], %37 {strides = array<i32>} : memref<216x896xf32, #tpu.memory_space<vmem>>, vector<8x896xf32>,
    %c0_40 = arith.constant 0 : index
    %c0_41 = arith.constant 0 : index
    %c111 = arith.constant 111 : index
    %39 = vector.load %arg1[%c0_40, %c0_41, %c111] : memref<1x8x1152xf32, #tpu.memory_space<vmem>>, vector<1x8x896xf32>
    %40 = vector.shape_cast %39 : vector<1x8x896xf32> to vector<8x896xf32>
    %c104 = arith.constant 104 : index
    %c0_42 = arith.constant 0 : index
    %41 = vector.load %arg6[%c104, %c0_42] : memref<216x896xf32, #tpu.memory_space<vmem>>, vector<8x896xf32>
    tpu.vector_store %arg6[%c104, %c0_42], %40 {strides = array<i32>} : memref<216x896xf32, #tpu.memory_space<vmem>>, vector<8x896xf32>,
    %c0_43 = arith.constant 0 : index
    %c0_44 = arith.constant 0 : index
    %c112 = arith.constant 112 : index
    %42 = vector.load %arg1[%c0_43, %c0_44, %c112] : memref<1x8x1152xf32, #tpu.memory_space<vmem>>, vector<1x8x896xf32>
    %43 = vector.shape_cast %42 : vector<1x8x896xf32> to vector<8x896xf32>
    %c112_45 = arith.constant 112 : index
    %c0_46 = arith.constant 0 : index
    %44 = vector.load %arg6[%c112_45, %c0_46] : memref<216x896xf32, #tpu.memory_space<vmem>>, vector<8x896xf32>
    tpu.vector_store %arg6[%c112_45, %c0_46], %43 {strides = array<i32>} : memref<216x896xf32, #tpu.memory_space<vmem>>, vector<8x896xf32>,
    %c0_47 = arith.constant 0 : index
    %c0_48 = arith.constant 0 : index
    %c120 = arith.constant 120 : index
    %45 = vector.load %arg1[%c0_47, %c0_48, %c120] : memref<1x8x1152xf32, #tpu.memory_space<vmem>>, vector<1x8x896xf32>
    %46 = vector.shape_cast %45 : vector<1x8x896xf32> to vector<8x896xf32>
    %c120_49 = arith.constant 120 : index
    %c0_50 = arith.constant 0 : index
    %47 = vector.load %arg6[%c120_49, %c0_50] : memref<216x896xf32, #tpu.memory_space<vmem>>, vector<8x896xf32>
    tpu.vector_store %arg6[%c120_49, %c0_50], %46 {strides = array<i32>} : memref<216x896xf32, #tpu.memory_space<vmem>>, vector<8x896xf32>,
    %c0_51 = arith.constant 0 : index
    %c0_52 = arith.constant 0 : index
    %c121 = arith.constant 121 : index
    %48 = vector.load %arg1[%c0_51, %c0_52, %c121] : memref<1x8x1152xf32, #tpu.memory_space<vmem>>, vector<1x8x896xf32>
    %49 = vector.shape_cast %48 : vector<1x8x896xf32> to vector<8x896xf32>
    %c128 = arith.constant 128 : index
    %c0_53 = arith.constant 0 : index
    %50 = vector.load %arg6[%c128, %c0_53] : memref<216x896xf32, #tpu.memory_space<vmem>>, vector<8x896xf32>
    tpu.vector_store %arg6[%c128, %c0_53], %49 {strides = array<i32>} : memref<216x896xf32, #tpu.memory_space<vmem>>, vector<8x896xf32>,
    %c0_54 = arith.constant 0 : index
    %c0_55 = arith.constant 0 : index
    %c122 = arith.constant 122 : index
    %51 = vector.load %arg1[%c0_54, %c0_55, %c122] : memref<1x8x1152xf32, #tpu.memory_space<vmem>>, vector<1x8x896xf32>
    %52 = vector.shape_cast %51 : vector<1x8x896xf32> to vector<8x896xf32>
    %c136 = arith.constant 136 : index
    %c0_56 = arith.constant 0 : index
    %53 = vector.load %arg6[%c136, %c0_56] : memref<216x896xf32, #tpu.memory_space<vmem>>, vector<8x896xf32>
    tpu.vector_store %arg6[%c136, %c0_56], %52 {strides = array<i32>} : memref<216x896xf32, #tpu.memory_space<vmem>>, vector<8x896xf32>,
    %c0_57 = arith.constant 0 : index
    %c0_58 = arith.constant 0 : index
    %c200 = arith.constant 200 : index
    %54 = vector.load %arg1[%c0_57, %c0_58, %c200] : memref<1x8x1152xf32, #tpu.memory_space<vmem>>, vector<1x8x896xf32>
    %55 = vector.shape_cast %54 : vector<1x8x896xf32> to vector<8x896xf32>
    %c144 = arith.constant 144 : index
    %c0_59 = arith.constant 0 : index
    %56 = vector.load %arg6[%c144, %c0_59] : memref<216x896xf32, #tpu.memory_space<vmem>>, vector<8x896xf32>
    tpu.vector_store %arg6[%c144, %c0_59], %55 {strides = array<i32>} : memref<216x896xf32, #tpu.memory_space<vmem>>, vector<8x896xf32>,
    %c0_60 = arith.constant 0 : index
    %c0_61 = arith.constant 0 : index
    %c201 = arith.constant 201 : index
    %57 = vector.load %arg1[%c0_60, %c0_61, %c201] : memref<1x8x1152xf32, #tpu.memory_space<vmem>>, vector<1x8x896xf32>
    %58 = vector.shape_cast %57 : vector<1x8x896xf32> to vector<8x896xf32>
    %c152 = arith.constant 152 : index
    %c0_62 = arith.constant 0 : index
    %59 = vector.load %arg6[%c152, %c0_62] : memref<216x896xf32, #tpu.memory_space<vmem>>, vector<8x896xf32>
    tpu.vector_store %arg6[%c152, %c0_62], %58 {strides = array<i32>} : memref<216x896xf32, #tpu.memory_space<vmem>>, vector<8x896xf32>,
    %c0_63 = arith.constant 0 : index
    %c0_64 = arith.constant 0 : index
    %c202 = arith.constant 202 : index
    %60 = vector.load %arg1[%c0_63, %c0_64, %c202] : memref<1x8x1152xf32, #tpu.memory_space<vmem>>, vector<1x8x896xf32>
    %61 = vector.shape_cast %60 : vector<1x8x896xf32> to vector<8x896xf32>
    %c160 = arith.constant 160 : index
    %c0_65 = arith.constant 0 : index
    %62 = vector.load %arg6[%c160, %c0_65] : memref<216x896xf32, #tpu.memory_space<vmem>>, vector<8x896xf32>
    tpu.vector_store %arg6[%c160, %c0_65], %61 {strides = array<i32>} : memref<216x896xf32, #tpu.memory_space<vmem>>, vector<8x896xf32>,
    %c0_66 = arith.constant 0 : index
    %c0_67 = arith.constant 0 : index
    %c210 = arith.constant 210 : index
    %63 = vector.load %arg1[%c0_66, %c0_67, %c210] : memref<1x8x1152xf32, #tpu.memory_space<vmem>>, vector<1x8x896xf32>
    %64 = vector.shape_cast %63 : vector<1x8x896xf32> to vector<8x896xf32>
    %c168 = arith.constant 168 : index
    %c0_68 = arith.constant 0 : index
    %65 = vector.load %arg6[%c168, %c0_68] : memref<216x896xf32, #tpu.memory_space<vmem>>, vector<8x896xf32>
    tpu.vector_store %arg6[%c168, %c0_68], %64 {strides = array<i32>} : memref<216x896xf32, #tpu.memory_space<vmem>>, vector<8x896xf32>,
    %c0_69 = arith.constant 0 : index
    %c0_70 = arith.constant 0 : index
    %c211 = arith.constant 211 : index
    %66 = vector.load %arg1[%c0_69, %c0_70, %c211] : memref<1x8x1152xf32, #tpu.memory_space<vmem>>, vector<1x8x896xf32>
    %67 = vector.shape_cast %66 : vector<1x8x896xf32> to vector<8x896xf32>
    %c176 = arith.constant 176 : index
    %c0_71 = arith.constant 0 : index
    %68 = vector.load %arg6[%c176, %c0_71] : memref<216x896xf32, #tpu.memory_space<vmem>>, vector<8x896xf32>
    tpu.vector_store %arg6[%c176, %c0_71], %67 {strides = array<i32>} : memref<216x896xf32, #tpu.memory_space<vmem>>, vector<8x896xf32>,
    %c0_72 = arith.constant 0 : index
    %c0_73 = arith.constant 0 : index
    %c212 = arith.constant 212 : index
    %69 = vector.load %arg1[%c0_72, %c0_73, %c212] : memref<1x8x1152xf32, #tpu.memory_space<vmem>>, vector<1x8x896xf32>
    %70 = vector.shape_cast %69 : vector<1x8x896xf32> to vector<8x896xf32>
    %c184 = arith.constant 184 : index
    %c0_74 = arith.constant 0 : index
    %71 = vector.load %arg6[%c184, %c0_74] : memref<216x896xf32, #tpu.memory_space<vmem>>, vector<8x896xf32>
    tpu.vector_store %arg6[%c184, %c0_74], %70 {strides = array<i32>} : memref<216x896xf32, #tpu.memory_space<vmem>>, vector<8x896xf32>,
    %c0_75 = arith.constant 0 : index
    %c0_76 = arith.constant 0 : index
    %c220 = arith.constant 220 : index
    %72 = vector.load %arg1[%c0_75, %c0_76, %c220] : memref<1x8x1152xf32, #tpu.memory_space<vmem>>, vector<1x8x896xf32>
    %73 = vector.shape_cast %72 : vector<1x8x896xf32> to vector<8x896xf32>
    %c192 = arith.constant 192 : index
    %c0_77 = arith.constant 0 : index
    %74 = vector.load %arg6[%c192, %c0_77] : memref<216x896xf32, #tpu.memory_space<vmem>>, vector<8x896xf32>
    tpu.vector_store %arg6[%c192, %c0_77], %73 {strides = array<i32>} : memref<216x896xf32, #tpu.memory_space<vmem>>, vector<8x896xf32>,
    %c0_78 = arith.constant 0 : index
    %c0_79 = arith.constant 0 : index
    %c221 = arith.constant 221 : index
    %75 = vector.load %arg1[%c0_78, %c0_79, %c221] : memref<1x8x1152xf32, #tpu.memory_space<vmem>>, vector<1x8x896xf32>
    %76 = vector.shape_cast %75 : vector<1x8x896xf32> to vector<8x896xf32>
    %c200_80 = arith.constant 200 : index
    %c0_81 = arith.constant 0 : index
    %77 = vector.load %arg6[%c200_80, %c0_81] : memref<216x896xf32, #tpu.memory_space<vmem>>, vector<8x896xf32>
    tpu.vector_store %arg6[%c200_80, %c0_81], %76 {strides = array<i32>} : memref<216x896xf32, #tpu.memory_space<vmem>>, vector<8x896xf32>,
    %c0_82 = arith.constant 0 : index
    %c0_83 = arith.constant 0 : index
    %c222 = arith.constant 222 : index
    %78 = vector.load %arg1[%c0_82, %c0_83, %c222] : memref<1x8x1152xf32, #tpu.memory_space<vmem>>, vector<1x8x896xf32>
    %79 = vector.shape_cast %78 : vector<1x8x896xf32> to vector<8x896xf32>
    %c208 = arith.constant 208 : index
    %c0_84 = arith.constant 0 : index
    %80 = vector.load %arg6[%c208, %c0_84] : memref<216x896xf32, #tpu.memory_space<vmem>>, vector<8x896xf32>
    tpu.vector_store %arg6[%c208, %c0_84], %79 {strides = array<i32>} : memref<216x896xf32, #tpu.memory_space<vmem>>, vector<8x896xf32>,
    %c0_85 = arith.constant 0 : index
    %c0_86 = arith.constant 0 : index
    %81 = vector.load %arg6[%c0_85, %c0_86] : memref<216x896xf32, #tpu.memory_space<vmem>>, vector<216x896xf32>
    %c0_87 = arith.constant 0 : index
    %c0_88 = arith.constant 0 : index
    %82 = vector.load %arg3[%c0_87, %c0_88] : memref<8x216xf32, #tpu.memory_space<vmem>>, vector<8x216xf32>
    %cst = arith.constant dense<0.000000e+00> : vector<8x896xf32>
    %83 = tpu.matmul %82, %81, %cst {dimension_numbers = #tpu.dot_dimension_numbers<[1], [0], [0], [1], [0, 0, 1, 1], [], []>} : vector<8x216xf32>, vector<216x896xf32>, vector<8x896xf32> -> vector<8x896xf32>
    %c0_89 = arith.constant 0 : index
    %c0_90 = arith.constant 0 : index
    %84 = vector.load %arg4[%c0_89, %c0_90] : memref<1x896xf32, #tpu.memory_space<vmem>>, vector<1x896xf32>
    %85 = vector.broadcast %84 : vector<1x896xf32> to vector<8x896xf32>
    %86 = arith.mulf %83, %85 : vector<8x896xf32>
    %cst_91 = arith.constant dense<0.000000e+00> : vector<8xf32>
    %87 = vector.multi_reduction <add>, %86, %cst_91 [1] : vector<8x896xf32> to vector<8xf32>
    %88 = vector.shape_cast %87 : vector<8xf32> to vector<8x1xf32>
    %cst_92 = arith.constant 0.001953125 : f32
    %89 = vector.broadcast %cst_92 : f32 to vector<8x1xf32>
    %90 = arith.mulf %88, %89 : vector<8x1xf32>
    %91 = vector.broadcast %90 : vector<8x1xf32> to vector<8x896xf32>
    %92 = arith.subf %83, %91 : vector<8x896xf32>
    %93 = arith.mulf %92, %92 : vector<8x896xf32>
    %94 = vector.broadcast %84 : vector<1x896xf32> to vector<8x896xf32>
    %95 = arith.mulf %93, %94 : vector<8x896xf32>
    %cst_93 = arith.constant dense<0.000000e+00> : vector<8xf32>
    %96 = vector.multi_reduction <add>, %95, %cst_93 [1] : vector<8x896xf32> to vector<8xf32>
    %97 = vector.shape_cast %96 : vector<8xf32> to vector<8x1xf32>
    %cst_94 = arith.constant 0.001953125 : f32
    %98 = vector.broadcast %cst_94 : f32 to vector<8x1xf32>
    %99 = arith.mulf %97, %98 : vector<8x1xf32>
    %cst_95 = arith.constant 9.99999974E-6 : f32
    %100 = vector.broadcast %cst_95 : f32 to vector<8x1xf32>
    %101 = arith.addf %99, %100 : vector<8x1xf32>
    %102 = math.rsqrt %101 : vector<8x1xf32>
    %103 = vector.broadcast %102 : vector<8x1xf32> to vector<8x896xf32>
    %104 = arith.mulf %92, %103 : vector<8x896xf32>
    %c0_96 = arith.constant 0 : index
    %c0_97 = arith.constant 0 : index
    %c0_98 = arith.constant 0 : index
    %105 = vector.load %arg2[%c0_96, %c0_97, %c0_98] : memref<1x8x896xf32, #tpu.memory_space<vmem>>, vector<1x8x896xf32>
    %106 = vector.shape_cast %105 : vector<1x8x896xf32> to vector<8x896xf32>
    %107 = arith.addf %104, %106 : vector<8x896xf32>
    %cst_99 = arith.constant 5.000000e-01 : f32
    %108 = vector.broadcast %cst_99 : f32 to vector<8x896xf32>
    %109 = arith.mulf %108, %107 : vector<8x896xf32>
    %cst_100 = arith.constant 0.707106769 : f32
    %110 = vector.broadcast %cst_100 : f32 to vector<8x896xf32>
    %111 = arith.mulf %107, %110 : vector<8x896xf32>
    %cst_101 = arith.constant 0.000000e+00 : f32
    %112 = vector.broadcast %cst_101 : f32 to vector<8x896xf32>
    %113 = arith.cmpf oge, %111, %112 : vector<8x896xf32>
    %cst_102 = arith.constant 1.000000e+00 : f32
    %cst_103 = arith.constant -1.000000e+00 : f32
    %114 = vector.broadcast %cst_102 : f32 to vector<8x896xf32>
    %115 = vector.broadcast %cst_103 : f32 to vector<8x896xf32>
    %116 = arith.select %113, %114, %115 : vector<8x896xi1>, vector<8x896xf32>
    %117 = math.absf %111 : vector<8x896xf32>
    %cst_104 = arith.constant 0.327591091 : f32
    %118 = vector.broadcast %cst_104 : f32 to vector<8x896xf32>
    %119 = arith.mulf %118, %117 : vector<8x896xf32>
    %cst_105 = arith.constant 1.000000e+00 : f32
    %120 = vector.broadcast %cst_105 : f32 to vector<8x896xf32>
    %121 = arith.addf %120, %119 : vector<8x896xf32>
    %122 = tpu.reciprocal %121 {approx = true} : vector<8x896xf32> -> vector<8x896xf32>
    %123 = arith.mulf %121, %122 : vector<8x896xf32>
    %cst_106 = arith.constant 2.000000e+00 : f32
    %124 = vector.broadcast %cst_106 : f32 to vector<8x896xf32>
    %125 = arith.subf %124, %123 : vector<8x896xf32>
    %126 = arith.mulf %122, %125 : vector<8x896xf32>
    %cst_107 = arith.constant 1.06140542 : f32
    %127 = vector.broadcast %cst_107 : f32 to vector<8x896xf32>
    %128 = arith.mulf %127, %126 : vector<8x896xf32>
    %cst_108 = arith.constant -1.45315206 : f32
    %129 = vector.broadcast %cst_108 : f32 to vector<8x896xf32>
    %130 = arith.addf %128, %129 : vector<8x896xf32>
    %131 = arith.mulf %130, %126 : vector<8x896xf32>
    %cst_109 = arith.constant 1.42141378 : f32
    %132 = vector.broadcast %cst_109 : f32 to vector<8x896xf32>
    %133 = arith.addf %131, %132 : vector<8x896xf32>
    %134 = arith.mulf %133, %126 : vector<8x896xf32>
    %cst_110 = arith.constant -0.284496725 : f32
    %135 = vector.broadcast %cst_110 : f32 to vector<8x896xf32>
    %136 = arith.addf %134, %135 : vector<8x896xf32>
    %137 = arith.mulf %136, %126 : vector<8x896xf32>
    %cst_111 = arith.constant 0.254829586 : f32
    %138 = vector.broadcast %cst_111 : f32 to vector<8x896xf32>
    %139 = arith.addf %137, %138 : vector<8x896xf32>
    %140 = arith.mulf %139, %126 : vector<8x896xf32>
    %cst_112 = arith.constant 0.000000e+00 : f32
    %141 = vector.broadcast %cst_112 : f32 to vector<8x896xf32>
    %142 = arith.subf %141, %117 : vector<8x896xf32>
    %143 = arith.mulf %142, %117 : vector<8x896xf32>
    %144 = math.exp %143 : vector<8x896xf32>
    %145 = arith.mulf %140, %144 : vector<8x896xf32>
    %cst_113 = arith.constant 1.000000e+00 : f32
    %146 = vector.broadcast %cst_113 : f32 to vector<8x896xf32>
    %147 = arith.subf %146, %145 : vector<8x896xf32>
    %148 = arith.mulf %116, %147 : vector<8x896xf32>
    %cst_114 = arith.constant 1.000000e+00 : f32
    %149 = vector.broadcast %cst_114 : f32 to vector<8x896xf32>
    %150 = arith.addf %149, %148 : vector<8x896xf32>
    %151 = arith.mulf %109, %150 : vector<8x896xf32>
    %c0_115 = arith.constant 0 : index
    %c0_116 = arith.constant 0 : index
    %c0_117 = arith.constant 0 : index
    %152 = vector.load %arg5[%c0_115, %c0_116, %c0_117] : memref<1x8x896xf32, #tpu.memory_space<vmem>>, vector<1x8x896xf32>
    %153 = vector.shape_cast %152 : vector<1x8x896xf32> to vector<8x896xf32>
    %154 = vector.shape_cast %151 : vector<8x896xf32> to vector<1x8x896xf32>
    tpu.vector_store %arg5[%c0_115, %c0_116, %c0_117], %154 {strides = array<i32>} : memref<1x8x896xf32, #tpu.memory_space<vmem>>, vector<1x8x896xf32>,
    return
  }
  func.func @transform_0(%arg0: i32) -> (i32, i32, i32) {
    %c0_i32 = arith.constant 0 : i32
    %c0_i32_0 = arith.constant 0 : i32
    %c0_i32_1 = arith.constant 0 : i32
    return %arg0, %c0_i32, %c0_i32_0 : i32, i32, i32
  }
  func.func @transform_1(%arg0: i32) -> (i32, i32, i32) {
    %c0_i32 = arith.constant 0 : i32
    %c0_i32_0 = arith.constant 0 : i32
    %c0_i32_1 = arith.constant 0 : i32
    return %arg0, %c0_i32, %c0_i32_0 : i32, i32, i32
  }
  func.func @transform_2(%arg0: i32) -> (i32, i32) {
    %c0_i32 = arith.constant 0 : i32
    %c0_i32_0 = arith.constant 0 : i32
    %c0_i32_1 = arith.constant 0 : i32
    return %c0_i32, %c0_i32_0 : i32, i32
  }
  func.func @transform_3(%arg0: i32) -> (i32, i32) {
    %c0_i32 = arith.constant 0 : i32
    %c0_i32_0 = arith.constant 0 : i32
    %c0_i32_1 = arith.constant 0 : i32
    return %c0_i32, %c0_i32_0 : i32, i32
  }
  func.func @transform_4(%arg0: i32) -> (i32, i32, i32) {
    %c0_i32 = arith.constant 0 : i32
    %c0_i32_0 = arith.constant 0 : i32
    %c0_i32_1 = arith.constant 0 : i32
    return %arg0, %c0_i32, %c0_i32_0 : i32, i32, i32
  }
}

</mosaic_0001>

<llo_original>
// kernel: res_conv_block.2
$region0: #{res_conv_block.2}
  #allocation0 [shape = 'u32[]', space=smem, size = 0x4, offset = 0x4, fixed_abs, tag = 'smem constant byte address 0x4 - core index']
  #allocation1 [shape = 'u32[144,128]{1,0:T(1,128)}', space=vmem, size = 0x12000, scoped, tag = 'internal scratch']
  #allocation2 [shape = 'f32[108,896]{1,0:T(8,128)}', space=vmem, size = 0x62000, scoped, tag = 'scratch operand']
  %s0 = inlined_call_operand.vmem [shape: f32[2,4,1152], index: 0, kind: input, shape index: {}]
  %s1 = inlined_call_operand.vmem [shape: f32[16,108], index: 1, kind: input, shape index: {}]
  %s2 = inlined_call_operand.vmem [shape: f32[1,896], index: 2, kind: input, shape index: {}]
  %s3 = inlined_call_operand.vmem [shape: f32[2,8,1152], index: 3, kind: output, shape index: {0}]
  %s4 = inlined_call_operand.vmem [shape: f32[2,8,896], index: 4, kind: output, shape index: {1}]
  %5 = xla_tuple %s3, %s4
  %s6 = sld [smem:[#allocation0]]
  $region53: #{res_conv_block.2} parent=0
    _
  %s8 = ssub.s32 1, %s6
  %s9 = scalar_select 0, %s8, %s6
  loop: start=0, step=1, limit=4
  $region2: #{res_conv_block.2} parent=0 // loop_pre_header
    _
  $region3: #{res_conv_block.2} parent=0 // loop_header
    %s11 = sphi 0, %s15
    %p12 = scmp.ge.s32.totalorder %s11, 4
    %s21 = sphi 0, %s23
    %s24 = sphi 0, %s21
    %s25 = sphi 0, %s24
    %s41 = sphi 0, %s25
    %s45 = sphi 0, %s45
    %s47 = sphi 0, %s45
    %s48 = sphi 0, %s47
    %s62 = sphi 0, %s48
    %s66 = sphi 0, %s66
    %s68 = sphi 0, %s66
    %s69 = sphi 0, %s68
    %s83 = sphi 0, %s69
    %s89 = sphi 0, %s91
    %s92 = sphi 0, %s89
    %s93 = sphi 0, %s92
    %s109 = sphi 0, %s93
    %s115 = sphi 0, %s117
    %s118 = sphi 0, %s115
    %s119 = sphi 0, %s118
    %s135 = sphi 0, %s119
  $region4: #{res_conv_block.2} parent=0 // loop_header_branch
    %14 = sbr.rel (%p12) target = $region8
  $region5: #{res_conv_block.2} parent=0 // loop_body
    %s16 = ssub.s32 %s11, 1
    %s17 = ssub.s32 %s11, 2
    %s18 = sadd.s32 %s11, 1
    %s19 = ssub.s32 %s11, %s18
    %p20 = scmp.eq.s32.totalorder %s19, 0
    %s22 = sadd.s32 %s21, 1
    %s23 = scalar_select %p20, %s21, %s22
    %p26 = pneg %p20
    %p27 = scmp.eq.s32.totalorder %s11, 1
    %p28 = por %p26, %p27
    %p29 = scmp.ne.s32.totalorder %s21, %s24
    %p30 = scmp.eq.s32.totalorder %s11, 0
    %p31 = por %p29, %p30
    %p32 = scmp.ne.s32.totalorder %s21, %s24
    %p33 = scmp.eq.s32.totalorder %s16, 1
    %p34 = por %p32, %p33
    %p35 = scmp.ne.s32.totalorder %s24, %s25
    %p36 = scmp.eq.s32.totalorder %s16, 0
    %p37 = por %p35, %p36
    %p38 = scmp.ne.s32.totalorder %s24, %s25
    %p39 = scmp.eq.s32.totalorder %s17, 1
    %p40 = por %p38, %p39
    %p42 = scmp.ne.s32.totalorder %s25, %s41
    %p43 = scmp.eq.s32.totalorder %s17, 0
    %p44 = por %p42, %p43
    %s46 = sadd.s32 %s45, 1
    %p49 = scmp.eq.s32.totalorder %s11, 1
    %p50 = scmp.ne.s32.totalorder %s45, %s47
    %p51 = scmp.eq.s32.totalorder %s11, 0
    %p52 = por %p50, %p51
    %p53 = scmp.ne.s32.totalorder %s45, %s47
    %p54 = scmp.eq.s32.totalorder %s16, 1
    %p55 = por %p53, %p54
    %p56 = scmp.ne.s32.totalorder %s47, %s48
    %p57 = scmp.eq.s32.totalorder %s16, 0
    %p58 = por %p56, %p57
    %p59 = scmp.ne.s32.totalorder %s47, %s48
    %p60 = scmp.eq.s32.totalorder %s17, 1
    %p61 = por %p59, %p60
    %p63 = scmp.ne.s32.totalorder %s48, %s62
    %p64 = scmp.eq.s32.totalorder %s17, 0
    %p65 = por %p63, %p64
    %s67 = sadd.s32 %s66, 1
    %p70 = scmp.eq.s32.totalorder %s11, 1
    %p71 = scmp.ne.s32.totalorder %s66, %s68
    %p72 = scmp.eq.s32.totalorder %s11, 0
    %p73 = por %p71, %p72
    %p74 = scmp.ne.s32.totalorder %s66, %s68
    %p75 = scmp.eq.s32.totalorder %s16, 1
    %p76 = por %p74, %p75
    %p77 = scmp.ne.s32.totalorder %s68, %s69
    %p78 = scmp.eq.s32.totalorder %s16, 0
    %p79 = por %p77, %p78
    %p80 = scmp.ne.s32.totalorder %s68, %s69
    %p81 = scmp.eq.s32.totalorder %s17, 1
    %p82 = por %p80, %p81
    %p84 = scmp.ne.s32.totalorder %s69, %s83
    %p85 = scmp.eq.s32.totalorder %s17, 0
    %p86 = por %p84, %p85
    %s87 = ssub.s32 %s11, %s18
    %p88 = scmp.eq.s32.totalorder %s87, 0
    %s90 = sadd.s32 %s89, 1
    %s91 = scalar_select %p88, %s89, %s90
    %p94 = pneg %p88
    %p95 = scmp.eq.s32.totalorder %s11, 1
    %p96 = por %p94, %p95
    %p97 = scmp.ne.s32.totalorder %s89, %s92
    %p98 = scmp.eq.s32.totalorder %s11, 0
    %p99 = por %p97, %p98
    %p100 = scmp.ne.s32.totalorder %s89, %s92
    %p101 = scmp.eq.s32.totalorder %s16, 1
    %p102 = por %p100, %p101
    %p103 = scmp.ne.s32.totalorder %s92, %s93
    %p104 = scmp.eq.s32.totalorder %s16, 0
    %p105 = por %p103, %p104
    %p106 = scmp.ne.s32.totalorder %s92, %s93
    %p107 = scmp.eq.s32.totalorder %s17, 1
    %p108 = por %p106, %p107
    %p110 = scmp.ne.s32.totalorder %s93, %s109
    %p111 = scmp.eq.s32.totalorder %s17, 0
    %p112 = por %p110, %p111
    %s113 = ssub.s32 %s11, %s18
    %p114 = scmp.eq.s32.totalorder %s113, 0
    %s116 = sadd.s32 %s115, 1
    %s117 = scalar_select %p114, %s115, %s116
    %p120 = pneg %p114
    %p121 = scmp.eq.s32.totalorder %s11, 1
    %p122 = por %p120, %p121
    %p123 = scmp.ne.s32.totalorder %s115, %s118
    %p124 = scmp.eq.s32.totalorder %s11, 0
    %p125 = por %p123, %p124
    %p126 = scmp.ne.s32.totalorder %s115, %s118
    %p127 = scmp.eq.s32.totalorder %s16, 1
    %p128 = por %p126, %p127
    %p129 = scmp.ne.s32.totalorder %s118, %s119
    %p130 = scmp.eq.s32.totalorder %s16, 0
    %p131 = por %p129, %p130
    %p132 = scmp.ne.s32.totalorder %s118, %s119
    %p133 = scmp.eq.s32.totalorder %s17, 1
    %p134 = por %p132, %p133
    %p136 = scmp.ne.s32.totalorder %s119, %s135
    %p137 = scmp.eq.s32.totalorder %s17, 0
    %p138 = por %p136, %p137
    %p139 = scmp.le.s32.totalorder 1, %s11
    %p140 = scmp.lt.s32.totalorder %s11, 3
    %p141 = pnand %p139, %p140
    %p142 = pneg %p141
    // Predicated region
    $region9: #{res_conv_block.2} parent=5 // pred_check
      _
    $region10: #{res_conv_block.2} parent=5 // pred_check_branch
      %144 = sbr.rel (%p141) target = $region12
    $region11: #{res_conv_block.2} parent=5 // pred_region
      %s145 = ssub.s32 %s11, 1
      // Predicated region
      $region13: #{res_conv_block.2} parent=11 // pred_check
        %p146 = pneg %p58
      $region14: #{res_conv_block.2} parent=11 // pred_check_branch
        %148 = sbr.rel (%p146) target = $region16
      $region15: #{res_conv_block.2} parent=11 // pred_region
        _
      $region16: #{res_conv_block.2} parent=11 // pred_fallthru
        _
      // Predicated region
      $region17: #{res_conv_block.2} parent=11 // pred_check
        %p149 = pneg %p79
      $region18: #{res_conv_block.2} parent=11 // pred_check_branch
        %151 = sbr.rel (%p149) target = $region20
      $region19: #{res_conv_block.2} parent=11 // pred_region
        _
      $region20: #{res_conv_block.2} parent=11 // pred_fallthru
        _
    $region12: #{res_conv_block.2} parent=5 // pred_fallthru
      _
    %p152 = scmp.lt.s32.totalorder %s11, 2
    // Predicated region
    $region21: #{res_conv_block.2} parent=5 // pred_check
      %p153 = pneg %p152
    $region22: #{res_conv_block.2} parent=5 // pred_check_branch
      %155 = sbr.rel (%p153) target = $region24
    $region23: #{res_conv_block.2} parent=5 // pred_region
      // Predicated region
      $region25: #{res_conv_block.2} parent=23 // pred_check
        %p156 = pneg %p31
      $region26: #{res_conv_block.2} parent=23 // pred_check_branch
        %158 = sbr.rel (%p156) target = $region28
      $region27: #{res_conv_block.2} parent=23 // pred_region
        %p159 = scmp.lt.s32.totalorder %s11, 1
        %s160 = scalar_select %p159, %s11, 1
        %s161 = smul.addr %s160, 9
        %s162 = smul.addr %s161, 4
        %s163 = scalar_lea.vmem %s0, %s162
      $region28: #{res_conv_block.2} parent=23 // pred_fallthru
        _
    $region24: #{res_conv_block.2} parent=5 // pred_fallthru
      _
    %p164 = scmp.le.s32.totalorder 1, %s11
    %p165 = scmp.lt.s32.totalorder %s11, 3
    %p166 = pnand %p164, %p165
    %p167 = pneg %p166
    // Predicated region
    $region29: #{res_conv_block.2} parent=5 // pred_check
      _
    $region30: #{res_conv_block.2} parent=5 // pred_check_branch
      %169 = sbr.rel (%p166) target = $region32
    $region31: #{res_conv_block.2} parent=5 // pred_region
      %s170 = ssub.s32 %s11, 1
      %p171 = scmp.lt.s32.totalorder %s16, 1
      %s172 = scalar_select %p171, %s16, 1
      %s173 = smul.addr %s172, 9
      %s174 = smul.addr %s173, 4
      %s175 = scalar_lea.vmem %s0, %s174
      %p176 = pneg %p37
      %p177 = pneg %p34
      %p178 = pneg %p58
      %p179 = pneg %p55
      %p180 = pneg %p79
      %p181 = pneg %p76
      %p182 = pneg %p105
      %p183 = pneg %p102
      %p184 = scmp.lt.s32.totalorder %s16, 1
      %s185 = scalar_select %p184, %s16, 1
      %s186 = smul.addr %s185, 9
      %s187 = smul.addr %s186, 8
      %s188 = scalar_lea.vmem %s3, %s187
      %p189 = pneg %p131
      %p190 = pneg %p128
      %p191 = scmp.lt.s32.totalorder %s16, 1
      %s192 = scalar_select %p191, %s16, 1
      %s193 = smul.addr %s192, 7
      %s194 = smul.addr %s193, 8
      %s195 = scalar_lea.vmem %s4, %s194
      %p196 = scmp.lt.s32.totalorder %s16, 1
      %s197 = scalar_select %p196, %s16, 1
      %s198 = smul.addr %s197, 9
      %s199 = smul.addr %s198, 4
      %s200 = scalar_lea.vmem %s0, %s199
      %p201 = scmp.lt.s32.totalorder %s16, 1
      %s202 = scalar_select %p201, %s16, 1
      %s203 = smul.addr %s202, 9
      %s204 = smul.addr %s203, 8
      %s205 = scalar_lea.vmem %s3, %s204
      %p206 = scmp.lt.s32.totalorder %s16, 1
      %s207 = scalar_select %p206, %s16, 1
      %s208 = smul.addr %s207, 7
      %s209 = smul.addr %s208, 8
      %s210 = scalar_lea.vmem %s4, %s209
      %v211 = vld [vmem:[%s200] sm:$0xff]
      %v212 = vld [vmem:[%s200 + $0x8] sm:$0xff]
      %v213 = vld [vmem:[%s200 + $0x10] sm:$0xff]
      %v214 = vld [vmem:[%s200 + $0x18] sm:$0xf]
      %v218 = vcombine.high %v211, %v211
      %v219 = vcombine.high %v212, %v212
      %v220 = vcombine.high %v213, %v213
      %224 = vst [vmem:[#allocation2] sm:$0xf] %v211
      %225 = vst [vmem:[#allocation2 + $0x8] sm:$0xf] %v218
      %226 = vst [vmem:[#allocation2 + $0x10] sm:$0xf] %v212
      %227 = vst [vmem:[#allocation2 + $0x18] sm:$0xf] %v219
      %228 = vst [vmem:[#allocation2 + $0x20] sm:$0xf] %v213
      %229 = vst [vmem:[#allocation2 + $0x28] sm:$0xf] %v220
      %230 = vst [vmem:[#allocation2 + $0x30] sm:$0xf] %v214
      %v231 = vld [vmem:[%s200] sm:$0xff]
      %v232 = vld [vmem:[%s200 + $0x8] sm:$0xff]
      %v233 = vld [vmem:[%s200 + $0x10] sm:$0xff]
      %v234 = vld [vmem:[%s200 + $0x18] sm:$0xff]
      %v239 = vcombine.low %v231, %v231
      %v240 = vcombine.low %v232, %v232
      %v241 = vcombine.low %v233, %v233
      %v242 = vcombine.low %v234, %v234
      %243 = vrot.lane.b32.xlu0 %v239, 127
      %v244 = vpop.permute.xlu0 %243
      %245 = vrot.lane.b32.xlu0 %v231, 127
      %v246 = vpop.permute.xlu0 %245
      %247 = vrot.lane.b32.xlu0 %v240, 127
      %v248 = vpop.permute.xlu0 %247
      %249 = vrot.lane.b32.xlu0 %v232, 127
      %v250 = vpop.permute.xlu0 %249
      %251 = vrot.lane.b32.xlu0 %v241, 127
      %v252 = vpop.permute.xlu0 %251
      %253 = vrot.lane.b32.xlu0 %v233, 127
      %v254 = vpop.permute.xlu0 %253
      %255 = vrot.lane.b32.xlu0 %v242, 127
      %v256 = vpop.permute.xlu0 %255
      %257 = vrot.lane.b32.xlu0 %v234, 127
      %v258 = vpop.permute.xlu0 %257
      %vm259 = vcmask 1039360
      %v260 = vsel %vm259, %v244, %v246
      %v261 = vsel %vm259, %v246, %v248
      %v262 = vsel %vm259, %v248, %v250
      %v263 = vsel %vm259, %v250, %v252
      %v264 = vsel %vm259, %v252, %v254
      %v265 = vsel %vm259, %v254, %v256
      %v266 = vsel %vm259, %v256, %v258
      %274 = vst [vmem:[#allocation2] sm:$0xf0] %v260
      %275 = vst [vmem:[#allocation2 + $0x8] sm:$0xf0] %v261
      %276 = vst [vmem:[#allocation2 + $0x10] sm:$0xf0] %v262
      %277 = vst [vmem:[#allocation2 + $0x18] sm:$0xf0] %v263
      %278 = vst [vmem:[#allocation2 + $0x20] sm:$0xf0] %v264
      %279 = vst [vmem:[#allocation2 + $0x28] sm:$0xf0] %v265
      %280 = vst [vmem:[#allocation2 + $0x30] sm:$0xf0] %v266
      %v281 = vld [vmem:[%s200] sm:$0xff]
      %v282 = vld [vmem:[%s200 + $0x8] sm:$0xff]
      %v283 = vld [vmem:[%s200 + $0x10] sm:$0xff]
      %v284 = vld [vmem:[%s200 + $0x18] sm:$0xff]
      %v289 = vcombine.high %v281, %v281
      %v290 = vcombine.high %v282, %v282
      %v291 = vcombine.high %v283, %v283
      %v292 = vcombine.high %v284, %v284
      %293 = vrot.lane.b32.xlu0 %v281, 126
      %v294 = vpop.permute.xlu0 %293
      %295 = vrot.lane.b32.xlu0 %v289, 126
      %v296 = vpop.permute.xlu0 %295
      %297 = vrot.lane.b32.xlu0 %v282, 126
      %v298 = vpop.permute.xlu0 %297
      %299 = vrot.lane.b32.xlu0 %v290, 126
      %v300 = vpop.permute.xlu0 %299
      %301 = vrot.lane.b32.xlu0 %v283, 126
      %v302 = vpop.permute.xlu0 %301
      %303 = vrot.lane.b32.xlu0 %v291, 126
      %v304 = vpop.permute.xlu0 %303
      %305 = vrot.lane.b32.xlu0 %v284, 126
      %v306 = vpop.permute.xlu0 %305
      %307 = vrot.lane.b32.xlu0 %v292, 126
      %v308 = vpop.permute.xlu0 %307
      %vm309 = vcmask 1031168
      %v310 = vsel %vm309, %v294, %v296
      %v311 = vsel %vm309, %v296, %v298
      %v312 = vsel %vm309, %v298, %v300
      %v313 = vsel %vm309, %v300, %v302
      %v314 = vsel %vm309, %v302, %v304
      %v315 = vsel %vm309, %v304, %v306
      %v316 = vsel %vm309, %v306, %v308
      %324 = vst [vmem:[#allocation2 + $0x38] sm:$0xf] %v310
      %325 = vst [vmem:[#allocation2 + $0x40] sm:$0xf] %v311
      %326 = vst [vmem:[#allocation2 + $0x48] sm:$0xf] %v312
      %327 = vst [vmem:[#allocation2 + $0x50] sm:$0xf] %v313
      %328 = vst [vmem:[#allocation2 + $0x58] sm:$0xf] %v314
      %329 = vst [vmem:[#allocation2 + $0x60] sm:$0xf] %v315
      %330 = vst [vmem:[#allocation2 + $0x68] sm:$0xf] %v316
      %v331 = vld [vmem:[%s200] sm:$0xff]
      %v332 = vld [vmem:[%s200 + $0x8] sm:$0xff]
      %v333 = vld [vmem:[%s200 + $0x10] sm:$0xff]
      %v334 = vld [vmem:[%s200 + $0x18] sm:$0xff]
      %v339 = vcombine.low %v331, %v331
      %v340 = vcombine.low %v332, %v332
      %v341 = vcombine.low %v333, %v333
      %v342 = vcombine.low %v334, %v334
      %343 = vrot.lane.b32.xlu0 %v339, 118
      %v344 = vpop.permute.xlu0 %343
      %345 = vrot.lane.b32.xlu0 %v331, 118
      %v346 = vpop.permute.xlu0 %345
      %347 = vrot.lane.b32.xlu0 %v340, 118
      %v348 = vpop.permute.xlu0 %347
      %349 = vrot.lane.b32.xlu0 %v332, 118
      %v350 = vpop.permute.xlu0 %349
      %351 = vrot.lane.b32.xlu0 %v341, 118
      %v352 = vpop.permute.xlu0 %351
      %353 = vrot.lane.b32.xlu0 %v333, 118
      %v354 = vpop.permute.xlu0 %353
      %355 = vrot.lane.b32.xlu0 %v342, 118
      %v356 = vpop.permute.xlu0 %355
      %357 = vrot.lane.b32.xlu0 %v334, 118
      %v358 = vpop.permute.xlu0 %357
      %vm359 = vcmask 965632
      %v360 = vsel %vm359, %v344, %v346
      %v361 = vsel %vm359, %v346, %v348
      %v362 = vsel %vm359, %v348, %v350
      %v363 = vsel %vm359, %v350, %v352
      %v364 = vsel %vm359, %v352, %v354
      %v365 = vsel %vm359, %v354, %v356
      %v366 = vsel %vm359, %v356, %v358
      %374 = vst [vmem:[#allocation2 + $0x38] sm:$0xf0] %v360
      %375 = vst [vmem:[#allocation2 + $0x40] sm:$0xf0] %v361
      %376 = vst [vmem:[#allocation2 + $0x48] sm:$0xf0] %v362
      %377 = vst [vmem:[#allocation2 + $0x50] sm:$0xf0] %v363
      %378 = vst [vmem:[#allocation2 + $0x58] sm:$0xf0] %v364
      %379 = vst [vmem:[#allocation2 + $0x60] sm:$0xf0] %v365
      %380 = vst [vmem:[#allocation2 + $0x68] sm:$0xf0] %v366
      %v381 = vld [vmem:[%s200] sm:$0xff]
      %v382 = vld [vmem:[%s200 + $0x8] sm:$0xff]
      %v383 = vld [vmem:[%s200 + $0x10] sm:$0xff]
      %v384 = vld [vmem:[%s200 + $0x18] sm:$0xff]
      %v389 = vcombine.high %v381, %v381
      %v390 = vcombine.high %v382, %v382
      %v391 = vcombine.high %v383, %v383
      %v392 = vcombine.high %v384, %v384
      %393 = vrot.lane.b32.xlu0 %v381, 117
      %v394 = vpop.permute.xlu0 %393
      %395 = vrot.lane.b32.xlu0 %v389, 117
      %v396 = vpop.permute.xlu0 %395
      %397 = vrot.lane.b32.xlu0 %v382, 117
      %v398 = vpop.permute.xlu0 %397
      %399 = vrot.lane.b32.xlu0 %v390, 117
      %v400 = vpop.permute.xlu0 %399
      %401 = vrot.lane.b32.xlu0 %v383, 117
      %v402 = vpop.permute.xlu0 %401
      %403 = vrot.lane.b32.xlu0 %v391, 117
      %v404 = vpop.permute.xlu0 %403
      %405 = vrot.lane.b32.xlu0 %v384, 117
      %v406 = vpop.permute.xlu0 %405
      %407 = vrot.lane.b32.xlu0 %v392, 117
      %v408 = vpop.permute.xlu0 %407
      %vm409 = vcmask 957440
      %v410 = vsel %vm409, %v394, %v396
      %v411 = vsel %vm409, %v396, %v398
      %v412 = vsel %vm409, %v398, %v400
      %v413 = vsel %vm409, %v400, %v402
      %v414 = vsel %vm409, %v402, %v404
      %v415 = vsel %vm409, %v404, %v406
      %v416 = vsel %vm409, %v406, %v408
      %424 = vst [vmem:[#allocation2 + $0x70] sm:$0xf] %v410
      %425 = vst [vmem:[#allocation2 + $0x78] sm:$0xf] %v411
      %426 = vst [vmem:[#allocation2 + $0x80] sm:$0xf] %v412
      %427 = vst [vmem:[#allocation2 + $0x88] sm:$0xf] %v413
      %428 = vst [vmem:[#allocation2 + $0x90] sm:$0xf] %v414
      %429 = vst [vmem:[#allocation2 + $0x98] sm:$0xf] %v415
      %430 = vst [vmem:[#allocation2 + $0xa0] sm:$0xf] %v416
      %v431 = vld [vmem:[%s200] sm:$0xff]
      %v432 = vld [vmem:[%s200 + $0x8] sm:$0xff]
      %v433 = vld [vmem:[%s200 + $0x10] sm:$0xff]
      %v434 = vld [vmem:[%s200 + $0x18] sm:$0xff]
      %v439 = vcombine.low %v431, %v431
      %v440 = vcombine.low %v432, %v432
      %v441 = vcombine.low %v433, %v433
      %v442 = vcombine.low %v434, %v434
      %443 = vrot.lane.b32.xlu0 %v439, 116
      %v444 = vpop.permute.xlu0 %443
      %445 = vrot.lane.b32.xlu0 %v431, 116
      %v446 = vpop.permute.xlu0 %445
      %447 = vrot.lane.b32.xlu0 %v440, 116
      %v448 = vpop.permute.xlu0 %447
      %449 = vrot.lane.b32.xlu0 %v432, 116
      %v450 = vpop.permute.xlu0 %449
      %451 = vrot.lane.b32.xlu0 %v441, 116
      %v452 = vpop.permute.xlu0 %451
      %453 = vrot.lane.b32.xlu0 %v433, 116
      %v454 = vpop.permute.xlu0 %453
      %455 = vrot.lane.b32.xlu0 %v442, 116
      %v456 = vpop.permute.xlu0 %455
      %457 = vrot.lane.b32.xlu0 %v434, 116
      %v458 = vpop.permute.xlu0 %457
      %vm459 = vcmask 949248
      %v460 = vsel %vm459, %v444, %v446
      %v461 = vsel %vm459, %v446, %v448
      %v462 = vsel %vm459, %v448, %v450
      %v463 = vsel %vm459, %v450, %v452
      %v464 = vsel %vm459, %v452, %v454
      %v465 = vsel %vm459, %v454, %v456
      %v466 = vsel %vm459, %v456, %v458
      %474 = vst [vmem:[#allocation2 + $0x70] sm:$0xf0] %v460
      %475 = vst [vmem:[#allocation2 + $0x78] sm:$0xf0] %v461
      %476 = vst [vmem:[#allocation2 + $0x80] sm:$0xf0] %v462
      %477 = vst [vmem:[#allocation2 + $0x88] sm:$0xf0] %v463
      %478 = vst [vmem:[#allocation2 + $0x90] sm:$0xf0] %v464
      %479 = vst [vmem:[#allocation2 + $0x98] sm:$0xf0] %v465
      %480 = vst [vmem:[#allocation2 + $0xa0] sm:$0xf0] %v466
      %v481 = vld [vmem:[%s200] sm:$0xff]
      %v482 = vld [vmem:[%s200 + $0x8] sm:$0xff]
      %v483 = vld [vmem:[%s200 + $0x10] sm:$0xff]
      %v484 = vld [vmem:[%s200 + $0x18] sm:$0xff]
      %v489 = vcombine.high %v481, %v481
      %v490 = vcombine.high %v482, %v482
      %v491 = vcombine.high %v483, %v483
      %v492 = vcombine.high %v484, %v484
      %493 = vrot.lane.b32.xlu0 %v481, 108
      %v494 = vpop.permute.xlu0 %493
      %495 = vrot.lane.b32.xlu0 %v489, 108
      %v496 = vpop.permute.xlu0 %495
      %497 = vrot.lane.b32.xlu0 %v482, 108
      %v498 = vpop.permute.xlu0 %497
      %499 = vrot.lane.b32.xlu0 %v490, 108
      %v500 = vpop.permute.xlu0 %499
      %501 = vrot.lane.b32.xlu0 %v483, 108
      %v502 = vpop.permute.xlu0 %501
      %503 = vrot.lane.b32.xlu0 %v491, 108
      %v504 = vpop.permute.xlu0 %503
      %505 = vrot.lane.b32.xlu0 %v484, 108
      %v506 = vpop.permute.xlu0 %505
      %507 = vrot.lane.b32.xlu0 %v492, 108
      %v508 = vpop.permute.xlu0 %507
      %vm509 = vcmask 883712
      %v510 = vsel %vm509, %v494, %v496
      %v511 = vsel %vm509, %v496, %v498
      %v512 = vsel %vm509, %v498, %v500
      %v513 = vsel %vm509, %v500, %v502
      %v514 = vsel %vm509, %v502, %v504
      %v515 = vsel %vm509, %v504, %v506
      %v516 = vsel %vm509, %v506, %v508
      %524 = vst [vmem:[#allocation2 + $0xa8] sm:$0xf] %v510
      %525 = vst [vmem:[#allocation2 + $0xb0] sm:$0xf] %v511
      %526 = vst [vmem:[#allocation2 + $0xb8] sm:$0xf] %v512
      %527 = vst [vmem:[#allocation2 + $0xc0] sm:$0xf] %v513
      %528 = vst [vmem:[#allocation2 + $0xc8] sm:$0xf] %v514
      %529 = vst [vmem:[#allocation2 + $0xd0] sm:$0xf] %v515
      %530 = vst [vmem:[#allocation2 + $0xd8] sm:$0xf] %v516
      %v531 = vld [vmem:[%s200] sm:$0xff]
      %v532 = vld [vmem:[%s200 + $0x8] sm:$0xff]
      %v533 = vld [vmem:[%s200 + $0x10] sm:$0xff]
      %v534 = vld [vmem:[%s200 + $0x18] sm:$0xff]
      %v539 = vcombine.low %v531, %v531
      %v540 = vcombine.low %v532, %v532
      %v541 = vcombine.low %v533, %v533
      %v542 = vcombine.low %v534, %v534
      %543 = vrot.lane.b32.xlu0 %v539, 107
      %v544 = vpop.permute.xlu0 %543
      %545 = vrot.lane.b32.xlu0 %v531, 107
      %v546 = vpop.permute.xlu0 %545
      %547 = vrot.lane.b32.xlu0 %v540, 107
      %v548 = vpop.permute.xlu0 %547
      %549 = vrot.lane.b32.xlu0 %v532, 107
      %v550 = vpop.permute.xlu0 %549
      %551 = vrot.lane.b32.xlu0 %v541, 107
      %v552 = vpop.permute.xlu0 %551
      %553 = vrot.lane.b32.xlu0 %v533, 107
      %v554 = vpop.permute.xlu0 %553
      %555 = vrot.lane.b32.xlu0 %v542, 107
      %v556 = vpop.permute.xlu0 %555
      %557 = vrot.lane.b32.xlu0 %v534, 107
      %v558 = vpop.permute.xlu0 %557
      %vm559 = vcmask 875520
      %v560 = vsel %vm559, %v544, %v546
      %v561 = vsel %vm559, %v546, %v548
      %v562 = vsel %vm559, %v548, %v550
      %v563 = vsel %vm559, %v550, %v552
      %v564 = vsel %vm559, %v552, %v554
      %v565 = vsel %vm559, %v554, %v556
      %v566 = vsel %vm559, %v556, %v558
      %574 = vst [vmem:[#allocation2 + $0xa8] sm:$0xf0] %v560
      %575 = vst [vmem:[#allocation2 + $0xb0] sm:$0xf0] %v561
      %576 = vst [vmem:[#allocation2 + $0xb8] sm:$0xf0] %v562
      %577 = vst [vmem:[#allocation2 + $0xc0] sm:$0xf0] %v563
      %578 = vst [vmem:[#allocation2 + $0xc8] sm:$0xf0] %v564
      %579 = vst [vmem:[#allocation2 + $0xd0] sm:$0xf0] %v565
      %580 = vst [vmem:[#allocation2 + $0xd8] sm:$0xf0] %v566
      %v581 = vld [vmem:[%s200] sm:$0xff]
      %v582 = vld [vmem:[%s200 + $0x8] sm:$0xff]
      %v583 = vld [vmem:[%s200 + $0x10] sm:$0xff]
      %v584 = vld [vmem:[%s200 + $0x18] sm:$0xff]
      %v589 = vcombine.high %v581, %v581
      %v590 = vcombine.high %v582, %v582
      %v591 = vcombine.high %v583, %v583
      %v592 = vcombine.high %v584, %v584
      %593 = vrot.lane.b32.xlu0 %v581, 106
      %v594 = vpop.permute.xlu0 %593
      %595 = vrot.lane.b32.xlu0 %v589, 106
      %v596 = vpop.permute.xlu0 %595
      %597 = vrot.lane.b32.xlu0 %v582, 106
      %v598 = vpop.permute.xlu0 %597
      %599 = vrot.lane.b32.xlu0 %v590, 106
      %v600 = vpop.permute.xlu0 %599
      %601 = vrot.lane.b32.xlu0 %v583, 106
      %v602 = vpop.permute.xlu0 %601
      %603 = vrot.lane.b32.xlu0 %v591, 106
      %v604 = vpop.permute.xlu0 %603
      %605 = vrot.lane.b32.xlu0 %v584, 106
      %v606 = vpop.permute.xlu0 %605
      %607 = vrot.lane.b32.xlu0 %v592, 106
      %v608 = vpop.permute.xlu0 %607
      %vm609 = vcmask 867328
      %v610 = vsel %vm609, %v594, %v596
      %v611 = vsel %vm609, %v596, %v598
      %v612 = vsel %vm609, %v598, %v600
      %v613 = vsel %vm609, %v600, %v602
      %v614 = vsel %vm609, %v602, %v604
      %v615 = vsel %vm609, %v604, %v606
      %v616 = vsel %vm609, %v606, %v608
      %624 = vst [vmem:[#allocation2 + $0xe0] sm:$0xf] %v610
      %625 = vst [vmem:[#allocation2 + $0xe8] sm:$0xf] %v611
      %626 = vst [vmem:[#allocation2 + $0xf0] sm:$0xf] %v612
      %627 = vst [vmem:[#allocation2 + $0xf8] sm:$0xf] %v613
      %628 = vst [vmem:[#allocation2 + $0x100] sm:$0xf] %v614
      %629 = vst [vmem:[#allocation2 + $0x108] sm:$0xf] %v615
      %630 = vst [vmem:[#allocation2 + $0x110] sm:$0xf] %v616
      %v631 = vld [vmem:[%s200] sm:$0xff]
      %v632 = vld [vmem:[%s200 + $0x8] sm:$0xff]
      %v633 = vld [vmem:[%s200 + $0x10] sm:$0xff]
      %v634 = vld [vmem:[%s200 + $0x18] sm:$0xff]
      %v639 = vcombine.low %v631, %v631
      %v640 = vcombine.low %v632, %v632
      %v641 = vcombine.low %v633, %v633
      %v642 = vcombine.low %v634, %v634
      %643 = vrot.lane.b32.xlu0 %v639, 28
      %v644 = vpop.permute.xlu0 %643
      %645 = vrot.lane.b32.xlu0 %v631, 28
      %v646 = vpop.permute.xlu0 %645
      %647 = vrot.lane.b32.xlu0 %v640, 28
      %v648 = vpop.permute.xlu0 %647
      %649 = vrot.lane.b32.xlu0 %v632, 28
      %v650 = vpop.permute.xlu0 %649
      %651 = vrot.lane.b32.xlu0 %v641, 28
      %v652 = vpop.permute.xlu0 %651
      %653 = vrot.lane.b32.xlu0 %v633, 28
      %v654 = vpop.permute.xlu0 %653
      %655 = vrot.lane.b32.xlu0 %v642, 28
      %v656 = vpop.permute.xlu0 %655
      %657 = vrot.lane.b32.xlu0 %v634, 28
      %v658 = vpop.permute.xlu0 %657
      %vm659 = vcmask 228352
      %v660 = vsel %vm659, %v644, %v646
      %v661 = vsel %vm659, %v646, %v648
      %v662 = vsel %vm659, %v648, %v650
      %v663 = vsel %vm659, %v650, %v652
      %v664 = vsel %vm659, %v652, %v654
      %v665 = vsel %vm659, %v654, %v656
      %v666 = vsel %vm659, %v656, %v658
      %674 = vst [vmem:[#allocation2 + $0xe0] sm:$0xf0] %v660
      %675 = vst [vmem:[#allocation2 + $0xe8] sm:$0xf0] %v661
      %676 = vst [vmem:[#allocation2 + $0xf0] sm:$0xf0] %v662
      %677 = vst [vmem:[#allocation2 + $0xf8] sm:$0xf0] %v663
      %678 = vst [vmem:[#allocation2 + $0x100] sm:$0xf0] %v664
      %679 = vst [vmem:[#allocation2 + $0x108] sm:$0xf0] %v665
      %680 = vst [vmem:[#allocation2 + $0x110] sm:$0xf0] %v666
      %v681 = vld [vmem:[%s200] sm:$0xff]
      %v682 = vld [vmem:[%s200 + $0x8] sm:$0xff]
      %v683 = vld [vmem:[%s200 + $0x10] sm:$0xff]
      %v684 = vld [vmem:[%s200 + $0x18] sm:$0xff]
      %v689 = vcombine.high %v681, %v681
      %v690 = vcombine.high %v682, %v682
      %v691 = vcombine.high %v683, %v683
      %v692 = vcombine.high %v684, %v684
      %693 = vrot.lane.b32.xlu0 %v681, 27
      %v694 = vpop.permute.xlu0 %693
      %695 = vrot.lane.b32.xlu0 %v689, 27
      %v696 = vpop.permute.xlu0 %695
      %697 = vrot.lane.b32.xlu0 %v682, 27
      %v698 = vpop.permute.xlu0 %697
      %699 = vrot.lane.b32.xlu0 %v690, 27
      %v700 = vpop.permute.xlu0 %699
      %701 = vrot.lane.b32.xlu0 %v683, 27
      %v702 = vpop.permute.xlu0 %701
      %703 = vrot.lane.b32.xlu0 %v691, 27
      %v704 = vpop.permute.xlu0 %703
      %705 = vrot.lane.b32.xlu0 %v684, 27
      %v706 = vpop.permute.xlu0 %705
      %707 = vrot.lane.b32.xlu0 %v692, 27
      %v708 = vpop.permute.xlu0 %707
      %vm709 = vcmask 220160
      %v710 = vsel %vm709, %v694, %v696
      %v711 = vsel %vm709, %v696, %v698
      %v712 = vsel %vm709, %v698, %v700
      %v713 = vsel %vm709, %v700, %v702
      %v714 = vsel %vm709, %v702, %v704
      %v715 = vsel %vm709, %v704, %v706
      %v716 = vsel %vm709, %v706, %v708
      %724 = vst [vmem:[#allocation2 + $0x118] sm:$0xf] %v710
      %725 = vst [vmem:[#allocation2 + $0x120] sm:$0xf] %v711
      %726 = vst [vmem:[#allocation2 + $0x128] sm:$0xf] %v712
      %727 = vst [vmem:[#allocation2 + $0x130] sm:$0xf] %v713
      %728 = vst [vmem:[#allocation2 + $0x138] sm:$0xf] %v714
      %729 = vst [vmem:[#allocation2 + $0x140] sm:$0xf] %v715
      %730 = vst [vmem:[#allocation2 + $0x148] sm:$0xf] %v716
      %v731 = vld [vmem:[%s200] sm:$0xff]
      %v732 = vld [vmem:[%s200 + $0x8] sm:$0xff]
      %v733 = vld [vmem:[%s200 + $0x10] sm:$0xff]
      %v734 = vld [vmem:[%s200 + $0x18] sm:$0xff]
      %v739 = vcombine.low %v731, %v731
      %v740 = vcombine.low %v732, %v732
      %v741 = vcombine.low %v733, %v733
      %v742 = vcombine.low %v734, %v734
      %743 = vrot.lane.b32.xlu0 %v739, 26
      %v744 = vpop.permute.xlu0 %743
      %745 = vrot.lane.b32.xlu0 %v731, 26
      %v746 = vpop.permute.xlu0 %745
      %747 = vrot.lane.b32.xlu0 %v740, 26
      %v748 = vpop.permute.xlu0 %747
      %749 = vrot.lane.b32.xlu0 %v732, 26
      %v750 = vpop.permute.xlu0 %749
      %751 = vrot.lane.b32.xlu0 %v741, 26
      %v752 = vpop.permute.xlu0 %751
      %753 = vrot.lane.b32.xlu0 %v733, 26
      %v754 = vpop.permute.xlu0 %753
      %755 = vrot.lane.b32.xlu0 %v742, 26
      %v756 = vpop.permute.xlu0 %755
      %757 = vrot.lane.b32.xlu0 %v734, 26
      %v758 = vpop.permute.xlu0 %757
      %vm759 = vcmask 211968
      %v760 = vsel %vm759, %v744, %v746
      %v761 = vsel %vm759, %v746, %v748
      %v762 = vsel %vm759, %v748, %v750
      %v763 = vsel %vm759, %v750, %v752
      %v764 = vsel %vm759, %v752, %v754
      %v765 = vsel %vm759, %v754, %v756
      %v766 = vsel %vm759, %v756, %v758
      %774 = vst [vmem:[#allocation2 + $0x118] sm:$0xf0] %v760
      %775 = vst [vmem:[#allocation2 + $0x120] sm:$0xf0] %v761
      %776 = vst [vmem:[#allocation2 + $0x128] sm:$0xf0] %v762
      %777 = vst [vmem:[#allocation2 + $0x130] sm:$0xf0] %v763
      %778 = vst [vmem:[#allocation2 + $0x138] sm:$0xf0] %v764
      %779 = vst [vmem:[#allocation2 + $0x140] sm:$0xf0] %v765
      %780 = vst [vmem:[#allocation2 + $0x148] sm:$0xf0] %v766
      %v781 = vld [vmem:[%s200] sm:$0xff]
      %v782 = vld [vmem:[%s200 + $0x8] sm:$0xff]
      %v783 = vld [vmem:[%s200 + $0x10] sm:$0xff]
      %v784 = vld [vmem:[%s200 + $0x18] sm:$0xff]
      %v789 = vcombine.high %v781, %v781
      %v790 = vcombine.high %v782, %v782
      %v791 = vcombine.high %v783, %v783
      %v792 = vcombine.high %v784, %v784
      %793 = vrot.lane.b32.xlu0 %v781, 18
      %v794 = vpop.permute.xlu0 %793
      %795 = vrot.lane.b32.xlu0 %v789, 18
      %v796 = vpop.permute.xlu0 %795
      %797 = vrot.lane.b32.xlu0 %v782, 18
      %v798 = vpop.permute.xlu0 %797
      %799 = vrot.lane.b32.xlu0 %v790, 18
      %v800 = vpop.permute.xlu0 %799
      %801 = vrot.lane.b32.xlu0 %v783, 18
      %v802 = vpop.permute.xlu0 %801
      %803 = vrot.lane.b32.xlu0 %v791, 18
      %v804 = vpop.permute.xlu0 %803
      %805 = vrot.lane.b32.xlu0 %v784, 18
      %v806 = vpop.permute.xlu0 %805
      %807 = vrot.lane.b32.xlu0 %v792, 18
      %v808 = vpop.permute.xlu0 %807
      %vm809 = vcmask 146432
      %v810 = vsel %vm809, %v794, %v796
      %v811 = vsel %vm809, %v796, %v798
      %v812 = vsel %vm809, %v798, %v800
      %v813 = vsel %vm809, %v800, %v802
      %v814 = vsel %vm809, %v802, %v804
      %v815 = vsel %vm809, %v804, %v806
      %v816 = vsel %vm809, %v806, %v808
      %824 = vst [vmem:[#allocation2 + $0x150] sm:$0xf] %v810
      %825 = vst [vmem:[#allocation2 + $0x158] sm:$0xf] %v811
      %826 = vst [vmem:[#allocation2 + $0x160] sm:$0xf] %v812
      %827 = vst [vmem:[#allocation2 + $0x168] sm:$0xf] %v813
      %828 = vst [vmem:[#allocation2 + $0x170] sm:$0xf] %v814
      %829 = vst [vmem:[#allocation2 + $0x178] sm:$0xf] %v815
      %830 = vst [vmem:[#allocation2 + $0x180] sm:$0xf] %v816
      %v831 = vld [vmem:[%s200] sm:$0xff]
      %v832 = vld [vmem:[%s200 + $0x8] sm:$0xff]
      %v833 = vld [vmem:[%s200 + $0x10] sm:$0xff]
      %v834 = vld [vmem:[%s200 + $0x18] sm:$0xff]
      %v839 = vcombine.low %v831, %v831
      %v840 = vcombine.low %v832, %v832
      %v841 = vcombine.low %v833, %v833
      %v842 = vcombine.low %v834, %v834
      %843 = vrot.lane.b32.xlu0 %v839, 17
      %v844 = vpop.permute.xlu0 %843
      %845 = vrot.lane.b32.xlu0 %v831, 17
      %v846 = vpop.permute.xlu0 %845
      %847 = vrot.lane.b32.xlu0 %v840, 17
      %v848 = vpop.permute.xlu0 %847
      %849 = vrot.lane.b32.xlu0 %v832, 17
      %v850 = vpop.permute.xlu0 %849
      %851 = vrot.lane.b32.xlu0 %v841, 17
      %v852 = vpop.permute.xlu0 %851
      %853 = vrot.lane.b32.xlu0 %v833, 17
      %v854 = vpop.permute.xlu0 %853
      %855 = vrot.lane.b32.xlu0 %v842, 17
      %v856 = vpop.permute.xlu0 %855
      %857 = vrot.lane.b32.xlu0 %v834, 17
      %v858 = vpop.permute.xlu0 %857
      %vm859 = vcmask 138240
      %v860 = vsel %vm859, %v844, %v846
      %v861 = vsel %vm859, %v846, %v848
      %v862 = vsel %vm859, %v848, %v850
      %v863 = vsel %vm859, %v850, %v852
      %v864 = vsel %vm859, %v852, %v854
      %v865 = vsel %vm859, %v854, %v856
      %v866 = vsel %vm859, %v856, %v858
      %874 = vst [vmem:[#allocation2 + $0x150] sm:$0xf0] %v860
      %875 = vst [vmem:[#allocation2 + $0x158] sm:$0xf0] %v861
      %876 = vst [vmem:[#allocation2 + $0x160] sm:$0xf0] %v862
      %877 = vst [vmem:[#allocation2 + $0x168] sm:$0xf0] %v863
      %878 = vst [vmem:[#allocation2 + $0x170] sm:$0xf0] %v864
      %879 = vst [vmem:[#allocation2 + $0x178] sm:$0xf0] %v865
      %880 = vst [vmem:[#allocation2 + $0x180] sm:$0xf0] %v866
      %v881 = vld [vmem:[%s200] sm:$0xff]
      %v882 = vld [vmem:[%s200 + $0x8] sm:$0xff]
      %v883 = vld [vmem:[%s200 + $0x10] sm:$0xff]
      %v884 = vld [vmem:[%s200 + $0x18] sm:$0xff]
      %v889 = vcombine.high %v881, %v881
      %v890 = vcombine.high %v882, %v882
      %v891 = vcombine.high %v883, %v883
      %v892 = vcombine.high %v884, %v884
      %893 = vrot.lane.b32.xlu0 %v881, 16
      %v894 = vpop.permute.xlu0 %893
      %895 = vrot.lane.b32.xlu0 %v889, 16
      %v896 = vpop.permute.xlu0 %895
      %897 = vrot.lane.b32.xlu0 %v882, 16
      %v898 = vpop.permute.xlu0 %897
      %899 = vrot.lane.b32.xlu0 %v890, 16
      %v900 = vpop.permute.xlu0 %899
      %901 = vrot.lane.b32.xlu0 %v883, 16
      %v902 = vpop.permute.xlu0 %901
      %903 = vrot.lane.b32.xlu0 %v891, 16
      %v904 = vpop.permute.xlu0 %903
      %905 = vrot.lane.b32.xlu0 %v884, 16
      %v906 = vpop.permute.xlu0 %905
      %907 = vrot.lane.b32.xlu0 %v892, 16
      %v908 = vpop.permute.xlu0 %907
      %vm909 = vcmask 130048
      %v910 = vsel %vm909, %v894, %v896
      %v911 = vsel %vm909, %v896, %v898
      %v912 = vsel %vm909, %v898, %v900
      %v913 = vsel %vm909, %v900, %v902
      %v914 = vsel %vm909, %v902, %v904
      %v915 = vsel %vm909, %v904, %v906
      %v916 = vsel %vm909, %v906, %v908
      %924 = vst [vmem:[#allocation2 + $0x188] sm:$0xf] %v910
      %925 = vst [vmem:[#allocation2 + $0x190] sm:$0xf] %v911
      %926 = vst [vmem:[#allocation2 + $0x198] sm:$0xf] %v912
      %927 = vst [vmem:[#allocation2 + $0x1a0] sm:$0xf] %v913
      %928 = vst [vmem:[#allocation2 + $0x1a8] sm:$0xf] %v914
      %929 = vst [vmem:[#allocation2 + $0x1b0] sm:$0xf] %v915
      %930 = vst [vmem:[#allocation2 + $0x1b8] sm:$0xf] %v916
      %v931 = vld [vmem:[%s200] sm:$0xff]
      %v932 = vld [vmem:[%s200 + $0x8] sm:$0xff]
      %v933 = vld [vmem:[%s200 + $0x10] sm:$0xff]
      %v934 = vld [vmem:[%s200 + $0x18] sm:$0xff]
      %v939 = vcombine.low %v931, %v931
      %v940 = vcombine.low %v932, %v932
      %v941 = vcombine.low %v933, %v933
      %v942 = vcombine.low %v934, %v934
      %943 = vrot.lane.b32.xlu0 %v939, 8
      %v944 = vpop.permute.xlu0 %943
      %945 = vrot.lane.b32.xlu0 %v931, 8
      %v946 = vpop.permute.xlu0 %945
      %947 = vrot.lane.b32.xlu0 %v940, 8
      %v948 = vpop.permute.xlu0 %947
      %949 = vrot.lane.b32.xlu0 %v932, 8
      %v950 = vpop.permute.xlu0 %949
      %951 = vrot.lane.b32.xlu0 %v941, 8
      %v952 = vpop.permute.xlu0 %951
      %953 = vrot.lane.b32.xlu0 %v933, 8
      %v954 = vpop.permute.xlu0 %953
      %955 = vrot.lane.b32.xlu0 %v942, 8
      %v956 = vpop.permute.xlu0 %955
      %957 = vrot.lane.b32.xlu0 %v934, 8
      %v958 = vpop.permute.xlu0 %957
      %vm959 = vcmask 64512
      %v960 = vsel %vm959, %v944, %v946
      %v961 = vsel %vm959, %v946, %v948
      %v962 = vsel %vm959, %v948, %v950
      %v963 = vsel %vm959, %v950, %v952
      %v964 = vsel %vm959, %v952, %v954
      %v965 = vsel %vm959, %v954, %v956
      %v966 = vsel %vm959, %v956, %v958
      %974 = vst [vmem:[#allocation2 + $0x188] sm:$0xf0] %v960
      %975 = vst [vmem:[#allocation2 + $0x190] sm:$0xf0] %v961
      %976 = vst [vmem:[#allocation2 + $0x198] sm:$0xf0] %v962
      %977 = vst [vmem:[#allocation2 + $0x1a0] sm:$0xf0] %v963
      %978 = vst [vmem:[#allocation2 + $0x1a8] sm:$0xf0] %v964
      %979 = vst [vmem:[#allocation2 + $0x1b0] sm:$0xf0] %v965
      %980 = vst [vmem:[#allocation2 + $0x1b8] sm:$0xf0] %v966
      %v981 = vld [vmem:[%s200] sm:$0xff]
      %v982 = vld [vmem:[%s200 + $0x8] sm:$0xff]
      %v983 = vld [vmem:[%s200 + $0x10] sm:$0xff]
      %v984 = vld [vmem:[%s200 + $0x18] sm:$0xff]
      %v989 = vcombine.high %v981, %v981
      %v990 = vcombine.high %v982, %v982
      %v991 = vcombine.high %v983, %v983
      %v992 = vcombine.high %v984, %v984
      %993 = vrot.lane.b32.xlu0 %v981, 7
      %v994 = vpop.permute.xlu0 %993
      %995 = vrot.lane.b32.xlu0 %v989, 7
      %v996 = vpop.permute.xlu0 %995
      %997 = vrot.lane.b32.xlu0 %v982, 7
      %v998 = vpop.permute.xlu0 %997
      %999 = vrot.lane.b32.xlu0 %v990, 7
      %v1000 = vpop.permute.xlu0 %999
      %1001 = vrot.lane.b32.xlu0 %v983, 7
      %v1002 = vpop.permute.xlu0 %1001
      %1003 = vrot.lane.b32.xlu0 %v991, 7
      %v1004 = vpop.permute.xlu0 %1003
      %1005 = vrot.lane.b32.xlu0 %v984, 7
      %v1006 = vpop.permute.xlu0 %1005
      %1007 = vrot.lane.b32.xlu0 %v992, 7
      %v1008 = vpop.permute.xlu0 %1007
      %vm1009 = vcmask 56320
      %v1010 = vsel %vm1009, %v994, %v996
      %v1011 = vsel %vm1009, %v996, %v998
      %v1012 = vsel %vm1009, %v998, %v1000
      %v1013 = vsel %vm1009, %v1000, %v1002
      %v1014 = vsel %vm1009, %v1002, %v1004
      %v1015 = vsel %vm1009, %v1004, %v1006
      %v1016 = vsel %vm1009, %v1006, %v1008
      %1024 = vst [vmem:[#allocation2 + $0x1c0] sm:$0xf] %v1010
      %1025 = vst [vmem:[#allocation2 + $0x1c8] sm:$0xf] %v1011
      %1026 = vst [vmem:[#allocation2 + $0x1d0] sm:$0xf] %v1012
      %1027 = vst [vmem:[#allocation2 + $0x1d8] sm:$0xf] %v1013
      %1028 = vst [vmem:[#allocation2 + $0x1e0] sm:$0xf] %v1014
      %1029 = vst [vmem:[#allocation2 + $0x1e8] sm:$0xf] %v1015
      %1030 = vst [vmem:[#allocation2 + $0x1f0] sm:$0xf] %v1016
      %v1031 = vld [vmem:[%s200] sm:$0xff]
      %v1032 = vld [vmem:[%s200 + $0x8] sm:$0xff]
      %v1033 = vld [vmem:[%s200 + $0x10] sm:$0xff]
      %v1034 = vld [vmem:[%s200 + $0x18] sm:$0xff]
      %v1039 = vcombine.low %v1031, %v1031
      %v1040 = vcombine.low %v1032, %v1032
      %v1041 = vcombine.low %v1033, %v1033
      %v1042 = vcombine.low %v1034, %v1034
      %1043 = vrot.lane.b32.xlu0 %v1039, 6
      %v1044 = vpop.permute.xlu0 %1043
      %1045 = vrot.lane.b32.xlu0 %v1031, 6
      %v1046 = vpop.permute.xlu0 %1045
      %1047 = vrot.lane.b32.xlu0 %v1040, 6
      %v1048 = vpop.permute.xlu0 %1047
      %1049 = vrot.lane.b32.xlu0 %v1032, 6
      %v1050 = vpop.permute.xlu0 %1049
      %1051 = vrot.lane.b32.xlu0 %v1041, 6
      %v1052 = vpop.permute.xlu0 %1051
      %1053 = vrot.lane.b32.xlu0 %v1033, 6
      %v1054 = vpop.permute.xlu0 %1053
      %1055 = vrot.lane.b32.xlu0 %v1042, 6
      %v1056 = vpop.permute.xlu0 %1055
      %1057 = vrot.lane.b32.xlu0 %v1034, 6
      %v1058 = vpop.permute.xlu0 %1057
      %vm1059 = vcmask 48128
      %v1060 = vsel %vm1059, %v1044, %v1046
      %v1061 = vsel %vm1059, %v1046, %v1048
      %v1062 = vsel %vm1059, %v1048, %v1050
      %v1063 = vsel %vm1059, %v1050, %v1052
      %v1064 = vsel %vm1059, %v1052, %v1054
      %v1065 = vsel %vm1059, %v1054, %v1056
      %v1066 = vsel %vm1059, %v1056, %v1058
      %1074 = vst [vmem:[#allocation2 + $0x1c0] sm:$0xf0] %v1060
      %1075 = vst [vmem:[#allocation2 + $0x1c8] sm:$0xf0] %v1061
      %1076 = vst [vmem:[#allocation2 + $0x1d0] sm:$0xf0] %v1062
      %1077 = vst [vmem:[#allocation2 + $0x1d8] sm:$0xf0] %v1063
      %1078 = vst [vmem:[#allocation2 + $0x1e0] sm:$0xf0] %v1064
      %1079 = vst [vmem:[#allocation2 + $0x1e8] sm:$0xf0] %v1065
      %1080 = vst [vmem:[#allocation2 + $0x1f0] sm:$0xf0] %v1066
      %v1081 = vld [vmem:[%s200 + $0x4] sm:$0xff]
      %v1082 = vld [vmem:[%s200 + $0xc] sm:$0xff]
      %v1083 = vld [vmem:[%s200 + $0x14] sm:$0xff]
      %v1084 = vld [vmem:[%s200 + $0x1c] sm:$0xff]
      %v1089 = vcombine.high %v1081, %v1081
      %v1090 = vcombine.high %v1082, %v1082
      %v1091 = vcombine.high %v1083, %v1083
      %v1092 = vcombine.high %v1084, %v1084
      %1093 = vrot.lane.b32.xlu0 %v1081, 56
      %v1094 = vpop.permute.xlu0 %1093
      %1095 = vrot.lane.b32.xlu0 %v1089, 56
      %v1096 = vpop.permute.xlu0 %1095
      %1097 = vrot.lane.b32.xlu0 %v1082, 56
      %v1098 = vpop.permute.xlu0 %1097
      %1099 = vrot.lane.b32.xlu0 %v1090, 56
      %v1100 = vpop.permute.xlu0 %1099
      %1101 = vrot.lane.b32.xlu0 %v1083, 56
      %v1102 = vpop.permute.xlu0 %1101
      %1103 = vrot.lane.b32.xlu0 %v1091, 56
      %v1104 = vpop.permute.xlu0 %1103
      %1105 = vrot.lane.b32.xlu0 %v1084, 56
      %v1106 = vpop.permute.xlu0 %1105
      %1107 = vrot.lane.b32.xlu0 %v1092, 56
      %v1108 = vpop.permute.xlu0 %1107
      %vm1109 = vcmask 457728
      %v1110 = vsel %vm1109, %v1094, %v1096
      %v1111 = vsel %vm1109, %v1096, %v1098
      %v1112 = vsel %vm1109, %v1098, %v1100
      %v1113 = vsel %vm1109, %v1100, %v1102
      %v1114 = vsel %vm1109, %v1102, %v1104
      %v1115 = vsel %vm1109, %v1104, %v1106
      %v1116 = vsel %vm1109, %v1106, %v1108
      %1124 = vst [vmem:[#allocation2 + $0x1f8] sm:$0xf] %v1110
      %1125 = vst [vmem:[#allocation2 + $0x200] sm:$0xf] %v1111
      %1126 = vst [vmem:[#allocation2 + $0x208] sm:$0xf] %v1112
      %1127 = vst [vmem:[#allocation2 + $0x210] sm:$0xf] %v1113
      %1128 = vst [vmem:[#allocation2 + $0x218] sm:$0xf] %v1114
      %1129 = vst [vmem:[#allocation2 + $0x220] sm:$0xf] %v1115
      %1130 = vst [vmem:[#allocation2 + $0x228] sm:$0xf] %v1116
      %v1131 = vld [vmem:[%s200 + $0x4] sm:$0xff]
      %v1132 = vld [vmem:[%s200 + $0xc] sm:$0xff]
      %v1133 = vld [vmem:[%s200 + $0x14] sm:$0xff]
      %v1134 = vld [vmem:[%s200 + $0x1c] sm:$0xff]
      %v1139 = vcombine.low %v1131, %v1131
      %v1140 = vcombine.low %v1132, %v1132
      %v1141 = vcombine.low %v1133, %v1133
      %v1142 = vcombine.low %v1134, %v1134
      %1143 = vrot.lane.b32.xlu0 %v1139, 55
      %v1144 = vpop.permute.xlu0 %1143
      %1145 = vrot.lane.b32.xlu0 %v1131, 55
      %v1146 = vpop.permute.xlu0 %1145
      %1147 = vrot.lane.b32.xlu0 %v1140, 55
      %v1148 = vpop.permute.xlu0 %1147
      %1149 = vrot.lane.b32.xlu0 %v1132, 55
      %v1150 = vpop.permute.xlu0 %1149
      %1151 = vrot.lane.b32.xlu0 %v1141, 55
      %v1152 = vpop.permute.xlu0 %1151
      %1153 = vrot.lane.b32.xlu0 %v1133, 55
      %v1154 = vpop.permute.xlu0 %1153
      %1155 = vrot.lane.b32.xlu0 %v1142, 55
      %v1156 = vpop.permute.xlu0 %1155
      %1157 = vrot.lane.b32.xlu0 %v1134, 55
      %v1158 = vpop.permute.xlu0 %1157
      %vm1159 = vcmask 449536
      %v1160 = vsel %vm1159, %v1144, %v1146
      %v1161 = vsel %vm1159, %v1146, %v1148
      %v1162 = vsel %vm1159, %v1148, %v1150
      %v1163 = vsel %vm1159, %v1150, %v1152
      %v1164 = vsel %vm1159, %v1152, %v1154
      %v1165 = vsel %vm1159, %v1154, %v1156
      %v1166 = vsel %vm1159, %v1156, %v1158
      %1174 = vst [vmem:[#allocation2 + $0x1f8] sm:$0xf0] %v1160
      %1175 = vst [vmem:[#allocation2 + $0x200] sm:$0xf0] %v1161
      %1176 = vst [vmem:[#allocation2 + $0x208] sm:$0xf0] %v1162
      %1177 = vst [vmem:[#allocation2 + $0x210] sm:$0xf0] %v1163
      %1178 = vst [vmem:[#allocation2 + $0x218] sm:$0xf0] %v1164
      %1179 = vst [vmem:[#allocation2 + $0x220] sm:$0xf0] %v1165
      %1180 = vst [vmem:[#allocation2 + $0x228] sm:$0xf0] %v1166
      %v1181 = vld [vmem:[%s200 + $0x4] sm:$0xff]
      %v1182 = vld [vmem:[%s200 + $0xc] sm:$0xff]
      %v1183 = vld [vmem:[%s200 + $0x14] sm:$0xff]
      %v1184 = vld [vmem:[%s200 + $0x1c] sm:$0xff]
      %v1189 = vcombine.high %v1181, %v1181
      %v1190 = vcombine.high %v1182, %v1182
      %v1191 = vcombine.high %v1183, %v1183
      %v1192 = vcombine.high %v1184, %v1184
      %1193 = vrot.lane.b32.xlu0 %v1181, 54
      %v1194 = vpop.permute.xlu0 %1193
      %1195 = vrot.lane.b32.xlu0 %v1189, 54
      %v1196 = vpop.permute.xlu0 %1195
      %1197 = vrot.lane.b32.xlu0 %v1182, 54
      %v1198 = vpop.permute.xlu0 %1197
      %1199 = vrot.lane.b32.xlu0 %v1190, 54
      %v1200 = vpop.permute.xlu0 %1199
      %1201 = vrot.lane.b32.xlu0 %v1183, 54
      %v1202 = vpop.permute.xlu0 %1201
      %1203 = vrot.lane.b32.xlu0 %v1191, 54
      %v1204 = vpop.permute.xlu0 %1203
      %1205 = vrot.lane.b32.xlu0 %v1184, 54
      %v1206 = vpop.permute.xlu0 %1205
      %1207 = vrot.lane.b32.xlu0 %v1192, 54
      %v1208 = vpop.permute.xlu0 %1207
      %vm1209 = vcmask 441344
      %v1210 = vsel %vm1209, %v1194, %v1196
      %v1211 = vsel %vm1209, %v1196, %v1198
      %v1212 = vsel %vm1209, %v1198, %v1200
      %v1213 = vsel %vm1209, %v1200, %v1202
      %v1214 = vsel %vm1209, %v1202, %v1204
      %v1215 = vsel %vm1209, %v1204, %v1206
      %v1216 = vsel %vm1209, %v1206, %v1208
      %1224 = vst [vmem:[#allocation2 + $0x230] sm:$0xf] %v1210
      %1225 = vst [vmem:[#allocation2 + $0x238] sm:$0xf] %v1211
      %1226 = vst [vmem:[#allocation2 + $0x240] sm:$0xf] %v1212
      %1227 = vst [vmem:[#allocation2 + $0x248] sm:$0xf] %v1213
      %1228 = vst [vmem:[#allocation2 + $0x250] sm:$0xf] %v1214
      %1229 = vst [vmem:[#allocation2 + $0x258] sm:$0xf] %v1215
      %1230 = vst [vmem:[#allocation2 + $0x260] sm:$0xf] %v1216
      %v1231 = vld [vmem:[%s200 + $0x4] sm:$0xff]
      %v1232 = vld [vmem:[%s200 + $0xc] sm:$0xff]
      %v1233 = vld [vmem:[%s200 + $0x14] sm:$0xff]
      %v1234 = vld [vmem:[%s200 + $0x1c] sm:$0xff]
      %v1239 = vcombine.low %v1231, %v1231
      %v1240 = vcombine.low %v1232, %v1232
      %v1241 = vcombine.low %v1233, %v1233
      %v1242 = vcombine.low %v1234, %v1234
      %1243 = vrot.lane.b32.xlu0 %v1239, 46
      %v1244 = vpop.permute.xlu0 %1243
      %1245 = vrot.lane.b32.xlu0 %v1231, 46
      %v1246 = vpop.permute.xlu0 %1245
      %1247 = vrot.lane.b32.xlu0 %v1240, 46
      %v1248 = vpop.permute.xlu0 %1247
      %1249 = vrot.lane.b32.xlu0 %v1232, 46
      %v1250 = vpop.permute.xlu0 %1249
      %1251 = vrot.lane.b32.xlu0 %v1241, 46
      %v1252 = vpop.permute.xlu0 %1251
      %1253 = vrot.lane.b32.xlu0 %v1233, 46
      %v1254 = vpop.permute.xlu0 %1253
      %1255 = vrot.lane.b32.xlu0 %v1242, 46
      %v1256 = vpop.permute.xlu0 %1255
      %1257 = vrot.lane.b32.xlu0 %v1234, 46
      %v1258 = vpop.permute.xlu0 %1257
      %vm1259 = vcmask 375808
      %v1260 = vsel %vm1259, %v1244, %v1246
      %v1261 = vsel %vm1259, %v1246, %v1248
      %v1262 = vsel %vm1259, %v1248, %v1250
      %v1263 = vsel %vm1259, %v1250, %v1252
      %v1264 = vsel %vm1259, %v1252, %v1254
      %v1265 = vsel %vm1259, %v1254, %v1256
      %v1266 = vsel %vm1259, %v1256, %v1258
      %1274 = vst [vmem:[#allocation2 + $0x230] sm:$0xf0] %v1260
      %1275 = vst [vmem:[#allocation2 + $0x238] sm:$0xf0] %v1261
      %1276 = vst [vmem:[#allocation2 + $0x240] sm:$0xf0] %v1262
      %1277 = vst [vmem:[#allocation2 + $0x248] sm:$0xf0] %v1263
      %1278 = vst [vmem:[#allocation2 + $0x250] sm:$0xf0] %v1264
      %1279 = vst [vmem:[#allocation2 + $0x258] sm:$0xf0] %v1265
      %1280 = vst [vmem:[#allocation2 + $0x260] sm:$0xf0] %v1266
      %v1281 = vld [vmem:[%s200 + $0x4] sm:$0xff]
      %v1282 = vld [vmem:[%s200 + $0xc] sm:$0xff]
      %v1283 = vld [vmem:[%s200 + $0x14] sm:$0xff]
      %v1284 = vld [vmem:[%s200 + $0x1c] sm:$0xff]
      %v1289 = vcombine.high %v1281, %v1281
      %v1290 = vcombine.high %v1282, %v1282
      %v1291 = vcombine.high %v1283, %v1283
      %v1292 = vcombine.high %v1284, %v1284
      %1293 = vrot.lane.b32.xlu0 %v1281, 45
      %v1294 = vpop.permute.xlu0 %1293
      %1295 = vrot.lane.b32.xlu0 %v1289, 45
      %v1296 = vpop.permute.xlu0 %1295
      %1297 = vrot.lane.b32.xlu0 %v1282, 45
      %v1298 = vpop.permute.xlu0 %1297
      %1299 = vrot.lane.b32.xlu0 %v1290, 45
      %v1300 = vpop.permute.xlu0 %1299
      %1301 = vrot.lane.b32.xlu0 %v1283, 45
      %v1302 = vpop.permute.xlu0 %1301
      %1303 = vrot.lane.b32.xlu0 %v1291, 45
      %v1304 = vpop.permute.xlu0 %1303
      %1305 = vrot.lane.b32.xlu0 %v1284, 45
      %v1306 = vpop.permute.xlu0 %1305
      %1307 = vrot.lane.b32.xlu0 %v1292, 45
      %v1308 = vpop.permute.xlu0 %1307
      %vm1309 = vcmask 367616
      %v1310 = vsel %vm1309, %v1294, %v1296
      %v1311 = vsel %vm1309, %v1296, %v1298
      %v1312 = vsel %vm1309, %v1298, %v1300
      %v1313 = vsel %vm1309, %v1300, %v1302
      %v1314 = vsel %vm1309, %v1302, %v1304
      %v1315 = vsel %vm1309, %v1304, %v1306
      %v1316 = vsel %vm1309, %v1306, %v1308
      %1324 = vst [vmem:[#allocation2 + $0x268] sm:$0xf] %v1310
      %1325 = vst [vmem:[#allocation2 + $0x270] sm:$0xf] %v1311
      %1326 = vst [vmem:[#allocation2 + $0x278] sm:$0xf] %v1312
      %1327 = vst [vmem:[#allocation2 + $0x280] sm:$0xf] %v1313
      %1328 = vst [vmem:[#allocation2 + $0x288] sm:$0xf] %v1314
      %1329 = vst [vmem:[#allocation2 + $0x290] sm:$0xf] %v1315
      %1330 = vst [vmem:[#allocation2 + $0x298] sm:$0xf] %v1316
      %v1331 = vld [vmem:[%s200 + $0x4] sm:$0xff]
      %v1332 = vld [vmem:[%s200 + $0xc] sm:$0xff]
      %v1333 = vld [vmem:[%s200 + $0x14] sm:$0xff]
      %v1334 = vld [vmem:[%s200 + $0x1c] sm:$0xff]
      %v1339 = vcombine.low %v1331, %v1331
      %v1340 = vcombine.low %v1332, %v1332
      %v1341 = vcombine.low %v1333, %v1333
      %v1342 = vcombine.low %v1334, %v1334
      %1343 = vrot.lane.b32.xlu0 %v1339, 44
      %v1344 = vpop.permute.xlu0 %1343
      %1345 = vrot.lane.b32.xlu0 %v1331, 44
      %v1346 = vpop.permute.xlu0 %1345
      %1347 = vrot.lane.b32.xlu0 %v1340, 44
      %v1348 = vpop.permute.xlu0 %1347
      %1349 = vrot.lane.b32.xlu0 %v1332, 44
      %v1350 = vpop.permute.xlu0 %1349
      %1351 = vrot.lane.b32.xlu0 %v1341, 44
      %v1352 = vpop.permute.xlu0 %1351
      %1353 = vrot.lane.b32.xlu0 %v1333, 44
      %v1354 = vpop.permute.xlu0 %1353
      %1355 = vrot.lane.b32.xlu0 %v1342, 44
      %v1356 = vpop.permute.xlu0 %1355
      %1357 = vrot.lane.b32.xlu0 %v1334, 44
      %v1358 = vpop.permute.xlu0 %1357
      %vm1359 = vcmask 359424
      %v1360 = vsel %vm1359, %v1344, %v1346
      %v1361 = vsel %vm1359, %v1346, %v1348
      %v1362 = vsel %vm1359, %v1348, %v1350
      %v1363 = vsel %vm1359, %v1350, %v1352
      %v1364 = vsel %vm1359, %v1352, %v1354
      %v1365 = vsel %vm1359, %v1354, %v1356
      %v1366 = vsel %vm1359, %v1356, %v1358
      %1374 = vst [vmem:[#allocation2 + $0x268] sm:$0xf0] %v1360
      %1375 = vst [vmem:[#allocation2 + $0x270] sm:$0xf0] %v1361
      %1376 = vst [vmem:[#allocation2 + $0x278] sm:$0xf0] %v1362
      %1377 = vst [vmem:[#allocation2 + $0x280] sm:$0xf0] %v1363
      %1378 = vst [vmem:[#allocation2 + $0x288] sm:$0xf0] %v1364
      %1379 = vst [vmem:[#allocation2 + $0x290] sm:$0xf0] %v1365
      %1380 = vst [vmem:[#allocation2 + $0x298] sm:$0xf0] %v1366
      %v1381 = vld [vmem:[%s200 + $0x4] sm:$0xff]
      %v1382 = vld [vmem:[%s200 + $0xc] sm:$0xff]
      %v1383 = vld [vmem:[%s200 + $0x14] sm:$0xff]
      %v1384 = vld [vmem:[%s200 + $0x1c] sm:$0xff]
      %v1389 = vcombine.high %v1381, %v1381
      %v1390 = vcombine.high %v1382, %v1382
      %v1391 = vcombine.high %v1383, %v1383
      %v1392 = vcombine.high %v1384, %v1384
      %1393 = vrot.lane.b32.xlu0 %v1381, 36
      %v1394 = vpop.permute.xlu0 %1393
      %1395 = vrot.lane.b32.xlu0 %v1389, 36
      %v1396 = vpop.permute.xlu0 %1395
      %1397 = vrot.lane.b32.xlu0 %v1382, 36
      %v1398 = vpop.permute.xlu0 %1397
      %1399 = vrot.lane.b32.xlu0 %v1390, 36
      %v1400 = vpop.permute.xlu0 %1399
      %1401 = vrot.lane.b32.xlu0 %v1383, 36
      %v1402 = vpop.permute.xlu0 %1401
      %1403 = vrot.lane.b32.xlu0 %v1391, 36
      %v1404 = vpop.permute.xlu0 %1403
      %1405 = vrot.lane.b32.xlu0 %v1384, 36
      %v1406 = vpop.permute.xlu0 %1405
      %1407 = vrot.lane.b32.xlu0 %v1392, 36
      %v1408 = vpop.permute.xlu0 %1407
      %vm1409 = vcmask 293888
      %v1410 = vsel %vm1409, %v1394, %v1396
      %v1411 = vsel %vm1409, %v1396, %v1398
      %v1412 = vsel %vm1409, %v1398, %v1400
      %v1413 = vsel %vm1409, %v1400, %v1402
      %v1414 = vsel %vm1409, %v1402, %v1404
      %v1415 = vsel %vm1409, %v1404, %v1406
      %v1416 = vsel %vm1409, %v1406, %v1408
      %1424 = vst [vmem:[#allocation2 + $0x2a0] sm:$0xf] %v1410
      %1425 = vst [vmem:[#allocation2 + $0x2a8] sm:$0xf] %v1411
      %1426 = vst [vmem:[#allocation2 + $0x2b0] sm:$0xf] %v1412
      %1427 = vst [vmem:[#allocation2 + $0x2b8] sm:$0xf] %v1413
      %1428 = vst [vmem:[#allocation2 + $0x2c0] sm:$0xf] %v1414
      %1429 = vst [vmem:[#allocation2 + $0x2c8] sm:$0xf] %v1415
      %1430 = vst [vmem:[#allocation2 + $0x2d0] sm:$0xf] %v1416
      %v1431 = vld [vmem:[%s200 + $0x4] sm:$0xff]
      %v1432 = vld [vmem:[%s200 + $0xc] sm:$0xff]
      %v1433 = vld [vmem:[%s200 + $0x14] sm:$0xff]
      %v1434 = vld [vmem:[%s200 + $0x1c] sm:$0xff]
      %v1439 = vcombine.low %v1431, %v1431
      %v1440 = vcombine.low %v1432, %v1432
      %v1441 = vcombine.low %v1433, %v1433
      %v1442 = vcombine.low %v1434, %v1434
      %1443 = vrot.lane.b32.xlu0 %v1439, 35
      %v1444 = vpop.permute.xlu0 %1443
      %1445 = vrot.lane.b32.xlu0 %v1431, 35
      %v1446 = vpop.permute.xlu0 %1445
      %1447 = vrot.lane.b32.xlu0 %v1440, 35
      %v1448 = vpop.permute.xlu0 %1447
      %1449 = vrot.lane.b32.xlu0 %v1432, 35
      %v1450 = vpop.permute.xlu0 %1449
      %1451 = vrot.lane.b32.xlu0 %v1441, 35
      %v1452 = vpop.permute.xlu0 %1451
      %1453 = vrot.lane.b32.xlu0 %v1433, 35
      %v1454 = vpop.permute.xlu0 %1453
      %1455 = vrot.lane.b32.xlu0 %v1442, 35
      %v1456 = vpop.permute.xlu0 %1455
      %1457 = vrot.lane.b32.xlu0 %v1434, 35
      %v1458 = vpop.permute.xlu0 %1457
      %vm1459 = vcmask 285696
      %v1460 = vsel %vm1459, %v1444, %v1446
      %v1461 = vsel %vm1459, %v1446, %v1448
      %v1462 = vsel %vm1459, %v1448, %v1450
      %v1463 = vsel %vm1459, %v1450, %v1452
      %v1464 = vsel %vm1459, %v1452, %v1454
      %v1465 = vsel %vm1459, %v1454, %v1456
      %v1466 = vsel %vm1459, %v1456, %v1458
      %1474 = vst [vmem:[#allocation2 + $0x2a0] sm:$0xf0] %v1460
      %1475 = vst [vmem:[#allocation2 + $0x2a8] sm:$0xf0] %v1461
      %1476 = vst [vmem:[#allocation2 + $0x2b0] sm:$0xf0] %v1462
      %1477 = vst [vmem:[#allocation2 + $0x2b8] sm:$0xf0] %v1463
      %1478 = vst [vmem:[#allocation2 + $0x2c0] sm:$0xf0] %v1464
      %1479 = vst [vmem:[#allocation2 + $0x2c8] sm:$0xf0] %v1465
      %1480 = vst [vmem:[#allocation2 + $0x2d0] sm:$0xf0] %v1466
      %v1481 = vld [vmem:[%s200 + $0x4] sm:$0xff]
      %v1482 = vld [vmem:[%s200 + $0xc] sm:$0xff]
      %v1483 = vld [vmem:[%s200 + $0x14] sm:$0xff]
      %v1484 = vld [vmem:[%s200 + $0x1c] sm:$0xff]
      %v1489 = vcombine.high %v1481, %v1481
      %v1490 = vcombine.high %v1482, %v1482
      %v1491 = vcombine.high %v1483, %v1483
      %v1492 = vcombine.high %v1484, %v1484
      %1493 = vrot.lane.b32.xlu0 %v1481, 34
      %v1494 = vpop.permute.xlu0 %1493
      %1495 = vrot.lane.b32.xlu0 %v1489, 34
      %v1496 = vpop.permute.xlu0 %1495
      %1497 = vrot.lane.b32.xlu0 %v1482, 34
      %v1498 = vpop.permute.xlu0 %1497
      %1499 = vrot.lane.b32.xlu0 %v1490, 34
      %v1500 = vpop.permute.xlu0 %1499
      %1501 = vrot.lane.b32.xlu0 %v1483, 34
      %v1502 = vpop.permute.xlu0 %1501
      %1503 = vrot.lane.b32.xlu0 %v1491, 34
      %v1504 = vpop.permute.xlu0 %1503
      %1505 = vrot.lane.b32.xlu0 %v1484, 34
      %v1506 = vpop.permute.xlu0 %1505
      %1507 = vrot.lane.b32.xlu0 %v1492, 34
      %v1508 = vpop.permute.xlu0 %1507
      %vm1509 = vcmask 277504
      %v1510 = vsel %vm1509, %v1494, %v1496
      %v1511 = vsel %vm1509, %v1496, %v1498
      %v1512 = vsel %vm1509, %v1498, %v1500
      %v1513 = vsel %vm1509, %v1500, %v1502
      %v1514 = vsel %vm1509, %v1502, %v1504
      %v1515 = vsel %vm1509, %v1504, %v1506
      %v1516 = vsel %vm1509, %v1506, %v1508
      %1524 = vst [vmem:[#allocation2 + $0x2d8] sm:$0xf] %v1510
      %1525 = vst [vmem:[#allocation2 + $0x2e0] sm:$0xf] %v1511
      %1526 = vst [vmem:[#allocation2 + $0x2e8] sm:$0xf] %v1512
      %1527 = vst [vmem:[#allocation2 + $0x2f0] sm:$0xf] %v1513
      %1528 = vst [vmem:[#allocation2 + $0x2f8] sm:$0xf] %v1514
      %1529 = vst [vmem:[#allocation2 + $0x300] sm:$0xf] %v1515
      %1530 = vst [vmem:[#allocation2 + $0x308] sm:$0xf] %v1516
      %v1531 = vld [vmem:[#allocation2] sm:$0xff]
      %v1532 = vld [vmem:[#allocation2 + $0x8] sm:$0xff]
      %v1533 = vld [vmem:[#allocation2 + $0x10] sm:$0xff]
      %v1534 = vld [vmem:[#allocation2 + $0x18] sm:$0xff]
      %v1535 = vld [vmem:[#allocation2 + $0x20] sm:$0xff]
      %v1536 = vld [vmem:[#allocation2 + $0x28] sm:$0xff]
      %v1537 = vld [vmem:[#allocation2 + $0x30] sm:$0xff]
      %v1538 = vld [vmem:[#allocation2 + $0x38] sm:$0xff]
      %v1539 = vld [vmem:[#allocation2 + $0x40] sm:$0xff]
      %v1540 = vld [vmem:[#allocation2 + $0x48] sm:$0xff]
      %v1541 = vld [vmem:[#allocation2 + $0x50] sm:$0xff]
      %v1542 = vld [vmem:[#allocation2 + $0x58] sm:$0xff]
      %v1543 = vld [vmem:[#allocation2 + $0x60] sm:$0xff]
      %v1544 = vld [vmem:[#allocation2 + $0x68] sm:$0xff]
      %v1545 = vld [vmem:[#allocation2 + $0x70] sm:$0xff]
      %v1546 = vld [vmem:[#allocation2 + $0x78] sm:$0xff]
      %v1547 = vld [vmem:[#allocation2 + $0x80] sm:$0xff]
      %v1548 = vld [vmem:[#allocation2 + $0x88] sm:$0xff]
      %v1549 = vld [vmem:[#allocation2 + $0x90] sm:$0xff]
      %v1550 = vld [vmem:[#allocation2 + $0x98] sm:$0xff]
      %v1551 = vld [vmem:[#allocation2 + $0xa0] sm:$0xff]
      %v1552 = vld [vmem:[#allocation2 + $0xa8] sm:$0xff]
      %v1553 = vld [vmem:[#allocation2 + $0xb0] sm:$0xff]
      %v1554 = vld [vmem:[#allocation2 + $0xb8] sm:$0xff]
      %v1555 = vld [vmem:[#allocation2 + $0xc0] sm:$0xff]
      %v1556 = vld [vmem:[#allocation2 + $0xc8] sm:$0xff]
      %v1557 = vld [vmem:[#allocation2 + $0xd0] sm:$0xff]
      %v1558 = vld [vmem:[#allocation2 + $0xd8] sm:$0xff]
      %v1559 = vld [vmem:[#allocation2 + $0xe0] sm:$0xff]
      %v1560 = vld [vmem:[#allocation2 + $0xe8] sm:$0xff]
      %v1561 = vld [vmem:[#allocation2 + $0xf0] sm:$0xff]
      %v1562 = vld [vmem:[#allocation2 + $0xf8] sm:$0xff]
      %v1563 = vld [vmem:[#allocation2 + $0x100] sm:$0xff]
      %v1564 = vld [vmem:[#allocation2 + $0x108] sm:$0xff]
      %v1565 = vld [vmem:[#allocation2 + $0x110] sm:$0xff]
      %v1566 = vld [vmem:[#allocation2 + $0x118] sm:$0xff]
      %v1567 = vld [vmem:[#allocation2 + $0x120] sm:$0xff]
      %v1568 = vld [vmem:[#allocation2 + $0x128] sm:$0xff]
      %v1569 = vld [vmem:[#allocation2 + $0x130] sm:$0xff]
      %v1570 = vld [vmem:[#allocation2 + $0x138] sm:$0xff]
      %v1571 = vld [vmem:[#allocation2 + $0x140] sm:$0xff]
      %v1572 = vld [vmem:[#allocation2 + $0x148] sm:$0xff]
      %v1573 = vld [vmem:[#allocation2 + $0x150] sm:$0xff]
      %v1574 = vld [vmem:[#allocation2 + $0x158] sm:$0xff]
      %v1575 = vld [vmem:[#allocation2 + $0x160] sm:$0xff]
      %v1576 = vld [vmem:[#allocation2 + $0x168] sm:$0xff]
      %v1577 = vld [vmem:[#allocation2 + $0x170] sm:$0xff]
      %v1578 = vld [vmem:[#allocation2 + $0x178] sm:$0xff]
      %v1579 = vld [vmem:[#allocation2 + $0x180] sm:$0xff]
      %v1580 = vld [vmem:[#allocation2 + $0x188] sm:$0xff]
      %v1581 = vld [vmem:[#allocation2 + $0x190] sm:$0xff]
      %v1582 = vld [vmem:[#allocation2 + $0x198] sm:$0xff]
      %v1583 = vld [vmem:[#allocation2 + $0x1a0] sm:$0xff]
      %v1584 = vld [vmem:[#allocation2 + $0x1a8] sm:$0xff]
      %v1585 = vld [vmem:[#allocation2 + $0x1b0] sm:$0xff]
      %v1586 = vld [vmem:[#allocation2 + $0x1b8] sm:$0xff]
      %v1587 = vld [vmem:[#allocation2 + $0x1c0] sm:$0xff]
      %v1588 = vld [vmem:[#allocation2 + $0x1c8] sm:$0xff]
      %v1589 = vld [vmem:[#allocation2 + $0x1d0] sm:$0xff]
      %v1590 = vld [vmem:[#allocation2 + $0x1d8] sm:$0xff]
      %v1591 = vld [vmem:[#allocation2 + $0x1e0] sm:$0xff]
      %v1592 = vld [vmem:[#allocation2 + $0x1e8] sm:$0xff]
      %v1593 = vld [vmem:[#allocation2 + $0x1f0] sm:$0xff]
      %v1594 = vld [vmem:[#allocation2 + $0x1f8] sm:$0xff]
      %v1595 = vld [vmem:[#allocation2 + $0x200] sm:$0xff]
      %v1596 = vld [vmem:[#allocation2 + $0x208] sm:$0xff]
      %v1597 = vld [vmem:[#allocation2 + $0x210] sm:$0xff]
      %v1598 = vld [vmem:[#allocation2 + $0x218] sm:$0xff]
      %v1599 = vld [vmem:[#allocation2 + $0x220] sm:$0xff]
      %v1600 = vld [vmem:[#allocation2 + $0x228] sm:$0xff]
      %v1601 = vld [vmem:[#allocation2 + $0x230] sm:$0xff]
      %v1602 = vld [vmem:[#allocation2 + $0x238] sm:$0xff]
      %v1603 = vld [vmem:[#allocation2 + $0x240] sm:$0xff]
      %v1604 = vld [vmem:[#allocation2 + $0x248] sm:$0xff]
      %v1605 = vld [vmem:[#allocation2 + $0x250] sm:$0xff]
      %v1606 = vld [vmem:[#allocation2 + $0x258] sm:$0xff]
      %v1607 = vld [vmem:[#allocation2 + $0x260] sm:$0xff]
      %v1608 = vld [vmem:[#allocation2 + $0x268] sm:$0xff]
      %v1609 = vld [vmem:[#allocation2 + $0x270] sm:$0xff]
      %v1610 = vld [vmem:[#allocation2 + $0x278] sm:$0xff]
      %v1611 = vld [vmem:[#allocation2 + $0x280] sm:$0xff]
      %v1612 = vld [vmem:[#allocation2 + $0x288] sm:$0xff]
      %v1613 = vld [vmem:[#allocation2 + $0x290] sm:$0xff]
      %v1614 = vld [vmem:[#allocation2 + $0x298] sm:$0xff]
      %v1615 = vld [vmem:[#allocation2 + $0x2a0] sm:$0xff]
      %v1616 = vld [vmem:[#allocation2 + $0x2a8] sm:$0xff]
      %v1617 = vld [vmem:[#allocation2 + $0x2b0] sm:$0xff]
      %v1618 = vld [vmem:[#allocation2 + $0x2b8] sm:$0xff]
      %v1619 = vld [vmem:[#allocation2 + $0x2c0] sm:$0xff]
      %v1620 = vld [vmem:[#allocation2 + $0x2c8] sm:$0xff]
      %v1621 = vld [vmem:[#allocation2 + $0x2d0] sm:$0xff]
      %v1622 = vld [vmem:[#allocation2 + $0x2d8] sm:$0xf]
      %v1623 = vld [vmem:[#allocation2 + $0x2e0] sm:$0xf]
      %v1624 = vld [vmem:[#allocation2 + $0x2e8] sm:$0xf]
      %v1625 = vld [vmem:[#allocation2 + $0x2f0] sm:$0xf]
      %v1626 = vld [vmem:[#allocation2 + $0x2f8] sm:$0xf]
      %v1627 = vld [vmem:[#allocation2 + $0x300] sm:$0xf]
      %v1628 = vld [vmem:[#allocation2 + $0x308] sm:$0xf]
      %v1629 = vld [vmem:[%s1] sm:$0xff]
      %v1630 = vld [vmem:[%s1 + $0x8] sm:$0xff]
      %v1632 = vsel %vm509, %v1629, 0
      %v1635 = vsel %vm509, %v1630, 0
      %vm1637 = vcmask 1043456
      %v1639 = vsel %vm1637, %v1622, 0
      %v1642 = vsel %vm1637, %v1623, 0
      %v1645 = vsel %vm1637, %v1624, 0
      %v1648 = vsel %vm1637, %v1625, 0
      %v1651 = vsel %vm1637, %v1626, 0
      %v1654 = vsel %vm1637, %v1627, 0
      %v1657 = vsel %vm1637, %v1628, 0
      %1659 = vmatprep.subr.mxu0 %v1532
      %1660 = vmatpush1.msra.mxu0 %v1531
      %1661 = vmatprep.subr.mxu0 %v1539
      %1662 = vmatpush1.msra.mxu0 %v1538
      %1663 = vmatprep.subr.mxu0 %v1546
      %1664 = vmatpush1.msra.mxu0 %v1545
      %1665 = vmatprep.subr.mxu0 %v1553
      %1666 = vmatpush1.msra.mxu0 %v1552
      %1667 = vmatprep.subr.mxu0 %v1560
      %1668 = vmatpush1.msra.mxu0 %v1559
      %1669 = vmatprep.subr.mxu0 %v1567
      %1670 = vmatpush1.msra.mxu0 %v1566
      %1671 = vmatprep.subr.mxu0 %v1574
      %1672 = vmatpush1.msra.mxu0 %v1573
      %1673 = vmatprep.subr.mxu0 %v1581
      %1674 = vmatpush1.msra.mxu0 %v1580
      %1675 = vmatprep.subr.mxu0 %v1588
      %1676 = vmatpush1.msra.mxu0 %v1587
      %1677 = vmatprep.subr.mxu0 %v1595
      %1678 = vmatpush1.msra.mxu0 %v1594
      %1679 = vmatprep.subr.mxu0 %v1602
      %1680 = vmatpush1.msra.mxu0 %v1601
      %1681 = vmatprep.subr.mxu0 %v1609
      %1682 = vmatpush1.msra.mxu0 %v1608
      %1683 = vmatprep.subr.mxu0 %v1616
      %1684 = vmatpush1.msra.mxu0 %v1615
      %1685 = vmatprep.subr.mxu0 %v1642
      %1686 = vmatpush1.msra.mxu0 %v1639
      %1687 = vmatprep.subr.mxu0 0.0
      %1688 = vmatpush1.msra.mxu0 0.0
      %1689 = vmatprep.subr.mxu0 0.0
      %1690 = vmatpush1.msra.mxu0 0.0
      %1691 = vmatprep.subr.mxu0 0.0
      %1692 = vmatpush1.msra.mxu0 0.0
      %1693 = vmatprep.subr.mxu0 0.0
      %1694 = vmatpush1.msra.mxu0 0.0
      %1695 = vmatprep.subr.mxu0 0.0
      %1696 = vmatpush1.msra.mxu0 0.0
      %1697 = vmatprep.subr.mxu0 0.0
      %1698 = vmatpush1.msra.mxu0 0.0
      %1699 = vmatprep.subr.mxu0 0.0
      %1700 = vmatpush1.msra.mxu0 0.0
      %1701 = vmatprep.subr.mxu0 0.0
      %1702 = vmatpush1.msra.mxu0 0.0
      %1703 = vmatprep.subr.mxu0 0.0
      %1704 = vmatpush1.msra.mxu0 0.0
      %1705 = vmatprep.subr.mxu0 0.0
      %1706 = vmatpush1.msra.mxu0 0.0
      %1707 = vmatprep.subr.mxu0 0.0
      %1708 = vmatpush1.msra.mxu0 0.0
      %1709 = vmatprep.subr.mxu0 0.0
      %1710 = vmatpush1.msra.mxu0 0.0
      %1711 = vmatprep.subr.mxu0 0.0
      %1712 = vmatpush1.msra.mxu0 0.0
      %1713 = vmatprep.subr.mxu0 0.0
      %1714 = vmatpush1.msra.mxu0 0.0
      %1715 = vmatprep.subr.mxu0 0.0
      %1716 = vmatpush1.msra.mxu0 0.0
      %1717 = vmatprep.subr.mxu0 0.0
      %1718 = vmatpush1.msra.mxu0 0.0
      %1719 = vmatprep.subr.mxu0 0.0
      %1720 = vmatpush1.msra.mxu0 0.0
      %1721 = vmatprep.subr.mxu0 0.0
      %1722 = vmatpush1.msra.mxu0 0.0
      %1723 = vmatprep.mubr.f32.mxu0 0.0
      %1724 = vmatmul.mubr.f32.gmra.mrb[0].mxu0 %v1632
      %v1725 = vpop.f32.mrb[0].mxu0
      %v1726 = vadd.f32 0.0, %v1725
      %v1727 = vpop.f32.mrb[0].mxu0
      %v1728 = vadd.f32 0.0, %v1727
      %1729 = vmatprep.mubr.f32.mxu0 0.0
      %1730 = vmatmul.mubr.f32.gmra.mrb[0].mxu0 %v1635
      %v1731 = vpop.f32.mrb[0].mxu0
      %v1732 = vadd.f32 0.0, %v1731
      %v1733 = vpop.f32.mrb[0].mxu0
      %v1734 = vadd.f32 0.0, %v1733
      %1735 = vdwg.mxu0
      %1736 = vmatprep.subr.mxu0 %v1534
      %1737 = vmatpush1.msra.mxu0 %v1533
      %1738 = vmatprep.subr.mxu0 %v1541
      %1739 = vmatpush1.msra.mxu0 %v1540
      %1740 = vmatprep.subr.mxu0 %v1548
      %1741 = vmatpush1.msra.mxu0 %v1547
      %1742 = vmatprep.subr.mxu0 %v1555
      %1743 = vmatpush1.msra.mxu0 %v1554
      %1744 = vmatprep.subr.mxu0 %v1562
      %1745 = vmatpush1.msra.mxu0 %v1561
      %1746 = vmatprep.subr.mxu0 %v1569
      %1747 = vmatpush1.msra.mxu0 %v1568
      %1748 = vmatprep.subr.mxu0 %v1576
      %1749 = vmatpush1.msra.mxu0 %v1575
      %1750 = vmatprep.subr.mxu0 %v1583
      %1751 = vmatpush1.msra.mxu0 %v1582
      %1752 = vmatprep.subr.mxu0 %v1590
      %1753 = vmatpush1.msra.mxu0 %v1589
      %1754 = vmatprep.subr.mxu0 %v1597
      %1755 = vmatpush1.msra.mxu0 %v1596
      %1756 = vmatprep.subr.mxu0 %v1604
      %1757 = vmatpush1.msra.mxu0 %v1603
      %1758 = vmatprep.subr.mxu0 %v1611
      %1759 = vmatpush1.msra.mxu0 %v1610
      %1760 = vmatprep.subr.mxu0 %v1618
      %1761 = vmatpush1.msra.mxu0 %v1617
      %1762 = vmatprep.subr.mxu0 %v1648
      %1763 = vmatpush1.msra.mxu0 %v1645
      %1764 = vmatprep.subr.mxu0 0.0
      %1765 = vmatpush1.msra.mxu0 0.0
      %1766 = vmatprep.subr.mxu0 0.0
      %1767 = vmatpush1.msra.mxu0 0.0
      %1768 = vmatprep.subr.mxu0 0.0
      %1769 = vmatpush1.msra.mxu0 0.0
      %1770 = vmatprep.subr.mxu0 0.0
      %1771 = vmatpush1.msra.mxu0 0.0
      %1772 = vmatprep.subr.mxu0 0.0
      %1773 = vmatpush1.msra.mxu0 0.0
      %1774 = vmatprep.subr.mxu0 0.0
      %1775 = vmatpush1.msra.mxu0 0.0
      %1776 = vmatprep.subr.mxu0 0.0
      %1777 = vmatpush1.msra.mxu0 0.0
      %1778 = vmatprep.subr.mxu0 0.0
      %1779 = vmatpush1.msra.mxu0 0.0
      %1780 = vmatprep.subr.mxu0 0.0
      %1781 = vmatpush1.msra.mxu0 0.0
      %1782 = vmatprep.subr.mxu0 0.0
      %1783 = vmatpush1.msra.mxu0 0.0
      %1784 = vmatprep.subr.mxu0 0.0
      %1785 = vmatpush1.msra.mxu0 0.0
      %1786 = vmatprep.subr.mxu0 0.0
      %1787 = vmatpush1.msra.mxu0 0.0
      %1788 = vmatprep.subr.mxu0 0.0
      %1789 = vmatpush1.msra.mxu0 0.0
      %1790 = vmatprep.subr.mxu0 0.0
      %1791 = vmatpush1.msra.mxu0 0.0
      %1792 = vmatprep.subr.mxu0 0.0
      %1793 = vmatpush1.msra.mxu0 0.0
      %1794 = vmatprep.subr.mxu0 0.0
      %1795 = vmatpush1.msra.mxu0 0.0
      %1796 = vmatprep.subr.mxu0 0.0
      %1797 = vmatpush1.msra.mxu0 0.0
      %1798 = vmatprep.subr.mxu0 0.0
      %1799 = vmatpush1.msra.mxu0 0.0
      %1800 = vmatprep.mubr.f32.mxu0 0.0
      %1801 = vmatmul.mubr.f32.gmra.mrb[0].mxu0 %v1632
      %v1802 = vpop.f32.mrb[0].mxu0
      %v1803 = vadd.f32 0.0, %v1802
      %v1804 = vpop.f32.mrb[0].mxu0
      %v1805 = vadd.f32 0.0, %v1804
      %1806 = vmatprep.mubr.f32.mxu0 0.0
      %1807 = vmatmul.mubr.f32.gmra.mrb[0].mxu0 %v1635
      %v1808 = vpop.f32.mrb[0].mxu0
      %v1809 = vadd.f32 0.0, %v1808
      %v1810 = vpop.f32.mrb[0].mxu0
      %v1811 = vadd.f32 0.0, %v1810
      %1812 = vdwg.mxu0
      %1813 = vmatprep.subr.mxu0 %v1536
      %1814 = vmatpush1.msra.mxu0 %v1535
      %1815 = vmatprep.subr.mxu0 %v1543
      %1816 = vmatpush1.msra.mxu0 %v1542
      %1817 = vmatprep.subr.mxu0 %v1550
      %1818 = vmatpush1.msra.mxu0 %v1549
      %1819 = vmatprep.subr.mxu0 %v1557
      %1820 = vmatpush1.msra.mxu0 %v1556
      %1821 = vmatprep.subr.mxu0 %v1564
      %1822 = vmatpush1.msra.mxu0 %v1563
      %1823 = vmatprep.subr.mxu0 %v1571
      %1824 = vmatpush1.msra.mxu0 %v1570
      %1825 = vmatprep.subr.mxu0 %v1578
      %1826 = vmatpush1.msra.mxu0 %v1577
      %1827 = vmatprep.subr.mxu0 %v1585
      %1828 = vmatpush1.msra.mxu0 %v1584
      %1829 = vmatprep.subr.mxu0 %v1592
      %1830 = vmatpush1.msra.mxu0 %v1591
      %1831 = vmatprep.subr.mxu0 %v1599
      %1832 = vmatpush1.msra.mxu0 %v1598
      %1833 = vmatprep.subr.mxu0 %v1606
      %1834 = vmatpush1.msra.mxu0 %v1605
      %1835 = vmatprep.subr.mxu0 %v1613
      %1836 = vmatpush1.msra.mxu0 %v1612
      %1837 = vmatprep.subr.mxu0 %v1620
      %1838 = vmatpush1.msra.mxu0 %v1619
      %1839 = vmatprep.subr.mxu0 %v1654
      %1840 = vmatpush1.msra.mxu0 %v1651
      %1841 = vmatprep.subr.mxu0 0.0
      %1842 = vmatpush1.msra.mxu0 0.0
      %1843 = vmatprep.subr.mxu0 0.0
      %1844 = vmatpush1.msra.mxu0 0.0
      %1845 = vmatprep.subr.mxu0 0.0
      %1846 = vmatpush1.msra.mxu0 0.0
      %1847 = vmatprep.subr.mxu0 0.0
      %1848 = vmatpush1.msra.mxu0 0.0
      %1849 = vmatprep.subr.mxu0 0.0
      %1850 = vmatpush1.msra.mxu0 0.0
      %1851 = vmatprep.subr.mxu0 0.0
      %1852 = vmatpush1.msra.mxu0 0.0
      %1853 = vmatprep.subr.mxu0 0.0
      %1854 = vmatpush1.msra.mxu0 0.0
      %1855 = vmatprep.subr.mxu0 0.0
      %1856 = vmatpush1.msra.mxu0 0.0
      %1857 = vmatprep.subr.mxu0 0.0
      %1858 = vmatpush1.msra.mxu0 0.0
      %1859 = vmatprep.subr.mxu0 0.0
      %1860 = vmatpush1.msra.mxu0 0.0
      %1861 = vmatprep.subr.mxu0 0.0
      %1862 = vmatpush1.msra.mxu0 0.0
      %1863 = vmatprep.subr.mxu0 0.0
      %1864 = vmatpush1.msra.mxu0 0.0
      %1865 = vmatprep.subr.mxu0 0.0
      %1866 = vmatpush1.msra.mxu0 0.0
      %1867 = vmatprep.subr.mxu0 0.0
      %1868 = vmatpush1.msra.mxu0 0.0
      %1869 = vmatprep.subr.mxu0 0.0
      %1870 = vmatpush1.msra.mxu0 0.0
      %1871 = vmatprep.subr.mxu0 0.0
      %1872 = vmatpush1.msra.mxu0 0.0
      %1873 = vmatprep.subr.mxu0 0.0
      %1874 = vmatpush1.msra.mxu0 0.0
      %1875 = vmatprep.subr.mxu0 0.0
      %1876 = vmatpush1.msra.mxu0 0.0
      %1877 = vmatprep.mubr.f32.mxu0 0.0
      %1878 = vmatmul.mubr.f32.gmra.mrb[0].mxu0 %v1632
      %v1879 = vpop.f32.mrb[0].mxu0
      %v1880 = vadd.f32 0.0, %v1879
      %v1881 = vpop.f32.mrb[0].mxu0
      %v1882 = vadd.f32 0.0, %v1881
      %1883 = vmatprep.mubr.f32.mxu0 0.0
      %1884 = vmatmul.mubr.f32.gmra.mrb[0].mxu0 %v1635
      %v1885 = vpop.f32.mrb[0].mxu0
      %v1886 = vadd.f32 0.0, %v1885
      %v1887 = vpop.f32.mrb[0].mxu0
      %v1888 = vadd.f32 0.0, %v1887
      %1889 = vdwg.mxu0
      %1890 = vmatprep.subr.mxu0 0.0
      %1891 = vmatpush1.msra.mxu0 %v1537
      %1892 = vmatprep.subr.mxu0 0.0
      %1893 = vmatpush1.msra.mxu0 %v1544
      %1894 = vmatprep.subr.mxu0 0.0
      %1895 = vmatpush1.msra.mxu0 %v1551
      %1896 = vmatprep.subr.mxu0 0.0
      %1897 = vmatpush1.msra.mxu0 %v1558
      %1898 = vmatprep.subr.mxu0 0.0
      %1899 = vmatpush1.msra.mxu0 %v1565
      %1900 = vmatprep.subr.mxu0 0.0
      %1901 = vmatpush1.msra.mxu0 %v1572
      %1902 = vmatprep.subr.mxu0 0.0
      %1903 = vmatpush1.msra.mxu0 %v1579
      %1904 = vmatprep.subr.mxu0 0.0
      %1905 = vmatpush1.msra.mxu0 %v1586
      %1906 = vmatprep.subr.mxu0 0.0
      %1907 = vmatpush1.msra.mxu0 %v1593
      %1908 = vmatprep.subr.mxu0 0.0
      %1909 = vmatpush1.msra.mxu0 %v1600
      %1910 = vmatprep.subr.mxu0 0.0
      %1911 = vmatpush1.msra.mxu0 %v1607
      %1912 = vmatprep.subr.mxu0 0.0
      %1913 = vmatpush1.msra.mxu0 %v1614
      %1914 = vmatprep.subr.mxu0 0.0
      %1915 = vmatpush1.msra.mxu0 %v1621
      %1916 = vmatprep.subr.mxu0 0.0
      %1917 = vmatpush1.msra.mxu0 %v1657
      %1918 = vmatprep.subr.mxu0 0.0
      %1919 = vmatpush1.msra.mxu0 0.0
      %1920 = vmatprep.subr.mxu0 0.0
      %1921 = vmatpush1.msra.mxu0 0.0
      %1922 = vmatprep.subr.mxu0 0.0
      %1923 = vmatpush1.msra.mxu0 0.0
      %1924 = vmatprep.subr.mxu0 0.0
      %1925 = vmatpush1.msra.mxu0 0.0
      %1926 = vmatprep.subr.mxu0 0.0
      %1927 = vmatpush1.msra.mxu0 0.0
      %1928 = vmatprep.subr.mxu0 0.0
      %1929 = vmatpush1.msra.mxu0 0.0
      %1930 = vmatprep.subr.mxu0 0.0
      %1931 = vmatpush1.msra.mxu0 0.0
      %1932 = vmatprep.subr.mxu0 0.0
      %1933 = vmatpush1.msra.mxu0 0.0
      %1934 = vmatprep.subr.mxu0 0.0
      %1935 = vmatpush1.msra.mxu0 0.0
      %1936 = vmatprep.subr.mxu0 0.0
      %1937 = vmatpush1.msra.mxu0 0.0
      %1938 = vmatprep.subr.mxu0 0.0
      %1939 = vmatpush1.msra.mxu0 0.0
      %1940 = vmatprep.subr.mxu0 0.0
      %1941 = vmatpush1.msra.mxu0 0.0
      %1942 = vmatprep.subr.mxu0 0.0
      %1943 = vmatpush1.msra.mxu0 0.0
      %1944 = vmatprep.subr.mxu0 0.0
      %1945 = vmatpush1.msra.mxu0 0.0
      %1946 = vmatprep.subr.mxu0 0.0
      %1947 = vmatpush1.msra.mxu0 0.0
      %1948 = vmatprep.subr.mxu0 0.0
      %1949 = vmatpush1.msra.mxu0 0.0
      %1950 = vmatprep.subr.mxu0 0.0
      %1951 = vmatpush1.msra.mxu0 0.0
      %1952 = vmatprep.subr.mxu0 0.0
      %1953 = vmatpush1.msra.mxu0 0.0
      %1954 = vmatprep.mubr.f32.mxu0 0.0
      %1955 = vmatmul.mubr.f32.gmra.mrb[0].mxu0 %v1632
      %v1956 = vpop.f32.mrb[0].mxu0
      %v1957 = vadd.f32 0.0, %v1956
      %v1958 = vpop.f32.mrb[0].mxu0
      %1959 = vmatprep.mubr.f32.mxu0 0.0
      %1960 = vmatmul.mubr.f32.gmra.mrb[0].mxu0 %v1635
      %v1961 = vpop.f32.mrb[0].mxu0
      %v1962 = vadd.f32 0.0, %v1961
      %v1963 = vpop.f32.mrb[0].mxu0
      %1964 = vdwg.mxu0
      %v1965 = vld [vmem:[%s2] sm:$0xff]
      %v1967 = vlaneseq
      %v1968 = vshrl.u32 %v1967, 7
      %v1969 = vsub.s32 0, %v1968
      %v1970 = vrot.slane %v1965, %v1969
      %v1971 = vlaneseq
      %v1972 = vshrl.u32 %v1971, 7
      %v1973 = vsub.s32 1, %v1972
      %v1974 = vrot.slane %v1965, %v1973
      %v1975 = vlaneseq
      %v1976 = vshrl.u32 %v1975, 7
      %v1977 = vsub.s32 2, %v1976
      %v1978 = vrot.slane %v1965, %v1977
      %v1979 = vlaneseq
      %v1980 = vshrl.u32 %v1979, 7
      %v1981 = vsub.s32 3, %v1980
      %v1982 = vrot.slane %v1965, %v1981
      %v1983 = vlaneseq
      %v1984 = vshrl.u32 %v1983, 7
      %v1985 = vsub.s32 4, %v1984
      %v1986 = vrot.slane %v1965, %v1985
      %v1987 = vlaneseq
      %v1988 = vshrl.u32 %v1987, 7
      %v1989 = vsub.s32 5, %v1988
      %v1990 = vrot.slane %v1965, %v1989
      %v1991 = vlaneseq
      %v1992 = vshrl.u32 %v1991, 7
      %v1993 = vsub.s32 6, %v1992
      %v1994 = vrot.slane %v1965, %v1993
      %v2002 = vmul.f32 %v1726, %v1970
      %v2003 = vmul.f32 %v1728, %v1974
      %v2004 = vmul.f32 %v1803, %v1978
      %v2005 = vmul.f32 %v1805, %v1982
      %v2006 = vmul.f32 %v1880, %v1986
      %v2007 = vmul.f32 %v1882, %v1990
      %v2008 = vmul.f32 %v1957, %v1994
      %v2009 = vadd.f32 %v2002, %v2003
      %v2010 = vadd.f32 %v2009, %v2004
      %v2011 = vadd.f32 %v2010, %v2005
      %v2012 = vadd.f32 %v2011, %v2006
      %v2013 = vadd.f32 %v2012, %v2007
      %v2014 = vadd.f32 %v2013, %v2008
      %2015 = vadd.xlane.f32.xlu0 %v2014
      %v2016 = vpop.xlane.xlu0 %2015
      %v2017 = vmul.f32 %v2016, 0.001953125
      %v2018 = vsub.f32 %v1726, %v2017
      %v2019 = vsub.f32 %v1728, %v2017
      %v2020 = vsub.f32 %v1803, %v2017
      %v2021 = vsub.f32 %v1805, %v2017
      %v2022 = vsub.f32 %v1880, %v2017
      %v2023 = vsub.f32 %v1882, %v2017
      %v2024 = vsub.f32 %v1957, %v2017
      %v2025 = vmul.f32 %v2018, %v2018
      %v2026 = vmul.f32 %v2019, %v2019
      %v2027 = vmul.f32 %v2020, %v2020
      %v2028 = vmul.f32 %v2021, %v2021
      %v2029 = vmul.f32 %v2022, %v2022
      %v2030 = vmul.f32 %v2023, %v2023
      %v2031 = vmul.f32 %v2024, %v2024
      %v2032 = vmul.f32 %v2025, %v1970
      %v2033 = vmul.f32 %v2026, %v1974
      %v2034 = vmul.f32 %v2027, %v1978
      %v2035 = vmul.f32 %v2028, %v1982
      %v2036 = vmul.f32 %v2029, %v1986
      %v2037 = vmul.f32 %v2030, %v1990
      %v2038 = vmul.f32 %v2031, %v1994
      %v2039 = vadd.f32 %v2032, %v2033
      %v2040 = vadd.f32 %v2039, %v2034
      %v2041 = vadd.f32 %v2040, %v2035
      %v2042 = vadd.f32 %v2041, %v2036
      %v2043 = vadd.f32 %v2042, %v2037
      %v2044 = vadd.f32 %v2043, %v2038
      %2045 = vadd.xlane.f32.xlu0 %v2044
      %v2046 = vpop.xlane.xlu0 %2045
      %v2047 = vmul.f32 %v2046, 0.001953125
      %v2048 = vadd.f32 %v2047, 1e-05
      %v2049 = vrsqrt.pop %v2048
      %v2050 = vmul.f32 %v2018, %v2049
      %v2051 = vmul.f32 %v2019, %v2049
      %v2052 = vmul.f32 %v2020, %v2049
      %v2053 = vmul.f32 %v2021, %v2049
      %v2054 = vmul.f32 %v2022, %v2049
      %v2055 = vmul.f32 %v2023, %v2049
      %v2056 = vmul.f32 %v2024, %v2049
      %v2057 = vmul.f32 %v2050, 0.5
      %v2058 = vmul.f32 %v2051, 0.5
      %v2059 = vmul.f32 %v2052, 0.5
      %v2060 = vmul.f32 %v2053, 0.5
      %v2061 = vmul.f32 %v2054, 0.5
      %v2062 = vmul.f32 %v2055, 0.5
      %v2063 = vmul.f32 %v2056, 0.5
      %v2064 = vmul.f32 %v2050, 0.70710677
      %v2065 = vmul.f32 %v2051, 0.70710677
      %v2066 = vmul.f32 %v2052, 0.70710677
      %v2067 = vmul.f32 %v2053, 0.70710677
      %v2068 = vmul.f32 %v2054, 0.70710677
      %v2069 = vmul.f32 %v2055, 0.70710677
      %v2070 = vmul.f32 %v2056, 0.70710677
      %vm2071 = vcmp.ge.f32.partialorder %v2064, 0.0
      %vm2072 = vcmp.ge.f32.partialorder %v2065, 0.0
      %vm2073 = vcmp.ge.f32.partialorder %v2066, 0.0
      %vm2074 = vcmp.ge.f32.partialorder %v2067, 0.0
      %vm2075 = vcmp.ge.f32.partialorder %v2068, 0.0
      %vm2076 = vcmp.ge.f32.partialorder %v2069, 0.0
      %vm2077 = vcmp.ge.f32.partialorder %v2070, 0.0
      %v2078 = vsel %vm2071, 1.0, -1.0
      %v2079 = vsel %vm2072, 1.0, -1.0
      %v2080 = vsel %vm2073, 1.0, -1.0
      %v2081 = vsel %vm2074, 1.0, -1.0
      %v2082 = vsel %vm2075, 1.0, -1.0
      %v2083 = vsel %vm2076, 1.0, -1.0
      %v2084 = vsel %vm2077, 1.0, -1.0
      %v2085 = vand.u32 2147483647, %v2064
      %v2086 = vand.u32 2147483647, %v2065
      %v2087 = vand.u32 2147483647, %v2066
      %v2088 = vand.u32 2147483647, %v2067
      %v2089 = vand.u32 2147483647, %v2068
      %v2090 = vand.u32 2147483647, %v2069
      %v2091 = vand.u32 2147483647, %v2070
      %v2092 = vmul.f32 %v2085, 0.3275911
      %v2093 = vmul.f32 %v2086, 0.3275911
      %v2094 = vmul.f32 %v2087, 0.3275911
      %v2095 = vmul.f32 %v2088, 0.3275911
      %v2096 = vmul.f32 %v2089, 0.3275911
      %v2097 = vmul.f32 %v2090, 0.3275911
      %v2098 = vmul.f32 %v2091, 0.3275911
      %v2099 = vadd.f32 %v2092, 1.0
      %v2100 = vadd.f32 %v2093, 1.0
      %v2101 = vadd.f32 %v2094, 1.0
      %v2102 = vadd.f32 %v2095, 1.0
      %v2103 = vadd.f32 %v2096, 1.0
      %v2104 = vadd.f32 %v2097, 1.0
      %v2105 = vadd.f32 %v2098, 1.0
      %v2106 = vrcp.pop %v2099
      %v2107 = vrcp.pop %v2100
      %v2108 = vrcp.pop %v2101
      %v2109 = vrcp.pop %v2102
      %v2110 = vrcp.pop %v2103
      %v2111 = vrcp.pop %v2104
      %v2112 = vrcp.pop %v2105
      %v2113 = vmul.f32 %v2099, %v2106
      %v2114 = vmul.f32 %v2100, %v2107
      %v2115 = vmul.f32 %v2101, %v2108
      %v2116 = vmul.f32 %v2102, %v2109
      %v2117 = vmul.f32 %v2103, %v2110
      %v2118 = vmul.f32 %v2104, %v2111
      %v2119 = vmul.f32 %v2105, %v2112
      %v2120 = vsub.f32 2.0, %v2113
      %v2121 = vsub.f32 2.0, %v2114
      %v2122 = vsub.f32 2.0, %v2115
      %v2123 = vsub.f32 2.0, %v2116
      %v2124 = vsub.f32 2.0, %v2117
      %v2125 = vsub.f32 2.0, %v2118
      %v2126 = vsub.f32 2.0, %v2119
      %v2127 = vmul.f32 %v2106, %v2120
      %v2128 = vmul.f32 %v2107, %v2121
      %v2129 = vmul.f32 %v2108, %v2122
      %v2130 = vmul.f32 %v2109, %v2123
      %v2131 = vmul.f32 %v2110, %v2124
      %v2132 = vmul.f32 %v2111, %v2125
      %v2133 = vmul.f32 %v2112, %v2126
      %v2134 = vmul.f32 %v2127, 1.0614054
      %v2135 = vmul.f32 %v2128, 1.0614054
      %v2136 = vmul.f32 %v2129, 1.0614054
      %v2137 = vmul.f32 %v2130, 1.0614054
      %v2138 = vmul.f32 %v2131, 1.0614054
      %v2139 = vmul.f32 %v2132, 1.0614054
      %v2140 = vmul.f32 %v2133, 1.0614054
      %v2141 = vadd.f32 %v2134, -1.4531521
      %v2142 = vadd.f32 %v2135, -1.4531521
      %v2143 = vadd.f32 %v2136, -1.4531521
      %v2144 = vadd.f32 %v2137, -1.4531521
      %v2145 = vadd.f32 %v2138, -1.4531521
      %v2146 = vadd.f32 %v2139, -1.4531521
      %v2147 = vadd.f32 %v2140, -1.4531521
      %v2148 = vmul.f32 %v2141, %v2127
      %v2149 = vmul.f32 %v2142, %v2128
      %v2150 = vmul.f32 %v2143, %v2129
      %v2151 = vmul.f32 %v2144, %v2130
      %v2152 = vmul.f32 %v2145, %v2131
      %v2153 = vmul.f32 %v2146, %v2132
      %v2154 = vmul.f32 %v2147, %v2133
      %v2155 = vadd.f32 %v2148, 1.4214138
      %v2156 = vadd.f32 %v2149, 1.4214138
      %v2157 = vadd.f32 %v2150, 1.4214138
      %v2158 = vadd.f32 %v2151, 1.4214138
      %v2159 = vadd.f32 %v2152, 1.4214138
      %v2160 = vadd.f32 %v2153, 1.4214138
      %v2161 = vadd.f32 %v2154, 1.4214138
      %v2162 = vmul.f32 %v2155, %v2127
      %v2163 = vmul.f32 %v2156, %v2128
      %v2164 = vmul.f32 %v2157, %v2129
      %v2165 = vmul.f32 %v2158, %v2130
      %v2166 = vmul.f32 %v2159, %v2131
      %v2167 = vmul.f32 %v2160, %v2132
      %v2168 = vmul.f32 %v2161, %v2133
      %v2169 = vadd.f32 %v2162, -0.28449672
      %v2170 = vadd.f32 %v2163, -0.28449672
      %v2171 = vadd.f32 %v2164, -0.28449672
      %v2172 = vadd.f32 %v2165, -0.28449672
      %v2173 = vadd.f32 %v2166, -0.28449672
      %v2174 = vadd.f32 %v2167, -0.28449672
      %v2175 = vadd.f32 %v2168, -0.28449672
      %v2176 = vmul.f32 %v2169, %v2127
      %v2177 = vmul.f32 %v2170, %v2128
      %v2178 = vmul.f32 %v2171, %v2129
      %v2179 = vmul.f32 %v2172, %v2130
      %v2180 = vmul.f32 %v2173, %v2131
      %v2181 = vmul.f32 %v2174, %v2132
      %v2182 = vmul.f32 %v2175, %v2133
      %v2183 = vadd.f32 %v2176, 0.2548296
      %v2184 = vadd.f32 %v2177, 0.2548296
      %v2185 = vadd.f32 %v2178, 0.2548296
      %v2186 = vadd.f32 %v2179, 0.2548296
      %v2187 = vadd.f32 %v2180, 0.2548296
      %v2188 = vadd.f32 %v2181, 0.2548296
      %v2189 = vadd.f32 %v2182, 0.2548296
      %v2190 = vmul.f32 %v2183, %v2127
      %v2191 = vmul.f32 %v2184, %v2128
      %v2192 = vmul.f32 %v2185, %v2129
      %v2193 = vmul.f32 %v2186, %v2130
      %v2194 = vmul.f32 %v2187, %v2131
      %v2195 = vmul.f32 %v2188, %v2132
      %v2196 = vmul.f32 %v2189, %v2133
      %v2197 = vsub.f32 0.0, %v2085
      %v2198 = vsub.f32 0.0, %v2086
      %v2199 = vsub.f32 0.0, %v2087
      %v2200 = vsub.f32 0.0, %v2088
      %v2201 = vsub.f32 0.0, %v2089
      %v2202 = vsub.f32 0.0, %v2090
      %v2203 = vsub.f32 0.0, %v2091
      %v2204 = vmul.f32 %v2197, %v2085
      %v2205 = vmul.f32 %v2198, %v2086
      %v2206 = vmul.f32 %v2199, %v2087
      %v2207 = vmul.f32 %v2200, %v2088
      %v2208 = vmul.f32 %v2201, %v2089
      %v2209 = vmul.f32 %v2202, %v2090
      %v2210 = vmul.f32 %v2203, %v2091
      %v2211 = vmul.f32 %v2204, 1.442695
      %v2212 = vpow.pop %v2211
      %v2213 = vmul.f32 %v2205, 1.442695
      %v2214 = vpow.pop %v2213
      %v2215 = vmul.f32 %v2206, 1.442695
      %v2216 = vpow.pop %v2215
      %v2217 = vmul.f32 %v2207, 1.442695
      %v2218 = vpow.pop %v2217
      %v2219 = vmul.f32 %v2208, 1.442695
      %v2220 = vpow.pop %v2219
      %v2221 = vmul.f32 %v2209, 1.442695
      %v2222 = vpow.pop %v2221
      %v2223 = vmul.f32 %v2210, 1.442695
      %v2224 = vpow.pop %v2223
      %v2225 = vmul.f32 %v2190, %v2212
      %v2226 = vmul.f32 %v2191, %v2214
      %v2227 = vmul.f32 %v2192, %v2216
      %v2228 = vmul.f32 %v2193, %v2218
      %v2229 = vmul.f32 %v2194, %v2220
      %v2230 = vmul.f32 %v2195, %v2222
      %v2231 = vmul.f32 %v2196, %v2224
      %v2232 = vsub.f32 1.0, %v2225
      %v2233 = vsub.f32 1.0, %v2226
      %v2234 = vsub.f32 1.0, %v2227
      %v2235 = vsub.f32 1.0, %v2228
      %v2236 = vsub.f32 1.0, %v2229
      %v2237 = vsub.f32 1.0, %v2230
      %v2238 = vsub.f32 1.0, %v2231
      %v2239 = vmul.f32 %v2078, %v2232
      %v2240 = vmul.f32 %v2079, %v2233
      %v2241 = vmul.f32 %v2080, %v2234
      %v2242 = vmul.f32 %v2081, %v2235
      %v2243 = vmul.f32 %v2082, %v2236
      %v2244 = vmul.f32 %v2083, %v2237
      %v2245 = vmul.f32 %v2084, %v2238
      %v2246 = vadd.f32 %v2239, 1.0
      %v2247 = vadd.f32 %v2240, 1.0
      %v2248 = vadd.f32 %v2241, 1.0
      %v2249 = vadd.f32 %v2242, 1.0
      %v2250 = vadd.f32 %v2243, 1.0
      %v2251 = vadd.f32 %v2244, 1.0
      %v2252 = vadd.f32 %v2245, 1.0
      %v2253 = vmul.f32 %v2057, %v2246
      %v2254 = vmul.f32 %v2058, %v2247
      %v2255 = vmul.f32 %v2059, %v2248
      %v2256 = vmul.f32 %v2060, %v2249
      %v2257 = vmul.f32 %v2061, %v2250
      %v2258 = vmul.f32 %v2062, %v2251
      %v2259 = vmul.f32 %v2063, %v2252
      %v2260 = vmul.f32 %v1732, %v1970
      %v2261 = vmul.f32 %v1734, %v1974
      %v2262 = vmul.f32 %v1809, %v1978
      %v2263 = vmul.f32 %v1811, %v1982
      %v2264 = vmul.f32 %v1886, %v1986
      %v2265 = vmul.f32 %v1888, %v1990
      %v2266 = vmul.f32 %v1962, %v1994
      %v2267 = vadd.f32 %v2260, %v2261
      %v2268 = vadd.f32 %v2267, %v2262
      %v2269 = vadd.f32 %v2268, %v2263
      %v2270 = vadd.f32 %v2269, %v2264
      %v2271 = vadd.f32 %v2270, %v2265
      %v2272 = vadd.f32 %v2271, %v2266
      %2273 = vadd.xlane.f32.xlu0 %v2272
      %v2274 = vpop.xlane.xlu0 %2273
      %v2275 = vmul.f32 %v2274, 0.001953125
      %v2276 = vsub.f32 %v1732, %v2275
      %v2277 = vsub.f32 %v1734, %v2275
      %v2278 = vsub.f32 %v1809, %v2275
      %v2279 = vsub.f32 %v1811, %v2275
      %v2280 = vsub.f32 %v1886, %v2275
      %v2281 = vsub.f32 %v1888, %v2275
      %v2282 = vsub.f32 %v1962, %v2275
      %v2283 = vmul.f32 %v2276, %v2276
      %v2284 = vmul.f32 %v2277, %v2277
      %v2285 = vmul.f32 %v2278, %v2278
      %v2286 = vmul.f32 %v2279, %v2279
      %v2287 = vmul.f32 %v2280, %v2280
      %v2288 = vmul.f32 %v2281, %v2281
      %v2289 = vmul.f32 %v2282, %v2282
      %v2290 = vmul.f32 %v2283, %v1970
      %v2291 = vmul.f32 %v2284, %v1974
      %v2292 = vmul.f32 %v2285, %v1978
      %v2293 = vmul.f32 %v2286, %v1982
      %v2294 = vmul.f32 %v2287, %v1986
      %v2295 = vmul.f32 %v2288, %v1990
      %v2296 = vmul.f32 %v2289, %v1994
      %v2297 = vadd.f32 %v2290, %v2291
      %v2298 = vadd.f32 %v2297, %v2292
      %v2299 = vadd.f32 %v2298, %v2293
      %v2300 = vadd.f32 %v2299, %v2294
      %v2301 = vadd.f32 %v2300, %v2295
      %v2302 = vadd.f32 %v2301, %v2296
      %2303 = vadd.xlane.f32.xlu0 %v2302
      %v2304 = vpop.xlane.xlu0 %2303
      %v2305 = vmul.f32 %v2304, 0.001953125
      %v2306 = vadd.f32 %v2305, 1e-05
      %v2307 = vrsqrt.pop %v2306
      %v2308 = vmul.f32 %v2276, %v2307
      %v2309 = vmul.f32 %v2277, %v2307
      %v2310 = vmul.f32 %v2278, %v2307
      %v2311 = vmul.f32 %v2279, %v2307
      %v2312 = vmul.f32 %v2280, %v2307
      %v2313 = vmul.f32 %v2281, %v2307
      %v2314 = vmul.f32 %v2282, %v2307
      %2315 = vst [vmem:[%s210] sm:$0xff] %v2308
      %2316 = vst [vmem:[%s210 + $0x8] sm:$0xff] %v2309
      %2317 = vst [vmem:[%s210 + $0x10] sm:$0xff] %v2310
      %2318 = vst [vmem:[%s210 + $0x18] sm:$0xff] %v2311
      %2319 = vst [vmem:[%s210 + $0x20] sm:$0xff] %v2312
      %2320 = vst [vmem:[%s210 + $0x28] sm:$0xff] %v2313
      %2321 = vst [vmem:[%s210 + $0x30] sm:$0xff] %v2314
      %2322 = vst [vmem:[%s205] sm:$0xff] 0.0
      %2323 = vst [vmem:[%s205 + $0x8] sm:$0xff] 0.0
      %2324 = vst [vmem:[%s205 + $0x10] sm:$0xff] 0.0
      %2325 = vst [vmem:[%s205 + $0x18] sm:$0xff] 0.0
      %2326 = vst [vmem:[%s205 + $0x20] sm:$0xff] 0.0
      %2327 = vst [vmem:[%s205 + $0x28] sm:$0xff] 0.0
      %2328 = vst [vmem:[%s205 + $0x30] sm:$0xff] 0.0
      %2329 = vst [vmem:[%s205 + $0x38] sm:$0xff] 0.0
      %2330 = vst [vmem:[%s205 + $0x40] sm:$0xff] 0.0
      %v2331 = vmul.f32 %v2253, %v1970
      %v2332 = vmul.f32 %v2254, %v1974
      %v2333 = vmul.f32 %v2255, %v1978
      %v2334 = vmul.f32 %v2256, %v1982
      %v2335 = vmul.f32 %v2257, %v1986
      %v2336 = vmul.f32 %v2258, %v1990
      %v2337 = vmul.f32 %v2259, %v1994
      %2345 = vrot.lane.b32.xlu0 %v2331, 111
      %v2346 = vpop.permute.xlu0 %2345
      %2347 = vrot.lane.b32.xlu0 %v2332, 111
      %v2348 = vpop.permute.xlu0 %2347
      %2349 = vrot.lane.b32.xlu0 %v2333, 111
      %v2350 = vpop.permute.xlu0 %2349
      %2351 = vrot.lane.b32.xlu0 %v2334, 111
      %v2352 = vpop.permute.xlu0 %2351
      %2353 = vrot.lane.b32.xlu0 %v2335, 111
      %v2354 = vpop.permute.xlu0 %2353
      %2355 = vrot.lane.b32.xlu0 %v2336, 111
      %v2356 = vpop.permute.xlu0 %2355
      %2357 = vrot.lane.b32.xlu0 %v2337, 111
      %v2358 = vpop.permute.xlu0 %2357
      %vm2359 = vcmask 908288
      %v2360 = vsel %vm2359, %v2346, %v2348
      %v2361 = vsel %vm2359, %v2348, %v2350
      %v2362 = vsel %vm2359, %v2350, %v2352
      %v2363 = vsel %vm2359, %v2352, %v2354
      %v2364 = vsel %vm2359, %v2354, %v2356
      %v2365 = vsel %vm2359, %v2356, %v2358
      %vm2374 = vcmask 1048440
      %2375 = vst.msk [vmem:[%s205] sm:$0xff] %vm2374, %v2346
      %2376 = vst [vmem:[%s205 + $0x8] sm:$0xff] %v2360
      %2377 = vst [vmem:[%s205 + $0x10] sm:$0xff] %v2361
      %2378 = vst [vmem:[%s205 + $0x18] sm:$0xff] %v2362
      %2379 = vst [vmem:[%s205 + $0x20] sm:$0xff] %v2363
      %2380 = vst [vmem:[%s205 + $0x28] sm:$0xff] %v2364
      %2381 = vst [vmem:[%s205 + $0x30] sm:$0xff] %v2365
      %2382 = vst.msk [vmem:[%s205 + $0x38] sm:$0xff] %vm2359, %v2358
      %p2383 = scmp.lt.s32.totalorder %s16, 1
      %s2384 = scalar_select %p2383, %s16, 1
      %s2385 = smul.addr %s2384, 9
      %s2386 = smul.addr %s2385, 8
      %s2387 = scalar_lea.vmem %s3, %s2386
      %p2388 = scmp.lt.s32.totalorder %s16, 1
      %s2389 = scalar_select %p2388, %s16, 1
      %s2390 = smul.addr %s2389, 7
      %s2391 = smul.addr %s2390, 8
      %s2392 = scalar_lea.vmem %s4, %s2391
      // Predicated region
      $region33: #{res_conv_block.2} parent=31 // pred_check
        %p2393 = pneg %p102
      $region34: #{res_conv_block.2} parent=31 // pred_check_branch
        %2395 = sbr.rel (%p2393) target = $region36
      $region35: #{res_conv_block.2} parent=31 // pred_region
        _
      $region36: #{res_conv_block.2} parent=31 // pred_fallthru
        _
      // Predicated region
      $region37: #{res_conv_block.2} parent=31 // pred_check
        %p2396 = pneg %p128
      $region38: #{res_conv_block.2} parent=31 // pred_check_branch
        %2398 = sbr.rel (%p2396) target = $region40
      $region39: #{res_conv_block.2} parent=31 // pred_region
        _
      $region40: #{res_conv_block.2} parent=31 // pred_fallthru
        _
    $region32: #{res_conv_block.2} parent=5 // pred_fallthru
      _
    %p2399 = scmp.le.s32.totalorder 2, %s11
    // Predicated region
    $region41: #{res_conv_block.2} parent=5 // pred_check
      %p2400 = pneg %p2399
    $region42: #{res_conv_block.2} parent=5 // pred_check_branch
      %2402 = sbr.rel (%p2400) target = $region44
    $region43: #{res_conv_block.2} parent=5 // pred_region
      %s2403 = ssub.s32 %s11, 2
      // Predicated region
      $region45: #{res_conv_block.2} parent=43 // pred_check
        %p2404 = pneg %p108
      $region46: #{res_conv_block.2} parent=43 // pred_check_branch
        %2406 = sbr.rel (%p2404) target = $region48
      $region47: #{res_conv_block.2} parent=43 // pred_region
        %p2407 = scmp.lt.s32.totalorder %s17, 1
        %s2408 = scalar_select %p2407, %s17, 1
        %s2409 = smul.addr %s2408, 9
        %s2410 = smul.addr %s2409, 8
        %s2411 = scalar_lea.vmem %s3, %s2410
      $region48: #{res_conv_block.2} parent=43 // pred_fallthru
        _
      // Predicated region
      $region49: #{res_conv_block.2} parent=43 // pred_check
        %p2412 = pneg %p134
      $region50: #{res_conv_block.2} parent=43 // pred_check_branch
        %2414 = sbr.rel (%p2412) target = $region52
      $region51: #{res_conv_block.2} parent=43 // pred_region
        %p2415 = scmp.lt.s32.totalorder %s17, 1
        %s2416 = scalar_select %p2415, %s17, 1
        %s2417 = smul.addr %s2416, 7
        %s2418 = smul.addr %s2417, 8
        %s2419 = scalar_lea.vmem %s4, %s2418
      $region52: #{res_conv_block.2} parent=43 // pred_fallthru
        _
    $region44: #{res_conv_block.2} parent=5 // pred_fallthru
      _
  $region6: #{res_conv_block.2} parent=0 // loop_footer
    %s15 = sadd.s32 1, %s11
  $region7: #{res_conv_block.2} parent=0 // loop_footer_branch
    %10 = sbr.rel target = $region3
  $region8: #{res_conv_block.2} parent=0 // loop_exit
    _

// kernel: res_conv_block.3
$region0: #{res_conv_block.3}
  #allocation0 [shape = 'u32[]', space=smem, size = 0x4, offset = 0x4, fixed_abs, tag = 'smem constant byte address 0x4 - core index']
  #allocation1 [shape = 'u32[144,128]{1,0:T(1,128)}', space=vmem, size = 0x12000, scoped, tag = 'internal scratch']
  #allocation2 [shape = 'f32[216,896]{1,0:T(8,128)}', space=vmem, size = 0xbd000, scoped, tag = 'scratch operand']
  %s0 = inlined_call_operand.vmem [shape: f32[2,8,1152], index: 0, kind: input, shape index: {}]
  %s1 = inlined_call_operand.vmem [shape: f32[2,8,896], index: 1, kind: input, shape index: {}]
  %s2 = inlined_call_operand.vmem [shape: f32[8,216], index: 2, kind: input, shape index: {}]
  %s3 = inlined_call_operand.vmem [shape: f32[1,896], index: 3, kind: input, shape index: {}]
  %s4 = inlined_call_operand.vmem [shape: f32[2,8,896], index: 4, kind: output, shape index: {}]
  %s5 = sld [smem:[#allocation0]]
  $region49: #{res_conv_block.3} parent=0
    _
  %s7 = ssub.s32 1, %s5
  %s8 = scalar_select 0, %s7, %s5
  loop: start=0, step=1, limit=4
  $region2: #{res_conv_block.3} parent=0 // loop_pre_header
    _
  $region3: #{res_conv_block.3} parent=0 // loop_header
    %s10 = sphi 0, %s14
    %p11 = scmp.ge.s32.totalorder %s10, 4
    %s20 = sphi 0, %s22
    %s23 = sphi 0, %s20
    %s24 = sphi 0, %s23
    %s40 = sphi 0, %s24
    %s46 = sphi 0, %s48
    %s49 = sphi 0, %s46
    %s50 = sphi 0, %s49
    %s66 = sphi 0, %s50
    %s70 = sphi 0, %s70
    %s72 = sphi 0, %s70
    %s73 = sphi 0, %s72
    %s87 = sphi 0, %s73
    %s91 = sphi 0, %s91
    %s93 = sphi 0, %s91
    %s94 = sphi 0, %s93
    %s108 = sphi 0, %s94
    %s114 = sphi 0, %s116
    %s117 = sphi 0, %s114
    %s118 = sphi 0, %s117
    %s134 = sphi 0, %s118
  $region4: #{res_conv_block.3} parent=0 // loop_header_branch
    %13 = sbr.rel (%p11) target = $region8
  $region5: #{res_conv_block.3} parent=0 // loop_body
    %s15 = ssub.s32 %s10, 1
    %s16 = ssub.s32 %s10, 2
    %s17 = sadd.s32 %s10, 1
    %s18 = ssub.s32 %s10, %s17
    %p19 = scmp.eq.s32.totalorder %s18, 0
    %s21 = sadd.s32 %s20, 1
    %s22 = scalar_select %p19, %s20, %s21
    %p25 = pneg %p19
    %p26 = scmp.eq.s32.totalorder %s10, 1
    %p27 = por %p25, %p26
    %p28 = scmp.ne.s32.totalorder %s20, %s23
    %p29 = scmp.eq.s32.totalorder %s10, 0
    %p30 = por %p28, %p29
    %p31 = scmp.ne.s32.totalorder %s20, %s23
    %p32 = scmp.eq.s32.totalorder %s15, 1
    %p33 = por %p31, %p32
    %p34 = scmp.ne.s32.totalorder %s23, %s24
    %p35 = scmp.eq.s32.totalorder %s15, 0
    %p36 = por %p34, %p35
    %p37 = scmp.ne.s32.totalorder %s23, %s24
    %p38 = scmp.eq.s32.totalorder %s16, 1
    %p39 = por %p37, %p38
    %p41 = scmp.ne.s32.totalorder %s24, %s40
    %p42 = scmp.eq.s32.totalorder %s16, 0
    %p43 = por %p41, %p42
    %s44 = ssub.s32 %s10, %s17
    %p45 = scmp.eq.s32.totalorder %s44, 0
    %s47 = sadd.s32 %s46, 1
    %s48 = scalar_select %p45, %s46, %s47
    %p51 = pneg %p45
    %p52 = scmp.eq.s32.totalorder %s10, 1
    %p53 = por %p51, %p52
    %p54 = scmp.ne.s32.totalorder %s46, %s49
    %p55 = scmp.eq.s32.totalorder %s10, 0
    %p56 = por %p54, %p55
    %p57 = scmp.ne.s32.totalorder %s46, %s49
    %p58 = scmp.eq.s32.totalorder %s15, 1
    %p59 = por %p57, %p58
    %p60 = scmp.ne.s32.totalorder %s49, %s50
    %p61 = scmp.eq.s32.totalorder %s15, 0
    %p62 = por %p60, %p61
    %p63 = scmp.ne.s32.totalorder %s49, %s50
    %p64 = scmp.eq.s32.totalorder %s16, 1
    %p65 = por %p63, %p64
    %p67 = scmp.ne.s32.totalorder %s50, %s66
    %p68 = scmp.eq.s32.totalorder %s16, 0
    %p69 = por %p67, %p68
    %s71 = sadd.s32 %s70, 1
    %p74 = scmp.eq.s32.totalorder %s10, 1
    %p75 = scmp.ne.s32.totalorder %s70, %s72
    %p76 = scmp.eq.s32.totalorder %s10, 0
    %p77 = por %p75, %p76
    %p78 = scmp.ne.s32.totalorder %s70, %s72
    %p79 = scmp.eq.s32.totalorder %s15, 1
    %p80 = por %p78, %p79
    %p81 = scmp.ne.s32.totalorder %s72, %s73
    %p82 = scmp.eq.s32.totalorder %s15, 0
    %p83 = por %p81, %p82
    %p84 = scmp.ne.s32.totalorder %s72, %s73
    %p85 = scmp.eq.s32.totalorder %s16, 1
    %p86 = por %p84, %p85
    %p88 = scmp.ne.s32.totalorder %s73, %s87
    %p89 = scmp.eq.s32.totalorder %s16, 0
    %p90 = por %p88, %p89
    %s92 = sadd.s32 %s91, 1
    %p95 = scmp.eq.s32.totalorder %s10, 1
    %p96 = scmp.ne.s32.totalorder %s91, %s93
    %p97 = scmp.eq.s32.totalorder %s10, 0
    %p98 = por %p96, %p97
    %p99 = scmp.ne.s32.totalorder %s91, %s93
    %p100 = scmp.eq.s32.totalorder %s15, 1
    %p101 = por %p99, %p100
    %p102 = scmp.ne.s32.totalorder %s93, %s94
    %p103 = scmp.eq.s32.totalorder %s15, 0
    %p104 = por %p102, %p103
    %p105 = scmp.ne.s32.totalorder %s93, %s94
    %p106 = scmp.eq.s32.totalorder %s16, 1
    %p107 = por %p105, %p106
    %p109 = scmp.ne.s32.totalorder %s94, %s108
    %p110 = scmp.eq.s32.totalorder %s16, 0
    %p111 = por %p109, %p110
    %s112 = ssub.s32 %s10, %s17
    %p113 = scmp.eq.s32.totalorder %s112, 0
    %s115 = sadd.s32 %s114, 1
    %s116 = scalar_select %p113, %s114, %s115
    %p119 = pneg %p113
    %p120 = scmp.eq.s32.totalorder %s10, 1
    %p121 = por %p119, %p120
    %p122 = scmp.ne.s32.totalorder %s114, %s117
    %p123 = scmp.eq.s32.totalorder %s10, 0
    %p124 = por %p122, %p123
    %p125 = scmp.ne.s32.totalorder %s114, %s117
    %p126 = scmp.eq.s32.totalorder %s15, 1
    %p127 = por %p125, %p126
    %p128 = scmp.ne.s32.totalorder %s117, %s118
    %p129 = scmp.eq.s32.totalorder %s15, 0
    %p130 = por %p128, %p129
    %p131 = scmp.ne.s32.totalorder %s117, %s118
    %p132 = scmp.eq.s32.totalorder %s16, 1
    %p133 = por %p131, %p132
    %p135 = scmp.ne.s32.totalorder %s118, %s134
    %p136 = scmp.eq.s32.totalorder %s16, 0
    %p137 = por %p135, %p136
    %p138 = scmp.le.s32.totalorder 1, %s10
    %p139 = scmp.lt.s32.totalorder %s10, 3
    %p140 = pnand %p138, %p139
    %p141 = pneg %p140
    // Predicated region
    $region9: #{res_conv_block.3} parent=5 // pred_check
      _
    $region10: #{res_conv_block.3} parent=5 // pred_check_branch
      %143 = sbr.rel (%p140) target = $region12
    $region11: #{res_conv_block.3} parent=5 // pred_region
      %s144 = ssub.s32 %s10, 1
      // Predicated region
      $region13: #{res_conv_block.3} parent=11 // pred_check
        %p145 = pneg %p83
      $region14: #{res_conv_block.3} parent=11 // pred_check_branch
        %147 = sbr.rel (%p145) target = $region16
      $region15: #{res_conv_block.3} parent=11 // pred_region
        _
      $region16: #{res_conv_block.3} parent=11 // pred_fallthru
        _
      // Predicated region
      $region17: #{res_conv_block.3} parent=11 // pred_check
        %p148 = pneg %p104
      $region18: #{res_conv_block.3} parent=11 // pred_check_branch
        %150 = sbr.rel (%p148) target = $region20
      $region19: #{res_conv_block.3} parent=11 // pred_region
        _
      $region20: #{res_conv_block.3} parent=11 // pred_fallthru
        _
    $region12: #{res_conv_block.3} parent=5 // pred_fallthru
      _
    %p151 = scmp.lt.s32.totalorder %s10, 2
    // Predicated region
    $region21: #{res_conv_block.3} parent=5 // pred_check
      %p152 = pneg %p151
    $region22: #{res_conv_block.3} parent=5 // pred_check_branch
      %154 = sbr.rel (%p152) target = $region24
    $region23: #{res_conv_block.3} parent=5 // pred_region
      // Predicated region
      $region25: #{res_conv_block.3} parent=23 // pred_check
        %p155 = pneg %p30
      $region26: #{res_conv_block.3} parent=23 // pred_check_branch
        %157 = sbr.rel (%p155) target = $region28
      $region27: #{res_conv_block.3} parent=23 // pred_region
        %p158 = scmp.lt.s32.totalorder %s10, 1
        %s159 = scalar_select %p158, %s10, 1
        %s160 = smul.addr %s159, 9
        %s161 = smul.addr %s160, 8
        %s162 = scalar_lea.vmem %s0, %s161
      $region28: #{res_conv_block.3} parent=23 // pred_fallthru
        _
      // Predicated region
      $region29: #{res_conv_block.3} parent=23 // pred_check
        %p163 = pneg %p56
      $region30: #{res_conv_block.3} parent=23 // pred_check_branch
        %165 = sbr.rel (%p163) target = $region32
      $region31: #{res_conv_block.3} parent=23 // pred_region
        %p166 = scmp.lt.s32.totalorder %s10, 1
        %s167 = scalar_select %p166, %s10, 1
        %s168 = smul.addr %s167, 7
        %s169 = smul.addr %s168, 8
        %s170 = scalar_lea.vmem %s1, %s169
      $region32: #{res_conv_block.3} parent=23 // pred_fallthru
        _
    $region24: #{res_conv_block.3} parent=5 // pred_fallthru
      _
    %p171 = scmp.le.s32.totalorder 1, %s10
    %p172 = scmp.lt.s32.totalorder %s10, 3
    %p173 = pnand %p171, %p172
    %p174 = pneg %p173
    // Predicated region
    $region33: #{res_conv_block.3} parent=5 // pred_check
      _
    $region34: #{res_conv_block.3} parent=5 // pred_check_branch
      %176 = sbr.rel (%p173) target = $region36
    $region35: #{res_conv_block.3} parent=5 // pred_region
      %s177 = ssub.s32 %s10, 1
      %p178 = scmp.lt.s32.totalorder %s15, 1
      %s179 = scalar_select %p178, %s15, 1
      %s180 = smul.addr %s179, 9
      %s181 = smul.addr %s180, 8
      %s182 = scalar_lea.vmem %s0, %s181
      %p183 = pneg %p36
      %p184 = pneg %p33
      %p185 = scmp.lt.s32.totalorder %s15, 1
      %s186 = scalar_select %p185, %s15, 1
      %s187 = smul.addr %s186, 7
      %s188 = smul.addr %s187, 8
      %s189 = scalar_lea.vmem %s1, %s188
      %p190 = pneg %p62
      %p191 = pneg %p59
      %p192 = pneg %p83
      %p193 = pneg %p80
      %p194 = pneg %p104
      %p195 = pneg %p101
      %p196 = pneg %p130
      %p197 = pneg %p127
      %p198 = scmp.lt.s32.totalorder %s15, 1
      %s199 = scalar_select %p198, %s15, 1
      %s200 = smul.addr %s199, 7
      %s201 = smul.addr %s200, 8
      %s202 = scalar_lea.vmem %s4, %s201
      %p203 = scmp.lt.s32.totalorder %s15, 1
      %s204 = scalar_select %p203, %s15, 1
      %s205 = smul.addr %s204, 9
      %s206 = smul.addr %s205, 8
      %s207 = scalar_lea.vmem %s0, %s206
      %p208 = scmp.lt.s32.totalorder %s15, 1
      %s209 = scalar_select %p208, %s15, 1
      %s210 = smul.addr %s209, 7
      %s211 = smul.addr %s210, 8
      %s212 = scalar_lea.vmem %s1, %s211
      %p213 = scmp.lt.s32.totalorder %s15, 1
      %s214 = scalar_select %p213, %s15, 1
      %s215 = smul.addr %s214, 7
      %s216 = smul.addr %s215, 8
      %s217 = scalar_lea.vmem %s4, %s216
      %v218 = vld [vmem:[%s207] sm:$0xff]
      %v219 = vld [vmem:[%s207 + $0x8] sm:$0xff]
      %v220 = vld [vmem:[%s207 + $0x10] sm:$0xff]
      %v221 = vld [vmem:[%s207 + $0x18] sm:$0xff]
      %v222 = vld [vmem:[%s207 + $0x20] sm:$0xff]
      %v223 = vld [vmem:[%s207 + $0x28] sm:$0xff]
      %v224 = vld [vmem:[%s207 + $0x30] sm:$0xff]
      %225 = vst [vmem:[#allocation2] sm:$0xff] %v218
      %226 = vst [vmem:[#allocation2 + $0x8] sm:$0xff] %v219
      %227 = vst [vmem:[#allocation2 + $0x10] sm:$0xff] %v220
      %228 = vst [vmem:[#allocation2 + $0x18] sm:$0xff] %v221
      %229 = vst [vmem:[#allocation2 + $0x20] sm:$0xff] %v222
      %230 = vst [vmem:[#allocation2 + $0x28] sm:$0xff] %v223
      %231 = vst [vmem:[#allocation2 + $0x30] sm:$0xff] %v224
      %v232 = vld [vmem:[%s207] sm:$0xff]
      %v233 = vld [vmem:[%s207 + $0x8] sm:$0xff]
      %v234 = vld [vmem:[%s207 + $0x10] sm:$0xff]
      %v235 = vld [vmem:[%s207 + $0x18] sm:$0xff]
      %v236 = vld [vmem:[%s207 + $0x20] sm:$0xff]
      %v237 = vld [vmem:[%s207 + $0x28] sm:$0xff]
      %v238 = vld [vmem:[%s207 + $0x30] sm:$0xff]
      %v239 = vld [vmem:[%s207 + $0x38] sm:$0xff]
      %248 = vrot.lane.b32.xlu0 %v232, 127
      %v249 = vpop.permute.xlu0 %248
      %250 = vrot.lane.b32.xlu0 %v233, 127
      %v251 = vpop.permute.xlu0 %250
      %252 = vrot.lane.b32.xlu0 %v234, 127
      %v253 = vpop.permute.xlu0 %252
      %254 = vrot.lane.b32.xlu0 %v235, 127
      %v255 = vpop.permute.xlu0 %254
      %256 = vrot.lane.b32.xlu0 %v236, 127
      %v257 = vpop.permute.xlu0 %256
      %258 = vrot.lane.b32.xlu0 %v237, 127
      %v259 = vpop.permute.xlu0 %258
      %260 = vrot.lane.b32.xlu0 %v238, 127
      %v261 = vpop.permute.xlu0 %260
      %262 = vrot.lane.b32.xlu0 %v239, 127
      %v263 = vpop.permute.xlu0 %262
      %vm264 = vcmask 1039360
      %v265 = vsel %vm264, %v249, %v251
      %v266 = vsel %vm264, %v251, %v253
      %v267 = vsel %vm264, %v253, %v255
      %v268 = vsel %vm264, %v255, %v257
      %v269 = vsel %vm264, %v257, %v259
      %v270 = vsel %vm264, %v259, %v261
      %v271 = vsel %vm264, %v261, %v263
      %279 = vst [vmem:[#allocation2 + $0x38] sm:$0xff] %v265
      %280 = vst [vmem:[#allocation2 + $0x40] sm:$0xff] %v266
      %281 = vst [vmem:[#allocation2 + $0x48] sm:$0xff] %v267
      %282 = vst [vmem:[#allocation2 + $0x50] sm:$0xff] %v268
      %283 = vst [vmem:[#allocation2 + $0x58] sm:$0xff] %v269
      %284 = vst [vmem:[#allocation2 + $0x60] sm:$0xff] %v270
      %285 = vst [vmem:[#allocation2 + $0x68] sm:$0xff] %v271
      %v286 = vld [vmem:[%s207] sm:$0xff]
      %v287 = vld [vmem:[%s207 + $0x8] sm:$0xff]
      %v288 = vld [vmem:[%s207 + $0x10] sm:$0xff]
      %v289 = vld [vmem:[%s207 + $0x18] sm:$0xff]
      %v290 = vld [vmem:[%s207 + $0x20] sm:$0xff]
      %v291 = vld [vmem:[%s207 + $0x28] sm:$0xff]
      %v292 = vld [vmem:[%s207 + $0x30] sm:$0xff]
      %v293 = vld [vmem:[%s207 + $0x38] sm:$0xff]
      %302 = vrot.lane.b32.xlu0 %v286, 126
      %v303 = vpop.permute.xlu0 %302
      %304 = vrot.lane.b32.xlu0 %v287, 126
      %v305 = vpop.permute.xlu0 %304
      %306 = vrot.lane.b32.xlu0 %v288, 126
      %v307 = vpop.permute.xlu0 %306
      %308 = vrot.lane.b32.xlu0 %v289, 126
      %v309 = vpop.permute.xlu0 %308
      %310 = vrot.lane.b32.xlu0 %v290, 126
      %v311 = vpop.permute.xlu0 %310
      %312 = vrot.lane.b32.xlu0 %v291, 126
      %v313 = vpop.permute.xlu0 %312
      %314 = vrot.lane.b32.xlu0 %v292, 126
      %v315 = vpop.permute.xlu0 %314
      %316 = vrot.lane.b32.xlu0 %v293, 126
      %v317 = vpop.permute.xlu0 %316
      %vm318 = vcmask 1031168
      %v319 = vsel %vm318, %v303, %v305
      %v320 = vsel %vm318, %v305, %v307
      %v321 = vsel %vm318, %v307, %v309
      %v322 = vsel %vm318, %v309, %v311
      %v323 = vsel %vm318, %v311, %v313
      %v324 = vsel %vm318, %v313, %v315
      %v325 = vsel %vm318, %v315, %v317
      %333 = vst [vmem:[#allocation2 + $0x70] sm:$0xff] %v319
      %334 = vst [vmem:[#allocation2 + $0x78] sm:$0xff] %v320
      %335 = vst [vmem:[#allocation2 + $0x80] sm:$0xff] %v321
      %336 = vst [vmem:[#allocation2 + $0x88] sm:$0xff] %v322
      %337 = vst [vmem:[#allocation2 + $0x90] sm:$0xff] %v323
      %338 = vst [vmem:[#allocation2 + $0x98] sm:$0xff] %v324
      %339 = vst [vmem:[#allocation2 + $0xa0] sm:$0xff] %v325
      %v340 = vld [vmem:[%s207] sm:$0xff]
      %v341 = vld [vmem:[%s207 + $0x8] sm:$0xff]
      %v342 = vld [vmem:[%s207 + $0x10] sm:$0xff]
      %v343 = vld [vmem:[%s207 + $0x18] sm:$0xff]
      %v344 = vld [vmem:[%s207 + $0x20] sm:$0xff]
      %v345 = vld [vmem:[%s207 + $0x28] sm:$0xff]
      %v346 = vld [vmem:[%s207 + $0x30] sm:$0xff]
      %v347 = vld [vmem:[%s207 + $0x38] sm:$0xff]
      %356 = vrot.lane.b32.xlu0 %v340, 118
      %v357 = vpop.permute.xlu0 %356
      %358 = vrot.lane.b32.xlu0 %v341, 118
      %v359 = vpop.permute.xlu0 %358
      %360 = vrot.lane.b32.xlu0 %v342, 118
      %v361 = vpop.permute.xlu0 %360
      %362 = vrot.lane.b32.xlu0 %v343, 118
      %v363 = vpop.permute.xlu0 %362
      %364 = vrot.lane.b32.xlu0 %v344, 118
      %v365 = vpop.permute.xlu0 %364
      %366 = vrot.lane.b32.xlu0 %v345, 118
      %v367 = vpop.permute.xlu0 %366
      %368 = vrot.lane.b32.xlu0 %v346, 118
      %v369 = vpop.permute.xlu0 %368
      %370 = vrot.lane.b32.xlu0 %v347, 118
      %v371 = vpop.permute.xlu0 %370
      %vm372 = vcmask 965632
      %v373 = vsel %vm372, %v357, %v359
      %v374 = vsel %vm372, %v359, %v361
      %v375 = vsel %vm372, %v361, %v363
      %v376 = vsel %vm372, %v363, %v365
      %v377 = vsel %vm372, %v365, %v367
      %v378 = vsel %vm372, %v367, %v369
      %v379 = vsel %vm372, %v369, %v371
      %387 = vst [vmem:[#allocation2 + $0xa8] sm:$0xff] %v373
      %388 = vst [vmem:[#allocation2 + $0xb0] sm:$0xff] %v374
      %389 = vst [vmem:[#allocation2 + $0xb8] sm:$0xff] %v375
      %390 = vst [vmem:[#allocation2 + $0xc0] sm:$0xff] %v376
      %391 = vst [vmem:[#allocation2 + $0xc8] sm:$0xff] %v377
      %392 = vst [vmem:[#allocation2 + $0xd0] sm:$0xff] %v378
      %393 = vst [vmem:[#allocation2 + $0xd8] sm:$0xff] %v379
      %v394 = vld [vmem:[%s207] sm:$0xff]
      %v395 = vld [vmem:[%s207 + $0x8] sm:$0xff]
      %v396 = vld [vmem:[%s207 + $0x10] sm:$0xff]
      %v397 = vld [vmem:[%s207 + $0x18] sm:$0xff]
      %v398 = vld [vmem:[%s207 + $0x20] sm:$0xff]
      %v399 = vld [vmem:[%s207 + $0x28] sm:$0xff]
      %v400 = vld [vmem:[%s207 + $0x30] sm:$0xff]
      %v401 = vld [vmem:[%s207 + $0x38] sm:$0xff]
      %410 = vrot.lane.b32.xlu0 %v394, 117
      %v411 = vpop.permute.xlu0 %410
      %412 = vrot.lane.b32.xlu0 %v395, 117
      %v413 = vpop.permute.xlu0 %412
      %414 = vrot.lane.b32.xlu0 %v396, 117
      %v415 = vpop.permute.xlu0 %414
      %416 = vrot.lane.b32.xlu0 %v397, 117
      %v417 = vpop.permute.xlu0 %416
      %418 = vrot.lane.b32.xlu0 %v398, 117
      %v419 = vpop.permute.xlu0 %418
      %420 = vrot.lane.b32.xlu0 %v399, 117
      %v421 = vpop.permute.xlu0 %420
      %422 = vrot.lane.b32.xlu0 %v400, 117
      %v423 = vpop.permute.xlu0 %422
      %424 = vrot.lane.b32.xlu0 %v401, 117
      %v425 = vpop.permute.xlu0 %424
      %vm426 = vcmask 957440
      %v427 = vsel %vm426, %v411, %v413
      %v428 = vsel %vm426, %v413, %v415
      %v429 = vsel %vm426, %v415, %v417
      %v430 = vsel %vm426, %v417, %v419
      %v431 = vsel %vm426, %v419, %v421
      %v432 = vsel %vm426, %v421, %v423
      %v433 = vsel %vm426, %v423, %v425
      %441 = vst [vmem:[#allocation2 + $0xe0] sm:$0xff] %v427
      %442 = vst [vmem:[#allocation2 + $0xe8] sm:$0xff] %v428
      %443 = vst [vmem:[#allocation2 + $0xf0] sm:$0xff] %v429
      %444 = vst [vmem:[#allocation2 + $0xf8] sm:$0xff] %v430
      %445 = vst [vmem:[#allocation2 + $0x100] sm:$0xff] %v431
      %446 = vst [vmem:[#allocation2 + $0x108] sm:$0xff] %v432
      %447 = vst [vmem:[#allocation2 + $0x110] sm:$0xff] %v433
      %v448 = vld [vmem:[%s207] sm:$0xff]
      %v449 = vld [vmem:[%s207 + $0x8] sm:$0xff]
      %v450 = vld [vmem:[%s207 + $0x10] sm:$0xff]
      %v451 = vld [vmem:[%s207 + $0x18] sm:$0xff]
      %v452 = vld [vmem:[%s207 + $0x20] sm:$0xff]
      %v453 = vld [vmem:[%s207 + $0x28] sm:$0xff]
      %v454 = vld [vmem:[%s207 + $0x30] sm:$0xff]
      %v455 = vld [vmem:[%s207 + $0x38] sm:$0xff]
      %464 = vrot.lane.b32.xlu0 %v448, 116
      %v465 = vpop.permute.xlu0 %464
      %466 = vrot.lane.b32.xlu0 %v449, 116
      %v467 = vpop.permute.xlu0 %466
      %468 = vrot.lane.b32.xlu0 %v450, 116
      %v469 = vpop.permute.xlu0 %468
      %470 = vrot.lane.b32.xlu0 %v451, 116
      %v471 = vpop.permute.xlu0 %470
      %472 = vrot.lane.b32.xlu0 %v452, 116
      %v473 = vpop.permute.xlu0 %472
      %474 = vrot.lane.b32.xlu0 %v453, 116
      %v475 = vpop.permute.xlu0 %474
      %476 = vrot.lane.b32.xlu0 %v454, 116
      %v477 = vpop.permute.xlu0 %476
      %478 = vrot.lane.b32.xlu0 %v455, 116
      %v479 = vpop.permute.xlu0 %478
      %vm480 = vcmask 949248
      %v481 = vsel %vm480, %v465, %v467
      %v482 = vsel %vm480, %v467, %v469
      %v483 = vsel %vm480, %v469, %v471
      %v484 = vsel %vm480, %v471, %v473
      %v485 = vsel %vm480, %v473, %v475
      %v486 = vsel %vm480, %v475, %v477
      %v487 = vsel %vm480, %v477, %v479
      %495 = vst [vmem:[#allocation2 + $0x118] sm:$0xff] %v481
      %496 = vst [vmem:[#allocation2 + $0x120] sm:$0xff] %v482
      %497 = vst [vmem:[#allocation2 + $0x128] sm:$0xff] %v483
      %498 = vst [vmem:[#allocation2 + $0x130] sm:$0xff] %v484
      %499 = vst [vmem:[#allocation2 + $0x138] sm:$0xff] %v485
      %500 = vst [vmem:[#allocation2 + $0x140] sm:$0xff] %v486
      %501 = vst [vmem:[#allocation2 + $0x148] sm:$0xff] %v487
      %v502 = vld [vmem:[%s207] sm:$0xff]
      %v503 = vld [vmem:[%s207 + $0x8] sm:$0xff]
      %v504 = vld [vmem:[%s207 + $0x10] sm:$0xff]
      %v505 = vld [vmem:[%s207 + $0x18] sm:$0xff]
      %v506 = vld [vmem:[%s207 + $0x20] sm:$0xff]
      %v507 = vld [vmem:[%s207 + $0x28] sm:$0xff]
      %v508 = vld [vmem:[%s207 + $0x30] sm:$0xff]
      %v509 = vld [vmem:[%s207 + $0x38] sm:$0xff]
      %518 = vrot.lane.b32.xlu0 %v502, 108
      %v519 = vpop.permute.xlu0 %518
      %520 = vrot.lane.b32.xlu0 %v503, 108
      %v521 = vpop.permute.xlu0 %520
      %522 = vrot.lane.b32.xlu0 %v504, 108
      %v523 = vpop.permute.xlu0 %522
      %524 = vrot.lane.b32.xlu0 %v505, 108
      %v525 = vpop.permute.xlu0 %524
      %526 = vrot.lane.b32.xlu0 %v506, 108
      %v527 = vpop.permute.xlu0 %526
      %528 = vrot.lane.b32.xlu0 %v507, 108
      %v529 = vpop.permute.xlu0 %528
      %530 = vrot.lane.b32.xlu0 %v508, 108
      %v531 = vpop.permute.xlu0 %530
      %532 = vrot.lane.b32.xlu0 %v509, 108
      %v533 = vpop.permute.xlu0 %532
      %vm534 = vcmask 883712
      %v535 = vsel %vm534, %v519, %v521
      %v536 = vsel %vm534, %v521, %v523
      %v537 = vsel %vm534, %v523, %v525
      %v538 = vsel %vm534, %v525, %v527
      %v539 = vsel %vm534, %v527, %v529
      %v540 = vsel %vm534, %v529, %v531
      %v541 = vsel %vm534, %v531, %v533
      %549 = vst [vmem:[#allocation2 + $0x150] sm:$0xff] %v535
      %550 = vst [vmem:[#allocation2 + $0x158] sm:$0xff] %v536
      %551 = vst [vmem:[#allocation2 + $0x160] sm:$0xff] %v537
      %552 = vst [vmem:[#allocation2 + $0x168] sm:$0xff] %v538
      %553 = vst [vmem:[#allocation2 + $0x170] sm:$0xff] %v539
      %554 = vst [vmem:[#allocation2 + $0x178] sm:$0xff] %v540
      %555 = vst [vmem:[#allocation2 + $0x180] sm:$0xff] %v541
      %v556 = vld [vmem:[%s207] sm:$0xff]
      %v557 = vld [vmem:[%s207 + $0x8] sm:$0xff]
      %v558 = vld [vmem:[%s207 + $0x10] sm:$0xff]
      %v559 = vld [vmem:[%s207 + $0x18] sm:$0xff]
      %v560 = vld [vmem:[%s207 + $0x20] sm:$0xff]
      %v561 = vld [vmem:[%s207 + $0x28] sm:$0xff]
      %v562 = vld [vmem:[%s207 + $0x30] sm:$0xff]
      %v563 = vld [vmem:[%s207 + $0x38] sm:$0xff]
      %572 = vrot.lane.b32.xlu0 %v556, 107
      %v573 = vpop.permute.xlu0 %572
      %574 = vrot.lane.b32.xlu0 %v557, 107
      %v575 = vpop.permute.xlu0 %574
      %576 = vrot.lane.b32.xlu0 %v558, 107
      %v577 = vpop.permute.xlu0 %576
      %578 = vrot.lane.b32.xlu0 %v559, 107
      %v579 = vpop.permute.xlu0 %578
      %580 = vrot.lane.b32.xlu0 %v560, 107
      %v581 = vpop.permute.xlu0 %580
      %582 = vrot.lane.b32.xlu0 %v561, 107
      %v583 = vpop.permute.xlu0 %582
      %584 = vrot.lane.b32.xlu0 %v562, 107
      %v585 = vpop.permute.xlu0 %584
      %586 = vrot.lane.b32.xlu0 %v563, 107
      %v587 = vpop.permute.xlu0 %586
      %vm588 = vcmask 875520
      %v589 = vsel %vm588, %v573, %v575
      %v590 = vsel %vm588, %v575, %v577
      %v591 = vsel %vm588, %v577, %v579
      %v592 = vsel %vm588, %v579, %v581
      %v593 = vsel %vm588, %v581, %v583
      %v594 = vsel %vm588, %v583, %v585
      %v595 = vsel %vm588, %v585, %v587
      %603 = vst [vmem:[#allocation2 + $0x188] sm:$0xff] %v589
      %604 = vst [vmem:[#allocation2 + $0x190] sm:$0xff] %v590
      %605 = vst [vmem:[#allocation2 + $0x198] sm:$0xff] %v591
      %606 = vst [vmem:[#allocation2 + $0x1a0] sm:$0xff] %v592
      %607 = vst [vmem:[#allocation2 + $0x1a8] sm:$0xff] %v593
      %608 = vst [vmem:[#allocation2 + $0x1b0] sm:$0xff] %v594
      %609 = vst [vmem:[#allocation2 + $0x1b8] sm:$0xff] %v595
      %v610 = vld [vmem:[%s207] sm:$0xff]
      %v611 = vld [vmem:[%s207 + $0x8] sm:$0xff]
      %v612 = vld [vmem:[%s207 + $0x10] sm:$0xff]
      %v613 = vld [vmem:[%s207 + $0x18] sm:$0xff]
      %v614 = vld [vmem:[%s207 + $0x20] sm:$0xff]
      %v615 = vld [vmem:[%s207 + $0x28] sm:$0xff]
      %v616 = vld [vmem:[%s207 + $0x30] sm:$0xff]
      %v617 = vld [vmem:[%s207 + $0x38] sm:$0xff]
      %626 = vrot.lane.b32.xlu0 %v610, 106
      %v627 = vpop.permute.xlu0 %626
      %628 = vrot.lane.b32.xlu0 %v611, 106
      %v629 = vpop.permute.xlu0 %628
      %630 = vrot.lane.b32.xlu0 %v612, 106
      %v631 = vpop.permute.xlu0 %630
      %632 = vrot.lane.b32.xlu0 %v613, 106
      %v633 = vpop.permute.xlu0 %632
      %634 = vrot.lane.b32.xlu0 %v614, 106
      %v635 = vpop.permute.xlu0 %634
      %636 = vrot.lane.b32.xlu0 %v615, 106
      %v637 = vpop.permute.xlu0 %636
      %638 = vrot.lane.b32.xlu0 %v616, 106
      %v639 = vpop.permute.xlu0 %638
      %640 = vrot.lane.b32.xlu0 %v617, 106
      %v641 = vpop.permute.xlu0 %640
      %vm642 = vcmask 867328
      %v643 = vsel %vm642, %v627, %v629
      %v644 = vsel %vm642, %v629, %v631
      %v645 = vsel %vm642, %v631, %v633
      %v646 = vsel %vm642, %v633, %v635
      %v647 = vsel %vm642, %v635, %v637
      %v648 = vsel %vm642, %v637, %v639
      %v649 = vsel %vm642, %v639, %v641
      %657 = vst [vmem:[#allocation2 + $0x1c0] sm:$0xff] %v643
      %658 = vst [vmem:[#allocation2 + $0x1c8] sm:$0xff] %v644
      %659 = vst [vmem:[#allocation2 + $0x1d0] sm:$0xff] %v645
      %660 = vst [vmem:[#allocation2 + $0x1d8] sm:$0xff] %v646
      %661 = vst [vmem:[#allocation2 + $0x1e0] sm:$0xff] %v647
      %662 = vst [vmem:[#allocation2 + $0x1e8] sm:$0xff] %v648
      %663 = vst [vmem:[#allocation2 + $0x1f0] sm:$0xff] %v649
      %v664 = vld [vmem:[%s207] sm:$0xff]
      %v665 = vld [vmem:[%s207 + $0x8] sm:$0xff]
      %v666 = vld [vmem:[%s207 + $0x10] sm:$0xff]
      %v667 = vld [vmem:[%s207 + $0x18] sm:$0xff]
      %v668 = vld [vmem:[%s207 + $0x20] sm:$0xff]
      %v669 = vld [vmem:[%s207 + $0x28] sm:$0xff]
      %v670 = vld [vmem:[%s207 + $0x30] sm:$0xff]
      %v671 = vld [vmem:[%s207 + $0x38] sm:$0xff]
      %680 = vrot.lane.b32.xlu0 %v664, 28
      %v681 = vpop.permute.xlu0 %680
      %682 = vrot.lane.b32.xlu0 %v665, 28
      %v683 = vpop.permute.xlu0 %682
      %684 = vrot.lane.b32.xlu0 %v666, 28
      %v685 = vpop.permute.xlu0 %684
      %686 = vrot.lane.b32.xlu0 %v667, 28
      %v687 = vpop.permute.xlu0 %686
      %688 = vrot.lane.b32.xlu0 %v668, 28
      %v689 = vpop.permute.xlu0 %688
      %690 = vrot.lane.b32.xlu0 %v669, 28
      %v691 = vpop.permute.xlu0 %690
      %692 = vrot.lane.b32.xlu0 %v670, 28
      %v693 = vpop.permute.xlu0 %692
      %694 = vrot.lane.b32.xlu0 %v671, 28
      %v695 = vpop.permute.xlu0 %694
      %vm696 = vcmask 228352
      %v697 = vsel %vm696, %v681, %v683
      %v698 = vsel %vm696, %v683, %v685
      %v699 = vsel %vm696, %v685, %v687
      %v700 = vsel %vm696, %v687, %v689
      %v701 = vsel %vm696, %v689, %v691
      %v702 = vsel %vm696, %v691, %v693
      %v703 = vsel %vm696, %v693, %v695
      %711 = vst [vmem:[#allocation2 + $0x1f8] sm:$0xff] %v697
      %712 = vst [vmem:[#allocation2 + $0x200] sm:$0xff] %v698
      %713 = vst [vmem:[#allocation2 + $0x208] sm:$0xff] %v699
      %714 = vst [vmem:[#allocation2 + $0x210] sm:$0xff] %v700
      %715 = vst [vmem:[#allocation2 + $0x218] sm:$0xff] %v701
      %716 = vst [vmem:[#allocation2 + $0x220] sm:$0xff] %v702
      %717 = vst [vmem:[#allocation2 + $0x228] sm:$0xff] %v703
      %v718 = vld [vmem:[%s207] sm:$0xff]
      %v719 = vld [vmem:[%s207 + $0x8] sm:$0xff]
      %v720 = vld [vmem:[%s207 + $0x10] sm:$0xff]
      %v721 = vld [vmem:[%s207 + $0x18] sm:$0xff]
      %v722 = vld [vmem:[%s207 + $0x20] sm:$0xff]
      %v723 = vld [vmem:[%s207 + $0x28] sm:$0xff]
      %v724 = vld [vmem:[%s207 + $0x30] sm:$0xff]
      %v725 = vld [vmem:[%s207 + $0x38] sm:$0xff]
      %734 = vrot.lane.b32.xlu0 %v718, 27
      %v735 = vpop.permute.xlu0 %734
      %736 = vrot.lane.b32.xlu0 %v719, 27
      %v737 = vpop.permute.xlu0 %736
      %738 = vrot.lane.b32.xlu0 %v720, 27
      %v739 = vpop.permute.xlu0 %738
      %740 = vrot.lane.b32.xlu0 %v721, 27
      %v741 = vpop.permute.xlu0 %740
      %742 = vrot.lane.b32.xlu0 %v722, 27
      %v743 = vpop.permute.xlu0 %742
      %744 = vrot.lane.b32.xlu0 %v723, 27
      %v745 = vpop.permute.xlu0 %744
      %746 = vrot.lane.b32.xlu0 %v724, 27
      %v747 = vpop.permute.xlu0 %746
      %748 = vrot.lane.b32.xlu0 %v725, 27
      %v749 = vpop.permute.xlu0 %748
      %vm750 = vcmask 220160
      %v751 = vsel %vm750, %v735, %v737
      %v752 = vsel %vm750, %v737, %v739
      %v753 = vsel %vm750, %v739, %v741
      %v754 = vsel %vm750, %v741, %v743
      %v755 = vsel %vm750, %v743, %v745
      %v756 = vsel %vm750, %v745, %v747
      %v757 = vsel %vm750, %v747, %v749
      %765 = vst [vmem:[#allocation2 + $0x230] sm:$0xff] %v751
      %766 = vst [vmem:[#allocation2 + $0x238] sm:$0xff] %v752
      %767 = vst [vmem:[#allocation2 + $0x240] sm:$0xff] %v753
      %768 = vst [vmem:[#allocation2 + $0x248] sm:$0xff] %v754
      %769 = vst [vmem:[#allocation2 + $0x250] sm:$0xff] %v755
      %770 = vst [vmem:[#allocation2 + $0x258] sm:$0xff] %v756
      %771 = vst [vmem:[#allocation2 + $0x260] sm:$0xff] %v757
      %v772 = vld [vmem:[%s207] sm:$0xff]
      %v773 = vld [vmem:[%s207 + $0x8] sm:$0xff]
      %v774 = vld [vmem:[%s207 + $0x10] sm:$0xff]
      %v775 = vld [vmem:[%s207 + $0x18] sm:$0xff]
      %v776 = vld [vmem:[%s207 + $0x20] sm:$0xff]
      %v777 = vld [vmem:[%s207 + $0x28] sm:$0xff]
      %v778 = vld [vmem:[%s207 + $0x30] sm:$0xff]
      %v779 = vld [vmem:[%s207 + $0x38] sm:$0xff]
      %788 = vrot.lane.b32.xlu0 %v772, 26
      %v789 = vpop.permute.xlu0 %788
      %790 = vrot.lane.b32.xlu0 %v773, 26
      %v791 = vpop.permute.xlu0 %790
      %792 = vrot.lane.b32.xlu0 %v774, 26
      %v793 = vpop.permute.xlu0 %792
      %794 = vrot.lane.b32.xlu0 %v775, 26
      %v795 = vpop.permute.xlu0 %794
      %796 = vrot.lane.b32.xlu0 %v776, 26
      %v797 = vpop.permute.xlu0 %796
      %798 = vrot.lane.b32.xlu0 %v777, 26
      %v799 = vpop.permute.xlu0 %798
      %800 = vrot.lane.b32.xlu0 %v778, 26
      %v801 = vpop.permute.xlu0 %800
      %802 = vrot.lane.b32.xlu0 %v779, 26
      %v803 = vpop.permute.xlu0 %802
      %vm804 = vcmask 211968
      %v805 = vsel %vm804, %v789, %v791
      %v806 = vsel %vm804, %v791, %v793
      %v807 = vsel %vm804, %v793, %v795
      %v808 = vsel %vm804, %v795, %v797
      %v809 = vsel %vm804, %v797, %v799
      %v810 = vsel %vm804, %v799, %v801
      %v811 = vsel %vm804, %v801, %v803
      %819 = vst [vmem:[#allocation2 + $0x268] sm:$0xff] %v805
      %820 = vst [vmem:[#allocation2 + $0x270] sm:$0xff] %v806
      %821 = vst [vmem:[#allocation2 + $0x278] sm:$0xff] %v807
      %822 = vst [vmem:[#allocation2 + $0x280] sm:$0xff] %v808
      %823 = vst [vmem:[#allocation2 + $0x288] sm:$0xff] %v809
      %824 = vst [vmem:[#allocation2 + $0x290] sm:$0xff] %v810
      %825 = vst [vmem:[#allocation2 + $0x298] sm:$0xff] %v811
      %v826 = vld [vmem:[%s207] sm:$0xff]
      %v827 = vld [vmem:[%s207 + $0x8] sm:$0xff]
      %v828 = vld [vmem:[%s207 + $0x10] sm:$0xff]
      %v829 = vld [vmem:[%s207 + $0x18] sm:$0xff]
      %v830 = vld [vmem:[%s207 + $0x20] sm:$0xff]
      %v831 = vld [vmem:[%s207 + $0x28] sm:$0xff]
      %v832 = vld [vmem:[%s207 + $0x30] sm:$0xff]
      %v833 = vld [vmem:[%s207 + $0x38] sm:$0xff]
      %842 = vrot.lane.b32.xlu0 %v826, 18
      %v843 = vpop.permute.xlu0 %842
      %844 = vrot.lane.b32.xlu0 %v827, 18
      %v845 = vpop.permute.xlu0 %844
      %846 = vrot.lane.b32.xlu0 %v828, 18
      %v847 = vpop.permute.xlu0 %846
      %848 = vrot.lane.b32.xlu0 %v829, 18
      %v849 = vpop.permute.xlu0 %848
      %850 = vrot.lane.b32.xlu0 %v830, 18
      %v851 = vpop.permute.xlu0 %850
      %852 = vrot.lane.b32.xlu0 %v831, 18
      %v853 = vpop.permute.xlu0 %852
      %854 = vrot.lane.b32.xlu0 %v832, 18
      %v855 = vpop.permute.xlu0 %854
      %856 = vrot.lane.b32.xlu0 %v833, 18
      %v857 = vpop.permute.xlu0 %856
      %vm858 = vcmask 146432
      %v859 = vsel %vm858, %v843, %v845
      %v860 = vsel %vm858, %v845, %v847
      %v861 = vsel %vm858, %v847, %v849
      %v862 = vsel %vm858, %v849, %v851
      %v863 = vsel %vm858, %v851, %v853
      %v864 = vsel %vm858, %v853, %v855
      %v865 = vsel %vm858, %v855, %v857
      %873 = vst [vmem:[#allocation2 + $0x2a0] sm:$0xff] %v859
      %874 = vst [vmem:[#allocation2 + $0x2a8] sm:$0xff] %v860
      %875 = vst [vmem:[#allocation2 + $0x2b0] sm:$0xff] %v861
      %876 = vst [vmem:[#allocation2 + $0x2b8] sm:$0xff] %v862
      %877 = vst [vmem:[#allocation2 + $0x2c0] sm:$0xff] %v863
      %878 = vst [vmem:[#allocation2 + $0x2c8] sm:$0xff] %v864
      %879 = vst [vmem:[#allocation2 + $0x2d0] sm:$0xff] %v865
      %v880 = vld [vmem:[%s207] sm:$0xff]
      %v881 = vld [vmem:[%s207 + $0x8] sm:$0xff]
      %v882 = vld [vmem:[%s207 + $0x10] sm:$0xff]
      %v883 = vld [vmem:[%s207 + $0x18] sm:$0xff]
      %v884 = vld [vmem:[%s207 + $0x20] sm:$0xff]
      %v885 = vld [vmem:[%s207 + $0x28] sm:$0xff]
      %v886 = vld [vmem:[%s207 + $0x30] sm:$0xff]
      %v887 = vld [vmem:[%s207 + $0x38] sm:$0xff]
      %896 = vrot.lane.b32.xlu0 %v880, 17
      %v897 = vpop.permute.xlu0 %896
      %898 = vrot.lane.b32.xlu0 %v881, 17
      %v899 = vpop.permute.xlu0 %898
      %900 = vrot.lane.b32.xlu0 %v882, 17
      %v901 = vpop.permute.xlu0 %900
      %902 = vrot.lane.b32.xlu0 %v883, 17
      %v903 = vpop.permute.xlu0 %902
      %904 = vrot.lane.b32.xlu0 %v884, 17
      %v905 = vpop.permute.xlu0 %904
      %906 = vrot.lane.b32.xlu0 %v885, 17
      %v907 = vpop.permute.xlu0 %906
      %908 = vrot.lane.b32.xlu0 %v886, 17
      %v909 = vpop.permute.xlu0 %908
      %910 = vrot.lane.b32.xlu0 %v887, 17
      %v911 = vpop.permute.xlu0 %910
      %vm912 = vcmask 138240
      %v913 = vsel %vm912, %v897, %v899
      %v914 = vsel %vm912, %v899, %v901
      %v915 = vsel %vm912, %v901, %v903
      %v916 = vsel %vm912, %v903, %v905
      %v917 = vsel %vm912, %v905, %v907
      %v918 = vsel %vm912, %v907, %v909
      %v919 = vsel %vm912, %v909, %v911
      %927 = vst [vmem:[#allocation2 + $0x2d8] sm:$0xff] %v913
      %928 = vst [vmem:[#allocation2 + $0x2e0] sm:$0xff] %v914
      %929 = vst [vmem:[#allocation2 + $0x2e8] sm:$0xff] %v915
      %930 = vst [vmem:[#allocation2 + $0x2f0] sm:$0xff] %v916
      %931 = vst [vmem:[#allocation2 + $0x2f8] sm:$0xff] %v917
      %932 = vst [vmem:[#allocation2 + $0x300] sm:$0xff] %v918
      %933 = vst [vmem:[#allocation2 + $0x308] sm:$0xff] %v919
      %v934 = vld [vmem:[%s207] sm:$0xff]
      %v935 = vld [vmem:[%s207 + $0x8] sm:$0xff]
      %v936 = vld [vmem:[%s207 + $0x10] sm:$0xff]
      %v937 = vld [vmem:[%s207 + $0x18] sm:$0xff]
      %v938 = vld [vmem:[%s207 + $0x20] sm:$0xff]
      %v939 = vld [vmem:[%s207 + $0x28] sm:$0xff]
      %v940 = vld [vmem:[%s207 + $0x30] sm:$0xff]
      %v941 = vld [vmem:[%s207 + $0x38] sm:$0xff]
      %950 = vrot.lane.b32.xlu0 %v934, 16
      %v951 = vpop.permute.xlu0 %950
      %952 = vrot.lane.b32.xlu0 %v935, 16
      %v953 = vpop.permute.xlu0 %952
      %954 = vrot.lane.b32.xlu0 %v936, 16
      %v955 = vpop.permute.xlu0 %954
      %956 = vrot.lane.b32.xlu0 %v937, 16
      %v957 = vpop.permute.xlu0 %956
      %958 = vrot.lane.b32.xlu0 %v938, 16
      %v959 = vpop.permute.xlu0 %958
      %960 = vrot.lane.b32.xlu0 %v939, 16
      %v961 = vpop.permute.xlu0 %960
      %962 = vrot.lane.b32.xlu0 %v940, 16
      %v963 = vpop.permute.xlu0 %962
      %964 = vrot.lane.b32.xlu0 %v941, 16
      %v965 = vpop.permute.xlu0 %964
      %vm966 = vcmask 130048
      %v967 = vsel %vm966, %v951, %v953
      %v968 = vsel %vm966, %v953, %v955
      %v969 = vsel %vm966, %v955, %v957
      %v970 = vsel %vm966, %v957, %v959
      %v971 = vsel %vm966, %v959, %v961
      %v972 = vsel %vm966, %v961, %v963
      %v973 = vsel %vm966, %v963, %v965
      %981 = vst [vmem:[#allocation2 + $0x310] sm:$0xff] %v967
      %982 = vst [vmem:[#allocation2 + $0x318] sm:$0xff] %v968
      %983 = vst [vmem:[#allocation2 + $0x320] sm:$0xff] %v969
      %984 = vst [vmem:[#allocation2 + $0x328] sm:$0xff] %v970
      %985 = vst [vmem:[#allocation2 + $0x330] sm:$0xff] %v971
      %986 = vst [vmem:[#allocation2 + $0x338] sm:$0xff] %v972
      %987 = vst [vmem:[#allocation2 + $0x340] sm:$0xff] %v973
      %v988 = vld [vmem:[%s207] sm:$0xff]
      %v989 = vld [vmem:[%s207 + $0x8] sm:$0xff]
      %v990 = vld [vmem:[%s207 + $0x10] sm:$0xff]
      %v991 = vld [vmem:[%s207 + $0x18] sm:$0xff]
      %v992 = vld [vmem:[%s207 + $0x20] sm:$0xff]
      %v993 = vld [vmem:[%s207 + $0x28] sm:$0xff]
      %v994 = vld [vmem:[%s207 + $0x30] sm:$0xff]
      %v995 = vld [vmem:[%s207 + $0x38] sm:$0xff]
      %1004 = vrot.lane.b32.xlu0 %v988, 8
      %v1005 = vpop.permute.xlu0 %1004
      %1006 = vrot.lane.b32.xlu0 %v989, 8
      %v1007 = vpop.permute.xlu0 %1006
      %1008 = vrot.lane.b32.xlu0 %v990, 8
      %v1009 = vpop.permute.xlu0 %1008
      %1010 = vrot.lane.b32.xlu0 %v991, 8
      %v1011 = vpop.permute.xlu0 %1010
      %1012 = vrot.lane.b32.xlu0 %v992, 8
      %v1013 = vpop.permute.xlu0 %1012
      %1014 = vrot.lane.b32.xlu0 %v993, 8
      %v1015 = vpop.permute.xlu0 %1014
      %1016 = vrot.lane.b32.xlu0 %v994, 8
      %v1017 = vpop.permute.xlu0 %1016
      %1018 = vrot.lane.b32.xlu0 %v995, 8
      %v1019 = vpop.permute.xlu0 %1018
      %vm1020 = vcmask 64512
      %v1021 = vsel %vm1020, %v1005, %v1007
      %v1022 = vsel %vm1020, %v1007, %v1009
      %v1023 = vsel %vm1020, %v1009, %v1011
      %v1024 = vsel %vm1020, %v1011, %v1013
      %v1025 = vsel %vm1020, %v1013, %v1015
      %v1026 = vsel %vm1020, %v1015, %v1017
      %v1027 = vsel %vm1020, %v1017, %v1019
      %1035 = vst [vmem:[#allocation2 + $0x348] sm:$0xff] %v1021
      %1036 = vst [vmem:[#allocation2 + $0x350] sm:$0xff] %v1022
      %1037 = vst [vmem:[#allocation2 + $0x358] sm:$0xff] %v1023
      %1038 = vst [vmem:[#allocation2 + $0x360] sm:$0xff] %v1024
      %1039 = vst [vmem:[#allocation2 + $0x368] sm:$0xff] %v1025
      %1040 = vst [vmem:[#allocation2 + $0x370] sm:$0xff] %v1026
      %1041 = vst [vmem:[#allocation2 + $0x378] sm:$0xff] %v1027
      %v1042 = vld [vmem:[%s207] sm:$0xff]
      %v1043 = vld [vmem:[%s207 + $0x8] sm:$0xff]
      %v1044 = vld [vmem:[%s207 + $0x10] sm:$0xff]
      %v1045 = vld [vmem:[%s207 + $0x18] sm:$0xff]
      %v1046 = vld [vmem:[%s207 + $0x20] sm:$0xff]
      %v1047 = vld [vmem:[%s207 + $0x28] sm:$0xff]
      %v1048 = vld [vmem:[%s207 + $0x30] sm:$0xff]
      %v1049 = vld [vmem:[%s207 + $0x38] sm:$0xff]
      %1058 = vrot.lane.b32.xlu0 %v1042, 7
      %v1059 = vpop.permute.xlu0 %1058
      %1060 = vrot.lane.b32.xlu0 %v1043, 7
      %v1061 = vpop.permute.xlu0 %1060
      %1062 = vrot.lane.b32.xlu0 %v1044, 7
      %v1063 = vpop.permute.xlu0 %1062
      %1064 = vrot.lane.b32.xlu0 %v1045, 7
      %v1065 = vpop.permute.xlu0 %1064
      %1066 = vrot.lane.b32.xlu0 %v1046, 7
      %v1067 = vpop.permute.xlu0 %1066
      %1068 = vrot.lane.b32.xlu0 %v1047, 7
      %v1069 = vpop.permute.xlu0 %1068
      %1070 = vrot.lane.b32.xlu0 %v1048, 7
      %v1071 = vpop.permute.xlu0 %1070
      %1072 = vrot.lane.b32.xlu0 %v1049, 7
      %v1073 = vpop.permute.xlu0 %1072
      %vm1074 = vcmask 56320
      %v1075 = vsel %vm1074, %v1059, %v1061
      %v1076 = vsel %vm1074, %v1061, %v1063
      %v1077 = vsel %vm1074, %v1063, %v1065
      %v1078 = vsel %vm1074, %v1065, %v1067
      %v1079 = vsel %vm1074, %v1067, %v1069
      %v1080 = vsel %vm1074, %v1069, %v1071
      %v1081 = vsel %vm1074, %v1071, %v1073
      %1089 = vst [vmem:[#allocation2 + $0x380] sm:$0xff] %v1075
      %1090 = vst [vmem:[#allocation2 + $0x388] sm:$0xff] %v1076
      %1091 = vst [vmem:[#allocation2 + $0x390] sm:$0xff] %v1077
      %1092 = vst [vmem:[#allocation2 + $0x398] sm:$0xff] %v1078
      %1093 = vst [vmem:[#allocation2 + $0x3a0] sm:$0xff] %v1079
      %1094 = vst [vmem:[#allocation2 + $0x3a8] sm:$0xff] %v1080
      %1095 = vst [vmem:[#allocation2 + $0x3b0] sm:$0xff] %v1081
      %v1096 = vld [vmem:[%s207] sm:$0xff]
      %v1097 = vld [vmem:[%s207 + $0x8] sm:$0xff]
      %v1098 = vld [vmem:[%s207 + $0x10] sm:$0xff]
      %v1099 = vld [vmem:[%s207 + $0x18] sm:$0xff]
      %v1100 = vld [vmem:[%s207 + $0x20] sm:$0xff]
      %v1101 = vld [vmem:[%s207 + $0x28] sm:$0xff]
      %v1102 = vld [vmem:[%s207 + $0x30] sm:$0xff]
      %v1103 = vld [vmem:[%s207 + $0x38] sm:$0xff]
      %1112 = vrot.lane.b32.xlu0 %v1096, 6
      %v1113 = vpop.permute.xlu0 %1112
      %1114 = vrot.lane.b32.xlu0 %v1097, 6
      %v1115 = vpop.permute.xlu0 %1114
      %1116 = vrot.lane.b32.xlu0 %v1098, 6
      %v1117 = vpop.permute.xlu0 %1116
      %1118 = vrot.lane.b32.xlu0 %v1099, 6
      %v1119 = vpop.permute.xlu0 %1118
      %1120 = vrot.lane.b32.xlu0 %v1100, 6
      %v1121 = vpop.permute.xlu0 %1120
      %1122 = vrot.lane.b32.xlu0 %v1101, 6
      %v1123 = vpop.permute.xlu0 %1122
      %1124 = vrot.lane.b32.xlu0 %v1102, 6
      %v1125 = vpop.permute.xlu0 %1124
      %1126 = vrot.lane.b32.xlu0 %v1103, 6
      %v1127 = vpop.permute.xlu0 %1126
      %vm1128 = vcmask 48128
      %v1129 = vsel %vm1128, %v1113, %v1115
      %v1130 = vsel %vm1128, %v1115, %v1117
      %v1131 = vsel %vm1128, %v1117, %v1119
      %v1132 = vsel %vm1128, %v1119, %v1121
      %v1133 = vsel %vm1128, %v1121, %v1123
      %v1134 = vsel %vm1128, %v1123, %v1125
      %v1135 = vsel %vm1128, %v1125, %v1127
      %1143 = vst [vmem:[#allocation2 + $0x3b8] sm:$0xff] %v1129
      %1144 = vst [vmem:[#allocation2 + $0x3c0] sm:$0xff] %v1130
      %1145 = vst [vmem:[#allocation2 + $0x3c8] sm:$0xff] %v1131
      %1146 = vst [vmem:[#allocation2 + $0x3d0] sm:$0xff] %v1132
      %1147 = vst [vmem:[#allocation2 + $0x3d8] sm:$0xff] %v1133
      %1148 = vst [vmem:[#allocation2 + $0x3e0] sm:$0xff] %v1134
      %1149 = vst [vmem:[#allocation2 + $0x3e8] sm:$0xff] %v1135
      %v1150 = vld [vmem:[%s207 + $0x8] sm:$0xff]
      %v1151 = vld [vmem:[%s207 + $0x10] sm:$0xff]
      %v1152 = vld [vmem:[%s207 + $0x18] sm:$0xff]
      %v1153 = vld [vmem:[%s207 + $0x20] sm:$0xff]
      %v1154 = vld [vmem:[%s207 + $0x28] sm:$0xff]
      %v1155 = vld [vmem:[%s207 + $0x30] sm:$0xff]
      %v1156 = vld [vmem:[%s207 + $0x38] sm:$0xff]
      %v1157 = vld [vmem:[%s207 + $0x40] sm:$0xff]
      %1166 = vrot.lane.b32.xlu0 %v1150, 56
      %v1167 = vpop.permute.xlu0 %1166
      %1168 = vrot.lane.b32.xlu0 %v1151, 56
      %v1169 = vpop.permute.xlu0 %1168
      %1170 = vrot.lane.b32.xlu0 %v1152, 56
      %v1171 = vpop.permute.xlu0 %1170
      %1172 = vrot.lane.b32.xlu0 %v1153, 56
      %v1173 = vpop.permute.xlu0 %1172
      %1174 = vrot.lane.b32.xlu0 %v1154, 56
      %v1175 = vpop.permute.xlu0 %1174
      %1176 = vrot.lane.b32.xlu0 %v1155, 56
      %v1177 = vpop.permute.xlu0 %1176
      %1178 = vrot.lane.b32.xlu0 %v1156, 56
      %v1179 = vpop.permute.xlu0 %1178
      %1180 = vrot.lane.b32.xlu0 %v1157, 56
      %v1181 = vpop.permute.xlu0 %1180
      %vm1182 = vcmask 457728
      %v1183 = vsel %vm1182, %v1167, %v1169
      %v1184 = vsel %vm1182, %v1169, %v1171
      %v1185 = vsel %vm1182, %v1171, %v1173
      %v1186 = vsel %vm1182, %v1173, %v1175
      %v1187 = vsel %vm1182, %v1175, %v1177
      %v1188 = vsel %vm1182, %v1177, %v1179
      %v1189 = vsel %vm1182, %v1179, %v1181
      %1197 = vst [vmem:[#allocation2 + $0x3f0] sm:$0xff] %v1183
      %1198 = vst [vmem:[#allocation2 + $0x3f8] sm:$0xff] %v1184
      %1199 = vst [vmem:[#allocation2 + $0x400] sm:$0xff] %v1185
      %1200 = vst [vmem:[#allocation2 + $0x408] sm:$0xff] %v1186
      %1201 = vst [vmem:[#allocation2 + $0x410] sm:$0xff] %v1187
      %1202 = vst [vmem:[#allocation2 + $0x418] sm:$0xff] %v1188
      %1203 = vst [vmem:[#allocation2 + $0x420] sm:$0xff] %v1189
      %v1204 = vld [vmem:[%s207 + $0x8] sm:$0xff]
      %v1205 = vld [vmem:[%s207 + $0x10] sm:$0xff]
      %v1206 = vld [vmem:[%s207 + $0x18] sm:$0xff]
      %v1207 = vld [vmem:[%s207 + $0x20] sm:$0xff]
      %v1208 = vld [vmem:[%s207 + $0x28] sm:$0xff]
      %v1209 = vld [vmem:[%s207 + $0x30] sm:$0xff]
      %v1210 = vld [vmem:[%s207 + $0x38] sm:$0xff]
      %v1211 = vld [vmem:[%s207 + $0x40] sm:$0xff]
      %1220 = vrot.lane.b32.xlu0 %v1204, 55
      %v1221 = vpop.permute.xlu0 %1220
      %1222 = vrot.lane.b32.xlu0 %v1205, 55
      %v1223 = vpop.permute.xlu0 %1222
      %1224 = vrot.lane.b32.xlu0 %v1206, 55
      %v1225 = vpop.permute.xlu0 %1224
      %1226 = vrot.lane.b32.xlu0 %v1207, 55
      %v1227 = vpop.permute.xlu0 %1226
      %1228 = vrot.lane.b32.xlu0 %v1208, 55
      %v1229 = vpop.permute.xlu0 %1228
      %1230 = vrot.lane.b32.xlu0 %v1209, 55
      %v1231 = vpop.permute.xlu0 %1230
      %1232 = vrot.lane.b32.xlu0 %v1210, 55
      %v1233 = vpop.permute.xlu0 %1232
      %1234 = vrot.lane.b32.xlu0 %v1211, 55
      %v1235 = vpop.permute.xlu0 %1234
      %vm1236 = vcmask 449536
      %v1237 = vsel %vm1236, %v1221, %v1223
      %v1238 = vsel %vm1236, %v1223, %v1225
      %v1239 = vsel %vm1236, %v1225, %v1227
      %v1240 = vsel %vm1236, %v1227, %v1229
      %v1241 = vsel %vm1236, %v1229, %v1231
      %v1242 = vsel %vm1236, %v1231, %v1233
      %v1243 = vsel %vm1236, %v1233, %v1235
      %1251 = vst [vmem:[#allocation2 + $0x428] sm:$0xff] %v1237
      %1252 = vst [vmem:[#allocation2 + $0x430] sm:$0xff] %v1238
      %1253 = vst [vmem:[#allocation2 + $0x438] sm:$0xff] %v1239
      %1254 = vst [vmem:[#allocation2 + $0x440] sm:$0xff] %v1240
      %1255 = vst [vmem:[#allocation2 + $0x448] sm:$0xff] %v1241
      %1256 = vst [vmem:[#allocation2 + $0x450] sm:$0xff] %v1242
      %1257 = vst [vmem:[#allocation2 + $0x458] sm:$0xff] %v1243
      %v1258 = vld [vmem:[%s207 + $0x8] sm:$0xff]
      %v1259 = vld [vmem:[%s207 + $0x10] sm:$0xff]
      %v1260 = vld [vmem:[%s207 + $0x18] sm:$0xff]
      %v1261 = vld [vmem:[%s207 + $0x20] sm:$0xff]
      %v1262 = vld [vmem:[%s207 + $0x28] sm:$0xff]
      %v1263 = vld [vmem:[%s207 + $0x30] sm:$0xff]
      %v1264 = vld [vmem:[%s207 + $0x38] sm:$0xff]
      %v1265 = vld [vmem:[%s207 + $0x40] sm:$0xff]
      %1274 = vrot.lane.b32.xlu0 %v1258, 54
      %v1275 = vpop.permute.xlu0 %1274
      %1276 = vrot.lane.b32.xlu0 %v1259, 54
      %v1277 = vpop.permute.xlu0 %1276
      %1278 = vrot.lane.b32.xlu0 %v1260, 54
      %v1279 = vpop.permute.xlu0 %1278
      %1280 = vrot.lane.b32.xlu0 %v1261, 54
      %v1281 = vpop.permute.xlu0 %1280
      %1282 = vrot.lane.b32.xlu0 %v1262, 54
      %v1283 = vpop.permute.xlu0 %1282
      %1284 = vrot.lane.b32.xlu0 %v1263, 54
      %v1285 = vpop.permute.xlu0 %1284
      %1286 = vrot.lane.b32.xlu0 %v1264, 54
      %v1287 = vpop.permute.xlu0 %1286
      %1288 = vrot.lane.b32.xlu0 %v1265, 54
      %v1289 = vpop.permute.xlu0 %1288
      %vm1290 = vcmask 441344
      %v1291 = vsel %vm1290, %v1275, %v1277
      %v1292 = vsel %vm1290, %v1277, %v1279
      %v1293 = vsel %vm1290, %v1279, %v1281
      %v1294 = vsel %vm1290, %v1281, %v1283
      %v1295 = vsel %vm1290, %v1283, %v1285
      %v1296 = vsel %vm1290, %v1285, %v1287
      %v1297 = vsel %vm1290, %v1287, %v1289
      %1305 = vst [vmem:[#allocation2 + $0x460] sm:$0xff] %v1291
      %1306 = vst [vmem:[#allocation2 + $0x468] sm:$0xff] %v1292
      %1307 = vst [vmem:[#allocation2 + $0x470] sm:$0xff] %v1293
      %1308 = vst [vmem:[#allocation2 + $0x478] sm:$0xff] %v1294
      %1309 = vst [vmem:[#allocation2 + $0x480] sm:$0xff] %v1295
      %1310 = vst [vmem:[#allocation2 + $0x488] sm:$0xff] %v1296
      %1311 = vst [vmem:[#allocation2 + $0x490] sm:$0xff] %v1297
      %v1312 = vld [vmem:[%s207 + $0x8] sm:$0xff]
      %v1313 = vld [vmem:[%s207 + $0x10] sm:$0xff]
      %v1314 = vld [vmem:[%s207 + $0x18] sm:$0xff]
      %v1315 = vld [vmem:[%s207 + $0x20] sm:$0xff]
      %v1316 = vld [vmem:[%s207 + $0x28] sm:$0xff]
      %v1317 = vld [vmem:[%s207 + $0x30] sm:$0xff]
      %v1318 = vld [vmem:[%s207 + $0x38] sm:$0xff]
      %v1319 = vld [vmem:[%s207 + $0x40] sm:$0xff]
      %1328 = vrot.lane.b32.xlu0 %v1312, 46
      %v1329 = vpop.permute.xlu0 %1328
      %1330 = vrot.lane.b32.xlu0 %v1313, 46
      %v1331 = vpop.permute.xlu0 %1330
      %1332 = vrot.lane.b32.xlu0 %v1314, 46
      %v1333 = vpop.permute.xlu0 %1332
      %1334 = vrot.lane.b32.xlu0 %v1315, 46
      %v1335 = vpop.permute.xlu0 %1334
      %1336 = vrot.lane.b32.xlu0 %v1316, 46
      %v1337 = vpop.permute.xlu0 %1336
      %1338 = vrot.lane.b32.xlu0 %v1317, 46
      %v1339 = vpop.permute.xlu0 %1338
      %1340 = vrot.lane.b32.xlu0 %v1318, 46
      %v1341 = vpop.permute.xlu0 %1340
      %1342 = vrot.lane.b32.xlu0 %v1319, 46
      %v1343 = vpop.permute.xlu0 %1342
      %vm1344 = vcmask 375808
      %v1345 = vsel %vm1344, %v1329, %v1331
      %v1346 = vsel %vm1344, %v1331, %v1333
      %v1347 = vsel %vm1344, %v1333, %v1335
      %v1348 = vsel %vm1344, %v1335, %v1337
      %v1349 = vsel %vm1344, %v1337, %v1339
      %v1350 = vsel %vm1344, %v1339, %v1341
      %v1351 = vsel %vm1344, %v1341, %v1343
      %1359 = vst [vmem:[#allocation2 + $0x498] sm:$0xff] %v1345
      %1360 = vst [vmem:[#allocation2 + $0x4a0] sm:$0xff] %v1346
      %1361 = vst [vmem:[#allocation2 + $0x4a8] sm:$0xff] %v1347
      %1362 = vst [vmem:[#allocation2 + $0x4b0] sm:$0xff] %v1348
      %1363 = vst [vmem:[#allocation2 + $0x4b8] sm:$0xff] %v1349
      %1364 = vst [vmem:[#allocation2 + $0x4c0] sm:$0xff] %v1350
      %1365 = vst [vmem:[#allocation2 + $0x4c8] sm:$0xff] %v1351
      %v1366 = vld [vmem:[%s207 + $0x8] sm:$0xff]
      %v1367 = vld [vmem:[%s207 + $0x10] sm:$0xff]
      %v1368 = vld [vmem:[%s207 + $0x18] sm:$0xff]
      %v1369 = vld [vmem:[%s207 + $0x20] sm:$0xff]
      %v1370 = vld [vmem:[%s207 + $0x28] sm:$0xff]
      %v1371 = vld [vmem:[%s207 + $0x30] sm:$0xff]
      %v1372 = vld [vmem:[%s207 + $0x38] sm:$0xff]
      %v1373 = vld [vmem:[%s207 + $0x40] sm:$0xff]
      %1382 = vrot.lane.b32.xlu0 %v1366, 45
      %v1383 = vpop.permute.xlu0 %1382
      %1384 = vrot.lane.b32.xlu0 %v1367, 45
      %v1385 = vpop.permute.xlu0 %1384
      %1386 = vrot.lane.b32.xlu0 %v1368, 45
      %v1387 = vpop.permute.xlu0 %1386
      %1388 = vrot.lane.b32.xlu0 %v1369, 45
      %v1389 = vpop.permute.xlu0 %1388
      %1390 = vrot.lane.b32.xlu0 %v1370, 45
      %v1391 = vpop.permute.xlu0 %1390
      %1392 = vrot.lane.b32.xlu0 %v1371, 45
      %v1393 = vpop.permute.xlu0 %1392
      %1394 = vrot.lane.b32.xlu0 %v1372, 45
      %v1395 = vpop.permute.xlu0 %1394
      %1396 = vrot.lane.b32.xlu0 %v1373, 45
      %v1397 = vpop.permute.xlu0 %1396
      %vm1398 = vcmask 367616
      %v1399 = vsel %vm1398, %v1383, %v1385
      %v1400 = vsel %vm1398, %v1385, %v1387
      %v1401 = vsel %vm1398, %v1387, %v1389
      %v1402 = vsel %vm1398, %v1389, %v1391
      %v1403 = vsel %vm1398, %v1391, %v1393
      %v1404 = vsel %vm1398, %v1393, %v1395
      %v1405 = vsel %vm1398, %v1395, %v1397
      %1413 = vst [vmem:[#allocation2 + $0x4d0] sm:$0xff] %v1399
      %1414 = vst [vmem:[#allocation2 + $0x4d8] sm:$0xff] %v1400
      %1415 = vst [vmem:[#allocation2 + $0x4e0] sm:$0xff] %v1401
      %1416 = vst [vmem:[#allocation2 + $0x4e8] sm:$0xff] %v1402
      %1417 = vst [vmem:[#allocation2 + $0x4f0] sm:$0xff] %v1403
      %1418 = vst [vmem:[#allocation2 + $0x4f8] sm:$0xff] %v1404
      %1419 = vst [vmem:[#allocation2 + $0x500] sm:$0xff] %v1405
      %v1420 = vld [vmem:[%s207 + $0x8] sm:$0xff]
      %v1421 = vld [vmem:[%s207 + $0x10] sm:$0xff]
      %v1422 = vld [vmem:[%s207 + $0x18] sm:$0xff]
      %v1423 = vld [vmem:[%s207 + $0x20] sm:$0xff]
      %v1424 = vld [vmem:[%s207 + $0x28] sm:$0xff]
      %v1425 = vld [vmem:[%s207 + $0x30] sm:$0xff]
      %v1426 = vld [vmem:[%s207 + $0x38] sm:$0xff]
      %v1427 = vld [vmem:[%s207 + $0x40] sm:$0xff]
      %1436 = vrot.lane.b32.xlu0 %v1420, 44
      %v1437 = vpop.permute.xlu0 %1436
      %1438 = vrot.lane.b32.xlu0 %v1421, 44
      %v1439 = vpop.permute.xlu0 %1438
      %1440 = vrot.lane.b32.xlu0 %v1422, 44
      %v1441 = vpop.permute.xlu0 %1440
      %1442 = vrot.lane.b32.xlu0 %v1423, 44
      %v1443 = vpop.permute.xlu0 %1442
      %1444 = vrot.lane.b32.xlu0 %v1424, 44
      %v1445 = vpop.permute.xlu0 %1444
      %1446 = vrot.lane.b32.xlu0 %v1425, 44
      %v1447 = vpop.permute.xlu0 %1446
      %1448 = vrot.lane.b32.xlu0 %v1426, 44
      %v1449 = vpop.permute.xlu0 %1448
      %1450 = vrot.lane.b32.xlu0 %v1427, 44
      %v1451 = vpop.permute.xlu0 %1450
      %vm1452 = vcmask 359424
      %v1453 = vsel %vm1452, %v1437, %v1439
      %v1454 = vsel %vm1452, %v1439, %v1441
      %v1455 = vsel %vm1452, %v1441, %v1443
      %v1456 = vsel %vm1452, %v1443, %v1445
      %v1457 = vsel %vm1452, %v1445, %v1447
      %v1458 = vsel %vm1452, %v1447, %v1449
      %v1459 = vsel %vm1452, %v1449, %v1451
      %1467 = vst [vmem:[#allocation2 + $0x508] sm:$0xff] %v1453
      %1468 = vst [vmem:[#allocation2 + $0x510] sm:$0xff] %v1454
      %1469 = vst [vmem:[#allocation2 + $0x518] sm:$0xff] %v1455
      %1470 = vst [vmem:[#allocation2 + $0x520] sm:$0xff] %v1456
      %1471 = vst [vmem:[#allocation2 + $0x528] sm:$0xff] %v1457
      %1472 = vst [vmem:[#allocation2 + $0x530] sm:$0xff] %v1458
      %1473 = vst [vmem:[#allocation2 + $0x538] sm:$0xff] %v1459
      %v1474 = vld [vmem:[%s207 + $0x8] sm:$0xff]
      %v1475 = vld [vmem:[%s207 + $0x10] sm:$0xff]
      %v1476 = vld [vmem:[%s207 + $0x18] sm:$0xff]
      %v1477 = vld [vmem:[%s207 + $0x20] sm:$0xff]
      %v1478 = vld [vmem:[%s207 + $0x28] sm:$0xff]
      %v1479 = vld [vmem:[%s207 + $0x30] sm:$0xff]
      %v1480 = vld [vmem:[%s207 + $0x38] sm:$0xff]
      %v1481 = vld [vmem:[%s207 + $0x40] sm:$0xff]
      %1490 = vrot.lane.b32.xlu0 %v1474, 36
      %v1491 = vpop.permute.xlu0 %1490
      %1492 = vrot.lane.b32.xlu0 %v1475, 36
      %v1493 = vpop.permute.xlu0 %1492
      %1494 = vrot.lane.b32.xlu0 %v1476, 36
      %v1495 = vpop.permute.xlu0 %1494
      %1496 = vrot.lane.b32.xlu0 %v1477, 36
      %v1497 = vpop.permute.xlu0 %1496
      %1498 = vrot.lane.b32.xlu0 %v1478, 36
      %v1499 = vpop.permute.xlu0 %1498
      %1500 = vrot.lane.b32.xlu0 %v1479, 36
      %v1501 = vpop.permute.xlu0 %1500
      %1502 = vrot.lane.b32.xlu0 %v1480, 36
      %v1503 = vpop.permute.xlu0 %1502
      %1504 = vrot.lane.b32.xlu0 %v1481, 36
      %v1505 = vpop.permute.xlu0 %1504
      %vm1506 = vcmask 293888
      %v1507 = vsel %vm1506, %v1491, %v1493
      %v1508 = vsel %vm1506, %v1493, %v1495
      %v1509 = vsel %vm1506, %v1495, %v1497
      %v1510 = vsel %vm1506, %v1497, %v1499
      %v1511 = vsel %vm1506, %v1499, %v1501
      %v1512 = vsel %vm1506, %v1501, %v1503
      %v1513 = vsel %vm1506, %v1503, %v1505
      %1521 = vst [vmem:[#allocation2 + $0x540] sm:$0xff] %v1507
      %1522 = vst [vmem:[#allocation2 + $0x548] sm:$0xff] %v1508
      %1523 = vst [vmem:[#allocation2 + $0x550] sm:$0xff] %v1509
      %1524 = vst [vmem:[#allocation2 + $0x558] sm:$0xff] %v1510
      %1525 = vst [vmem:[#allocation2 + $0x560] sm:$0xff] %v1511
      %1526 = vst [vmem:[#allocation2 + $0x568] sm:$0xff] %v1512
      %1527 = vst [vmem:[#allocation2 + $0x570] sm:$0xff] %v1513
      %v1528 = vld [vmem:[%s207 + $0x8] sm:$0xff]
      %v1529 = vld [vmem:[%s207 + $0x10] sm:$0xff]
      %v1530 = vld [vmem:[%s207 + $0x18] sm:$0xff]
      %v1531 = vld [vmem:[%s207 + $0x20] sm:$0xff]
      %v1532 = vld [vmem:[%s207 + $0x28] sm:$0xff]
      %v1533 = vld [vmem:[%s207 + $0x30] sm:$0xff]
      %v1534 = vld [vmem:[%s207 + $0x38] sm:$0xff]
      %v1535 = vld [vmem:[%s207 + $0x40] sm:$0xff]
      %1544 = vrot.lane.b32.xlu0 %v1528, 35
      %v1545 = vpop.permute.xlu0 %1544
      %1546 = vrot.lane.b32.xlu0 %v1529, 35
      %v1547 = vpop.permute.xlu0 %1546
      %1548 = vrot.lane.b32.xlu0 %v1530, 35
      %v1549 = vpop.permute.xlu0 %1548
      %1550 = vrot.lane.b32.xlu0 %v1531, 35
      %v1551 = vpop.permute.xlu0 %1550
      %1552 = vrot.lane.b32.xlu0 %v1532, 35
      %v1553 = vpop.permute.xlu0 %1552
      %1554 = vrot.lane.b32.xlu0 %v1533, 35
      %v1555 = vpop.permute.xlu0 %1554
      %1556 = vrot.lane.b32.xlu0 %v1534, 35
      %v1557 = vpop.permute.xlu0 %1556
      %1558 = vrot.lane.b32.xlu0 %v1535, 35
      %v1559 = vpop.permute.xlu0 %1558
      %vm1560 = vcmask 285696
      %v1561 = vsel %vm1560, %v1545, %v1547
      %v1562 = vsel %vm1560, %v1547, %v1549
      %v1563 = vsel %vm1560, %v1549, %v1551
      %v1564 = vsel %vm1560, %v1551, %v1553
      %v1565 = vsel %vm1560, %v1553, %v1555
      %v1566 = vsel %vm1560, %v1555, %v1557
      %v1567 = vsel %vm1560, %v1557, %v1559
      %1575 = vst [vmem:[#allocation2 + $0x578] sm:$0xff] %v1561
      %1576 = vst [vmem:[#allocation2 + $0x580] sm:$0xff] %v1562
      %1577 = vst [vmem:[#allocation2 + $0x588] sm:$0xff] %v1563
      %1578 = vst [vmem:[#allocation2 + $0x590] sm:$0xff] %v1564
      %1579 = vst [vmem:[#allocation2 + $0x598] sm:$0xff] %v1565
      %1580 = vst [vmem:[#allocation2 + $0x5a0] sm:$0xff] %v1566
      %1581 = vst [vmem:[#allocation2 + $0x5a8] sm:$0xff] %v1567
      %v1582 = vld [vmem:[%s207 + $0x8] sm:$0xff]
      %v1583 = vld [vmem:[%s207 + $0x10] sm:$0xff]
      %v1584 = vld [vmem:[%s207 + $0x18] sm:$0xff]
      %v1585 = vld [vmem:[%s207 + $0x20] sm:$0xff]
      %v1586 = vld [vmem:[%s207 + $0x28] sm:$0xff]
      %v1587 = vld [vmem:[%s207 + $0x30] sm:$0xff]
      %v1588 = vld [vmem:[%s207 + $0x38] sm:$0xff]
      %v1589 = vld [vmem:[%s207 + $0x40] sm:$0xff]
      %1598 = vrot.lane.b32.xlu0 %v1582, 34
      %v1599 = vpop.permute.xlu0 %1598
      %1600 = vrot.lane.b32.xlu0 %v1583, 34
      %v1601 = vpop.permute.xlu0 %1600
      %1602 = vrot.lane.b32.xlu0 %v1584, 34
      %v1603 = vpop.permute.xlu0 %1602
      %1604 = vrot.lane.b32.xlu0 %v1585, 34
      %v1605 = vpop.permute.xlu0 %1604
      %1606 = vrot.lane.b32.xlu0 %v1586, 34
      %v1607 = vpop.permute.xlu0 %1606
      %1608 = vrot.lane.b32.xlu0 %v1587, 34
      %v1609 = vpop.permute.xlu0 %1608
      %1610 = vrot.lane.b32.xlu0 %v1588, 34
      %v1611 = vpop.permute.xlu0 %1610
      %1612 = vrot.lane.b32.xlu0 %v1589, 34
      %v1613 = vpop.permute.xlu0 %1612
      %vm1614 = vcmask 277504
      %v1615 = vsel %vm1614, %v1599, %v1601
      %v1616 = vsel %vm1614, %v1601, %v1603
      %v1617 = vsel %vm1614, %v1603, %v1605
      %v1618 = vsel %vm1614, %v1605, %v1607
      %v1619 = vsel %vm1614, %v1607, %v1609
      %v1620 = vsel %vm1614, %v1609, %v1611
      %v1621 = vsel %vm1614, %v1611, %v1613
      %1629 = vst [vmem:[#allocation2 + $0x5b0] sm:$0xff] %v1615
      %1630 = vst [vmem:[#allocation2 + $0x5b8] sm:$0xff] %v1616
      %1631 = vst [vmem:[#allocation2 + $0x5c0] sm:$0xff] %v1617
      %1632 = vst [vmem:[#allocation2 + $0x5c8] sm:$0xff] %v1618
      %1633 = vst [vmem:[#allocation2 + $0x5d0] sm:$0xff] %v1619
      %1634 = vst [vmem:[#allocation2 + $0x5d8] sm:$0xff] %v1620
      %1635 = vst [vmem:[#allocation2 + $0x5e0] sm:$0xff] %v1621
      %v1636 = vld [vmem:[#allocation2] sm:$0xff]
      %v1637 = vld [vmem:[#allocation2 + $0x8] sm:$0xff]
      %v1638 = vld [vmem:[#allocation2 + $0x10] sm:$0xff]
      %v1639 = vld [vmem:[#allocation2 + $0x18] sm:$0xff]
      %v1640 = vld [vmem:[#allocation2 + $0x20] sm:$0xff]
      %v1641 = vld [vmem:[#allocation2 + $0x28] sm:$0xff]
      %v1642 = vld [vmem:[#allocation2 + $0x30] sm:$0xff]
      %v1643 = vld [vmem:[#allocation2 + $0x38] sm:$0xff]
      %v1644 = vld [vmem:[#allocation2 + $0x40] sm:$0xff]
      %v1645 = vld [vmem:[#allocation2 + $0x48] sm:$0xff]
      %v1646 = vld [vmem:[#allocation2 + $0x50] sm:$0xff]
      %v1647 = vld [vmem:[#allocation2 + $0x58] sm:$0xff]
      %v1648 = vld [vmem:[#allocation2 + $0x60] sm:$0xff]
      %v1649 = vld [vmem:[#allocation2 + $0x68] sm:$0xff]
      %v1650 = vld [vmem:[#allocation2 + $0x70] sm:$0xff]
      %v1651 = vld [vmem:[#allocation2 + $0x78] sm:$0xff]
      %v1652 = vld [vmem:[#allocation2 + $0x80] sm:$0xff]
      %v1653 = vld [vmem:[#allocation2 + $0x88] sm:$0xff]
      %v1654 = vld [vmem:[#allocation2 + $0x90] sm:$0xff]
      %v1655 = vld [vmem:[#allocation2 + $0x98] sm:$0xff]
      %v1656 = vld [vmem:[#allocation2 + $0xa0] sm:$0xff]
      %v1657 = vld [vmem:[#allocation2 + $0xa8] sm:$0xff]
      %v1658 = vld [vmem:[#allocation2 + $0xb0] sm:$0xff]
      %v1659 = vld [vmem:[#allocation2 + $0xb8] sm:$0xff]
      %v1660 = vld [vmem:[#allocation2 + $0xc0] sm:$0xff]
      %v1661 = vld [vmem:[#allocation2 + $0xc8] sm:$0xff]
      %v1662 = vld [vmem:[#allocation2 + $0xd0] sm:$0xff]
      %v1663 = vld [vmem:[#allocation2 + $0xd8] sm:$0xff]
      %v1664 = vld [vmem:[#allocation2 + $0xe0] sm:$0xff]
      %v1665 = vld [vmem:[#allocation2 + $0xe8] sm:$0xff]
      %v1666 = vld [vmem:[#allocation2 + $0xf0] sm:$0xff]
      %v1667 = vld [vmem:[#allocation2 + $0xf8] sm:$0xff]
      %v1668 = vld [vmem:[#allocation2 + $0x100] sm:$0xff]
      %v1669 = vld [vmem:[#allocation2 + $0x108] sm:$0xff]
      %v1670 = vld [vmem:[#allocation2 + $0x110] sm:$0xff]
      %v1671 = vld [vmem:[#allocation2 + $0x118] sm:$0xff]
      %v1672 = vld [vmem:[#allocation2 + $0x120] sm:$0xff]
      %v1673 = vld [vmem:[#allocation2 + $0x128] sm:$0xff]
      %v1674 = vld [vmem:[#allocation2 + $0x130] sm:$0xff]
      %v1675 = vld [vmem:[#allocation2 + $0x138] sm:$0xff]
      %v1676 = vld [vmem:[#allocation2 + $0x140] sm:$0xff]
      %v1677 = vld [vmem:[#allocation2 + $0x148] sm:$0xff]
      %v1678 = vld [vmem:[#allocation2 + $0x150] sm:$0xff]
      %v1679 = vld [vmem:[#allocation2 + $0x158] sm:$0xff]
      %v1680 = vld [vmem:[#allocation2 + $0x160] sm:$0xff]
      %v1681 = vld [vmem:[#allocation2 + $0x168] sm:$0xff]
      %v1682 = vld [vmem:[#allocation2 + $0x170] sm:$0xff]
      %v1683 = vld [vmem:[#allocation2 + $0x178] sm:$0xff]
      %v1684 = vld [vmem:[#allocation2 + $0x180] sm:$0xff]
      %v1685 = vld [vmem:[#allocation2 + $0x188] sm:$0xff]
      %v1686 = vld [vmem:[#allocation2 + $0x190] sm:$0xff]
      %v1687 = vld [vmem:[#allocation2 + $0x198] sm:$0xff]
      %v1688 = vld [vmem:[#allocation2 + $0x1a0] sm:$0xff]
      %v1689 = vld [vmem:[#allocation2 + $0x1a8] sm:$0xff]
      %v1690 = vld [vmem:[#allocation2 + $0x1b0] sm:$0xff]
      %v1691 = vld [vmem:[#allocation2 + $0x1b8] sm:$0xff]
      %v1692 = vld [vmem:[#allocation2 + $0x1c0] sm:$0xff]
      %v1693 = vld [vmem:[#allocation2 + $0x1c8] sm:$0xff]
      %v1694 = vld [vmem:[#allocation2 + $0x1d0] sm:$0xff]
      %v1695 = vld [vmem:[#allocation2 + $0x1d8] sm:$0xff]
      %v1696 = vld [vmem:[#allocation2 + $0x1e0] sm:$0xff]
      %v1697 = vld [vmem:[#allocation2 + $0x1e8] sm:$0xff]
      %v1698 = vld [vmem:[#allocation2 + $0x1f0] sm:$0xff]
      %v1699 = vld [vmem:[#allocation2 + $0x1f8] sm:$0xff]
      %v1700 = vld [vmem:[#allocation2 + $0x200] sm:$0xff]
      %v1701 = vld [vmem:[#allocation2 + $0x208] sm:$0xff]
      %v1702 = vld [vmem:[#allocation2 + $0x210] sm:$0xff]
      %v1703 = vld [vmem:[#allocation2 + $0x218] sm:$0xff]
      %v1704 = vld [vmem:[#allocation2 + $0x220] sm:$0xff]
      %v1705 = vld [vmem:[#allocation2 + $0x228] sm:$0xff]
      %v1706 = vld [vmem:[#allocation2 + $0x230] sm:$0xff]
      %v1707 = vld [vmem:[#allocation2 + $0x238] sm:$0xff]
      %v1708 = vld [vmem:[#allocation2 + $0x240] sm:$0xff]
      %v1709 = vld [vmem:[#allocation2 + $0x248] sm:$0xff]
      %v1710 = vld [vmem:[#allocation2 + $0x250] sm:$0xff]
      %v1711 = vld [vmem:[#allocation2 + $0x258] sm:$0xff]
      %v1712 = vld [vmem:[#allocation2 + $0x260] sm:$0xff]
      %v1713 = vld [vmem:[#allocation2 + $0x268] sm:$0xff]
      %v1714 = vld [vmem:[#allocation2 + $0x270] sm:$0xff]
      %v1715 = vld [vmem:[#allocation2 + $0x278] sm:$0xff]
      %v1716 = vld [vmem:[#allocation2 + $0x280] sm:$0xff]
      %v1717 = vld [vmem:[#allocation2 + $0x288] sm:$0xff]
      %v1718 = vld [vmem:[#allocation2 + $0x290] sm:$0xff]
      %v1719 = vld [vmem:[#allocation2 + $0x298] sm:$0xff]
      %v1720 = vld [vmem:[#allocation2 + $0x2a0] sm:$0xff]
      %v1721 = vld [vmem:[#allocation2 + $0x2a8] sm:$0xff]
      %v1722 = vld [vmem:[#allocation2 + $0x2b0] sm:$0xff]
      %v1723 = vld [vmem:[#allocation2 + $0x2b8] sm:$0xff]
      %v1724 = vld [vmem:[#allocation2 + $0x2c0] sm:$0xff]
      %v1725 = vld [vmem:[#allocation2 + $0x2c8] sm:$0xff]
      %v1726 = vld [vmem:[#allocation2 + $0x2d0] sm:$0xff]
      %v1727 = vld [vmem:[#allocation2 + $0x2d8] sm:$0xff]
      %v1728 = vld [vmem:[#allocation2 + $0x2e0] sm:$0xff]
      %v1729 = vld [vmem:[#allocation2 + $0x2e8] sm:$0xff]
      %v1730 = vld [vmem:[#allocation2 + $0x2f0] sm:$0xff]
      %v1731 = vld [vmem:[#allocation2 + $0x2f8] sm:$0xff]
      %v1732 = vld [vmem:[#allocation2 + $0x300] sm:$0xff]
      %v1733 = vld [vmem:[#allocation2 + $0x308] sm:$0xff]
      %v1734 = vld [vmem:[#allocation2 + $0x310] sm:$0xff]
      %v1735 = vld [vmem:[#allocation2 + $0x318] sm:$0xff]
      %v1736 = vld [vmem:[#allocation2 + $0x320] sm:$0xff]
      %v1737 = vld [vmem:[#allocation2 + $0x328] sm:$0xff]
      %v1738 = vld [vmem:[#allocation2 + $0x330] sm:$0xff]
      %v1739 = vld [vmem:[#allocation2 + $0x338] sm:$0xff]
      %v1740 = vld [vmem:[#allocation2 + $0x340] sm:$0xff]
      %v1741 = vld [vmem:[#allocation2 + $0x348] sm:$0xff]
      %v1742 = vld [vmem:[#allocation2 + $0x350] sm:$0xff]
      %v1743 = vld [vmem:[#allocation2 + $0x358] sm:$0xff]
      %v1744 = vld [vmem:[#allocation2 + $0x360] sm:$0xff]
      %v1745 = vld [vmem:[#allocation2 + $0x368] sm:$0xff]
      %v1746 = vld [vmem:[#allocation2 + $0x370] sm:$0xff]
      %v1747 = vld [vmem:[#allocation2 + $0x378] sm:$0xff]
      %v1748 = vld [vmem:[#allocation2 + $0x380] sm:$0xff]
      %v1749 = vld [vmem:[#allocation2 + $0x388] sm:$0xff]
      %v1750 = vld [vmem:[#allocation2 + $0x390] sm:$0xff]
      %v1751 = vld [vmem:[#allocation2 + $0x398] sm:$0xff]
      %v1752 = vld [vmem:[#allocation2 + $0x3a0] sm:$0xff]
      %v1753 = vld [vmem:[#allocation2 + $0x3a8] sm:$0xff]
      %v1754 = vld [vmem:[#allocation2 + $0x3b0] sm:$0xff]
      %v1755 = vld [vmem:[#allocation2 + $0x3b8] sm:$0xff]
      %v1756 = vld [vmem:[#allocation2 + $0x3c0] sm:$0xff]
      %v1757 = vld [vmem:[#allocation2 + $0x3c8] sm:$0xff]
      %v1758 = vld [vmem:[#allocation2 + $0x3d0] sm:$0xff]
      %v1759 = vld [vmem:[#allocation2 + $0x3d8] sm:$0xff]
      %v1760 = vld [vmem:[#allocation2 + $0x3e0] sm:$0xff]
      %v1761 = vld [vmem:[#allocation2 + $0x3e8] sm:$0xff]
      %v1762 = vld [vmem:[#allocation2 + $0x3f0] sm:$0xff]
      %v1763 = vld [vmem:[#allocation2 + $0x3f8] sm:$0xff]
      %v1764 = vld [vmem:[#allocation2 + $0x400] sm:$0xff]
      %v1765 = vld [vmem:[#allocation2 + $0x408] sm:$0xff]
      %v1766 = vld [vmem:[#allocation2 + $0x410] sm:$0xff]
      %v1767 = vld [vmem:[#allocation2 + $0x418] sm:$0xff]
      %v1768 = vld [vmem:[#allocation2 + $0x420] sm:$0xff]
      %v1769 = vld [vmem:[#allocation2 + $0x428] sm:$0xff]
      %v1770 = vld [vmem:[#allocation2 + $0x430] sm:$0xff]
      %v1771 = vld [vmem:[#allocation2 + $0x438] sm:$0xff]
      %v1772 = vld [vmem:[#allocation2 + $0x440] sm:$0xff]
      %v1773 = vld [vmem:[#allocation2 + $0x448] sm:$0xff]
      %v1774 = vld [vmem:[#allocation2 + $0x450] sm:$0xff]
      %v1775 = vld [vmem:[#allocation2 + $0x458] sm:$0xff]
      %v1776 = vld [vmem:[#allocation2 + $0x460] sm:$0xff]
      %v1777 = vld [vmem:[#allocation2 + $0x468] sm:$0xff]
      %v1778 = vld [vmem:[#allocation2 + $0x470] sm:$0xff]
      %v1779 = vld [vmem:[#allocation2 + $0x478] sm:$0xff]
      %v1780 = vld [vmem:[#allocation2 + $0x480] sm:$0xff]
      %v1781 = vld [vmem:[#allocation2 + $0x488] sm:$0xff]
      %v1782 = vld [vmem:[#allocation2 + $0x490] sm:$0xff]
      %v1783 = vld [vmem:[#allocation2 + $0x498] sm:$0xff]
      %v1784 = vld [vmem:[#allocation2 + $0x4a0] sm:$0xff]
      %v1785 = vld [vmem:[#allocation2 + $0x4a8] sm:$0xff]
      %v1786 = vld [vmem:[#allocation2 + $0x4b0] sm:$0xff]
      %v1787 = vld [vmem:[#allocation2 + $0x4b8] sm:$0xff]
      %v1788 = vld [vmem:[#allocation2 + $0x4c0] sm:$0xff]
      %v1789 = vld [vmem:[#allocation2 + $0x4c8] sm:$0xff]
      %v1790 = vld [vmem:[#allocation2 + $0x4d0] sm:$0xff]
      %v1791 = vld [vmem:[#allocation2 + $0x4d8] sm:$0xff]
      %v1792 = vld [vmem:[#allocation2 + $0x4e0] sm:$0xff]
      %v1793 = vld [vmem:[#allocation2 + $0x4e8] sm:$0xff]
      %v1794 = vld [vmem:[#allocation2 + $0x4f0] sm:$0xff]
      %v1795 = vld [vmem:[#allocation2 + $0x4f8] sm:$0xff]
      %v1796 = vld [vmem:[#allocation2 + $0x500] sm:$0xff]
      %v1797 = vld [vmem:[#allocation2 + $0x508] sm:$0xff]
      %v1798 = vld [vmem:[#allocation2 + $0x510] sm:$0xff]
      %v1799 = vld [vmem:[#allocation2 + $0x518] sm:$0xff]
      %v1800 = vld [vmem:[#allocation2 + $0x520] sm:$0xff]
      %v1801 = vld [vmem:[#allocation2 + $0x528] sm:$0xff]
      %v1802 = vld [vmem:[#allocation2 + $0x530] sm:$0xff]
      %v1803 = vld [vmem:[#allocation2 + $0x538] sm:$0xff]
      %v1804 = vld [vmem:[#allocation2 + $0x540] sm:$0xff]
      %v1805 = vld [vmem:[#allocation2 + $0x548] sm:$0xff]
      %v1806 = vld [vmem:[#allocation2 + $0x550] sm:$0xff]
      %v1807 = vld [vmem:[#allocation2 + $0x558] sm:$0xff]
      %v1808 = vld [vmem:[#allocation2 + $0x560] sm:$0xff]
      %v1809 = vld [vmem:[#allocation2 + $0x568] sm:$0xff]
      %v1810 = vld [vmem:[#allocation2 + $0x570] sm:$0xff]
      %v1811 = vld [vmem:[#allocation2 + $0x578] sm:$0xff]
      %v1812 = vld [vmem:[#allocation2 + $0x580] sm:$0xff]
      %v1813 = vld [vmem:[#allocation2 + $0x588] sm:$0xff]
      %v1814 = vld [vmem:[#allocation2 + $0x590] sm:$0xff]
      %v1815 = vld [vmem:[#allocation2 + $0x598] sm:$0xff]
      %v1816 = vld [vmem:[#allocation2 + $0x5a0] sm:$0xff]
      %v1817 = vld [vmem:[#allocation2 + $0x5a8] sm:$0xff]
      %v1818 = vld [vmem:[#allocation2 + $0x5b0] sm:$0xff]
      %v1819 = vld [vmem:[#allocation2 + $0x5b8] sm:$0xff]
      %v1820 = vld [vmem:[#allocation2 + $0x5c0] sm:$0xff]
      %v1821 = vld [vmem:[#allocation2 + $0x5c8] sm:$0xff]
      %v1822 = vld [vmem:[#allocation2 + $0x5d0] sm:$0xff]
      %v1823 = vld [vmem:[#allocation2 + $0x5d8] sm:$0xff]
      %v1824 = vld [vmem:[#allocation2 + $0x5e0] sm:$0xff]
      %v1825 = vld [vmem:[%s2] sm:$0xff]
      %v1826 = vld [vmem:[%s2 + $0x8] sm:$0xff]
      %vm1827 = vcmask 719872
      %v1829 = vsel %vm1827, %v1826, 0
      %1831 = vmatprep.subr.mxu0 %v1637
      %1832 = vmatpush1.msra.mxu0 %v1636
      %1833 = vmatprep.subr.mxu0 %v1644
      %1834 = vmatpush1.msra.mxu0 %v1643
      %1835 = vmatprep.subr.mxu0 %v1651
      %1836 = vmatpush1.msra.mxu0 %v1650
      %1837 = vmatprep.subr.mxu0 %v1658
      %1838 = vmatpush1.msra.mxu0 %v1657
      %1839 = vmatprep.subr.mxu0 %v1665
      %1840 = vmatpush1.msra.mxu0 %v1664
      %1841 = vmatprep.subr.mxu0 %v1672
      %1842 = vmatpush1.msra.mxu0 %v1671
      %1843 = vmatprep.subr.mxu0 %v1679
      %1844 = vmatpush1.msra.mxu0 %v1678
      %1845 = vmatprep.subr.mxu0 %v1686
      %1846 = vmatpush1.msra.mxu0 %v1685
      %1847 = vmatprep.subr.mxu0 %v1693
      %1848 = vmatpush1.msra.mxu0 %v1692
      %1849 = vmatprep.subr.mxu0 %v1700
      %1850 = vmatpush1.msra.mxu0 %v1699
      %1851 = vmatprep.subr.mxu0 %v1707
      %1852 = vmatpush1.msra.mxu0 %v1706
      %1853 = vmatprep.subr.mxu0 %v1714
      %1854 = vmatpush1.msra.mxu0 %v1713
      %1855 = vmatprep.subr.mxu0 %v1721
      %1856 = vmatpush1.msra.mxu0 %v1720
      %1857 = vmatprep.subr.mxu0 %v1728
      %1858 = vmatpush1.msra.mxu0 %v1727
      %1859 = vmatprep.subr.mxu0 %v1735
      %1860 = vmatpush1.msra.mxu0 %v1734
      %1861 = vmatprep.subr.mxu0 %v1742
      %1862 = vmatpush1.msra.mxu0 %v1741
      %1863 = vmatprep.subr.mxu0 %v1749
      %1864 = vmatpush1.msra.mxu0 %v1748
      %1865 = vmatprep.subr.mxu0 %v1756
      %1866 = vmatpush1.msra.mxu0 %v1755
      %1867 = vmatprep.subr.mxu0 %v1763
      %1868 = vmatpush1.msra.mxu0 %v1762
      %1869 = vmatprep.subr.mxu0 %v1770
      %1870 = vmatpush1.msra.mxu0 %v1769
      %1871 = vmatprep.subr.mxu0 %v1777
      %1872 = vmatpush1.msra.mxu0 %v1776
      %1873 = vmatprep.subr.mxu0 %v1784
      %1874 = vmatpush1.msra.mxu0 %v1783
      %1875 = vmatprep.subr.mxu0 %v1791
      %1876 = vmatpush1.msra.mxu0 %v1790
      %1877 = vmatprep.subr.mxu0 %v1798
      %1878 = vmatpush1.msra.mxu0 %v1797
      %1879 = vmatprep.subr.mxu0 %v1805
      %1880 = vmatpush1.msra.mxu0 %v1804
      %1881 = vmatprep.subr.mxu0 %v1812
      %1882 = vmatpush1.msra.mxu0 %v1811
      %1883 = vmatprep.subr.mxu0 %v1819
      %1884 = vmatpush1.msra.mxu0 %v1818
      %1885 = vmatprep.subr.mxu0 0.0
      %1886 = vmatpush1.msra.mxu0 0.0
      %1887 = vmatprep.subr.mxu0 0.0
      %1888 = vmatpush1.msra.mxu0 0.0
      %1889 = vmatprep.subr.mxu0 0.0
      %1890 = vmatpush1.msra.mxu0 0.0
      %1891 = vmatprep.subr.mxu0 0.0
      %1892 = vmatpush1.msra.mxu0 0.0
      %1893 = vmatprep.subr.mxu0 0.0
      %1894 = vmatpush1.msra.mxu0 0.0
      %1895 = vmatprep.mubr.f32.mxu0 %v1829
      %1896 = vmatmul.mubr.f32.gmra.mrb[0].mxu0 %v1825
      %v1897 = vpop.f32.mrb[0].mxu0
      %v1898 = vadd.f32 0.0, %v1897
      %v1899 = vpop.f32.mrb[0].mxu0
      %v1900 = vadd.f32 0.0, %v1899
      %1901 = vdwg.mxu0
      %1902 = vmatprep.subr.mxu0 %v1639
      %1903 = vmatpush1.msra.mxu0 %v1638
      %1904 = vmatprep.subr.mxu0 %v1646
      %1905 = vmatpush1.msra.mxu0 %v1645
      %1906 = vmatprep.subr.mxu0 %v1653
      %1907 = vmatpush1.msra.mxu0 %v1652
      %1908 = vmatprep.subr.mxu0 %v1660
      %1909 = vmatpush1.msra.mxu0 %v1659
      %1910 = vmatprep.subr.mxu0 %v1667
      %1911 = vmatpush1.msra.mxu0 %v1666
      %1912 = vmatprep.subr.mxu0 %v1674
      %1913 = vmatpush1.msra.mxu0 %v1673
      %1914 = vmatprep.subr.mxu0 %v1681
      %1915 = vmatpush1.msra.mxu0 %v1680
      %1916 = vmatprep.subr.mxu0 %v1688
      %1917 = vmatpush1.msra.mxu0 %v1687
      %1918 = vmatprep.subr.mxu0 %v1695
      %1919 = vmatpush1.msra.mxu0 %v1694
      %1920 = vmatprep.subr.mxu0 %v1702
      %1921 = vmatpush1.msra.mxu0 %v1701
      %1922 = vmatprep.subr.mxu0 %v1709
      %1923 = vmatpush1.msra.mxu0 %v1708
      %1924 = vmatprep.subr.mxu0 %v1716
      %1925 = vmatpush1.msra.mxu0 %v1715
      %1926 = vmatprep.subr.mxu0 %v1723
      %1927 = vmatpush1.msra.mxu0 %v1722
      %1928 = vmatprep.subr.mxu0 %v1730
      %1929 = vmatpush1.msra.mxu0 %v1729
      %1930 = vmatprep.subr.mxu0 %v1737
      %1931 = vmatpush1.msra.mxu0 %v1736
      %1932 = vmatprep.subr.mxu0 %v1744
      %1933 = vmatpush1.msra.mxu0 %v1743
      %1934 = vmatprep.subr.mxu0 %v1751
      %1935 = vmatpush1.msra.mxu0 %v1750
      %1936 = vmatprep.subr.mxu0 %v1758
      %1937 = vmatpush1.msra.mxu0 %v1757
      %1938 = vmatprep.subr.mxu0 %v1765
      %1939 = vmatpush1.msra.mxu0 %v1764
      %1940 = vmatprep.subr.mxu0 %v1772
      %1941 = vmatpush1.msra.mxu0 %v1771
      %1942 = vmatprep.subr.mxu0 %v1779
      %1943 = vmatpush1.msra.mxu0 %v1778
      %1944 = vmatprep.subr.mxu0 %v1786
      %1945 = vmatpush1.msra.mxu0 %v1785
      %1946 = vmatprep.subr.mxu0 %v1793
      %1947 = vmatpush1.msra.mxu0 %v1792
      %1948 = vmatprep.subr.mxu0 %v1800
      %1949 = vmatpush1.msra.mxu0 %v1799
      %1950 = vmatprep.subr.mxu0 %v1807
      %1951 = vmatpush1.msra.mxu0 %v1806
      %1952 = vmatprep.subr.mxu0 %v1814
      %1953 = vmatpush1.msra.mxu0 %v1813
      %1954 = vmatprep.subr.mxu0 %v1821
      %1955 = vmatpush1.msra.mxu0 %v1820
      %1956 = vmatprep.subr.mxu0 0.0
      %1957 = vmatpush1.msra.mxu0 0.0
      %1958 = vmatprep.subr.mxu0 0.0
      %1959 = vmatpush1.msra.mxu0 0.0
      %1960 = vmatprep.subr.mxu0 0.0
      %1961 = vmatpush1.msra.mxu0 0.0
      %1962 = vmatprep.subr.mxu0 0.0
      %1963 = vmatpush1.msra.mxu0 0.0
      %1964 = vmatprep.subr.mxu0 0.0
      %1965 = vmatpush1.msra.mxu0 0.0
      %1966 = vmatprep.mubr.f32.mxu0 %v1829
      %1967 = vmatmul.mubr.f32.gmra.mrb[0].mxu0 %v1825
      %v1968 = vpop.f32.mrb[0].mxu0
      %v1969 = vadd.f32 0.0, %v1968
      %v1970 = vpop.f32.mrb[0].mxu0
      %v1971 = vadd.f32 0.0, %v1970
      %1972 = vdwg.mxu0
      %1973 = vmatprep.subr.mxu0 %v1641
      %1974 = vmatpush1.msra.mxu0 %v1640
      %1975 = vmatprep.subr.mxu0 %v1648
      %1976 = vmatpush1.msra.mxu0 %v1647
      %1977 = vmatprep.subr.mxu0 %v1655
      %1978 = vmatpush1.msra.mxu0 %v1654
      %1979 = vmatprep.subr.mxu0 %v1662
      %1980 = vmatpush1.msra.mxu0 %v1661
      %1981 = vmatprep.subr.mxu0 %v1669
      %1982 = vmatpush1.msra.mxu0 %v1668
      %1983 = vmatprep.subr.mxu0 %v1676
      %1984 = vmatpush1.msra.mxu0 %v1675
      %1985 = vmatprep.subr.mxu0 %v1683
      %1986 = vmatpush1.msra.mxu0 %v1682
      %1987 = vmatprep.subr.mxu0 %v1690
      %1988 = vmatpush1.msra.mxu0 %v1689
      %1989 = vmatprep.subr.mxu0 %v1697
      %1990 = vmatpush1.msra.mxu0 %v1696
      %1991 = vmatprep.subr.mxu0 %v1704
      %1992 = vmatpush1.msra.mxu0 %v1703
      %1993 = vmatprep.subr.mxu0 %v1711
      %1994 = vmatpush1.msra.mxu0 %v1710
      %1995 = vmatprep.subr.mxu0 %v1718
      %1996 = vmatpush1.msra.mxu0 %v1717
      %1997 = vmatprep.subr.mxu0 %v1725
      %1998 = vmatpush1.msra.mxu0 %v1724
      %1999 = vmatprep.subr.mxu0 %v1732
      %2000 = vmatpush1.msra.mxu0 %v1731
      %2001 = vmatprep.subr.mxu0 %v1739
      %2002 = vmatpush1.msra.mxu0 %v1738
      %2003 = vmatprep.subr.mxu0 %v1746
      %2004 = vmatpush1.msra.mxu0 %v1745
      %2005 = vmatprep.subr.mxu0 %v1753
      %2006 = vmatpush1.msra.mxu0 %v1752
      %2007 = vmatprep.subr.mxu0 %v1760
      %2008 = vmatpush1.msra.mxu0 %v1759
      %2009 = vmatprep.subr.mxu0 %v1767
      %2010 = vmatpush1.msra.mxu0 %v1766
      %2011 = vmatprep.subr.mxu0 %v1774
      %2012 = vmatpush1.msra.mxu0 %v1773
      %2013 = vmatprep.subr.mxu0 %v1781
      %2014 = vmatpush1.msra.mxu0 %v1780
      %2015 = vmatprep.subr.mxu0 %v1788
      %2016 = vmatpush1.msra.mxu0 %v1787
      %2017 = vmatprep.subr.mxu0 %v1795
      %2018 = vmatpush1.msra.mxu0 %v1794
      %2019 = vmatprep.subr.mxu0 %v1802
      %2020 = vmatpush1.msra.mxu0 %v1801
      %2021 = vmatprep.subr.mxu0 %v1809
      %2022 = vmatpush1.msra.mxu0 %v1808
      %2023 = vmatprep.subr.mxu0 %v1816
      %2024 = vmatpush1.msra.mxu0 %v1815
      %2025 = vmatprep.subr.mxu0 %v1823
      %2026 = vmatpush1.msra.mxu0 %v1822
      %2027 = vmatprep.subr.mxu0 0.0
      %2028 = vmatpush1.msra.mxu0 0.0
      %2029 = vmatprep.subr.mxu0 0.0
      %2030 = vmatpush1.msra.mxu0 0.0
      %2031 = vmatprep.subr.mxu0 0.0
      %2032 = vmatpush1.msra.mxu0 0.0
      %2033 = vmatprep.subr.mxu0 0.0
      %2034 = vmatpush1.msra.mxu0 0.0
      %2035 = vmatprep.subr.mxu0 0.0
      %2036 = vmatpush1.msra.mxu0 0.0
      %2037 = vmatprep.mubr.f32.mxu0 %v1829
      %2038 = vmatmul.mubr.f32.gmra.mrb[0].mxu0 %v1825
      %v2039 = vpop.f32.mrb[0].mxu0
      %v2040 = vadd.f32 0.0, %v2039
      %v2041 = vpop.f32.mrb[0].mxu0
      %v2042 = vadd.f32 0.0, %v2041
      %2043 = vdwg.mxu0
      %2044 = vmatprep.subr.mxu0 0.0
      %2045 = vmatpush1.msra.mxu0 %v1642
      %2046 = vmatprep.subr.mxu0 0.0
      %2047 = vmatpush1.msra.mxu0 %v1649
      %2048 = vmatprep.subr.mxu0 0.0
      %2049 = vmatpush1.msra.mxu0 %v1656
      %2050 = vmatprep.subr.mxu0 0.0
      %2051 = vmatpush1.msra.mxu0 %v1663
      %2052 = vmatprep.subr.mxu0 0.0
      %2053 = vmatpush1.msra.mxu0 %v1670
      %2054 = vmatprep.subr.mxu0 0.0
      %2055 = vmatpush1.msra.mxu0 %v1677
      %2056 = vmatprep.subr.mxu0 0.0
      %2057 = vmatpush1.msra.mxu0 %v1684
      %2058 = vmatprep.subr.mxu0 0.0
      %2059 = vmatpush1.msra.mxu0 %v1691
      %2060 = vmatprep.subr.mxu0 0.0
      %2061 = vmatpush1.msra.mxu0 %v1698
      %2062 = vmatprep.subr.mxu0 0.0
      %2063 = vmatpush1.msra.mxu0 %v1705
      %2064 = vmatprep.subr.mxu0 0.0
      %2065 = vmatpush1.msra.mxu0 %v1712
      %2066 = vmatprep.subr.mxu0 0.0
      %2067 = vmatpush1.msra.mxu0 %v1719
      %2068 = vmatprep.subr.mxu0 0.0
      %2069 = vmatpush1.msra.mxu0 %v1726
      %2070 = vmatprep.subr.mxu0 0.0
      %2071 = vmatpush1.msra.mxu0 %v1733
      %2072 = vmatprep.subr.mxu0 0.0
      %2073 = vmatpush1.msra.mxu0 %v1740
      %2074 = vmatprep.subr.mxu0 0.0
      %2075 = vmatpush1.msra.mxu0 %v1747
      %2076 = vmatprep.subr.mxu0 0.0
      %2077 = vmatpush1.msra.mxu0 %v1754
      %2078 = vmatprep.subr.mxu0 0.0
      %2079 = vmatpush1.msra.mxu0 %v1761
      %2080 = vmatprep.subr.mxu0 0.0
      %2081 = vmatpush1.msra.mxu0 %v1768
      %2082 = vmatprep.subr.mxu0 0.0
      %2083 = vmatpush1.msra.mxu0 %v1775
      %2084 = vmatprep.subr.mxu0 0.0
      %2085 = vmatpush1.msra.mxu0 %v1782
      %2086 = vmatprep.subr.mxu0 0.0
      %2087 = vmatpush1.msra.mxu0 %v1789
      %2088 = vmatprep.subr.mxu0 0.0
      %2089 = vmatpush1.msra.mxu0 %v1796
      %2090 = vmatprep.subr.mxu0 0.0
      %2091 = vmatpush1.msra.mxu0 %v1803
      %2092 = vmatprep.subr.mxu0 0.0
      %2093 = vmatpush1.msra.mxu0 %v1810
      %2094 = vmatprep.subr.mxu0 0.0
      %2095 = vmatpush1.msra.mxu0 %v1817
      %2096 = vmatprep.subr.mxu0 0.0
      %2097 = vmatpush1.msra.mxu0 %v1824
      %2098 = vmatprep.subr.mxu0 0.0
      %2099 = vmatpush1.msra.mxu0 0.0
      %2100 = vmatprep.subr.mxu0 0.0
      %2101 = vmatpush1.msra.mxu0 0.0
      %2102 = vmatprep.subr.mxu0 0.0
      %2103 = vmatpush1.msra.mxu0 0.0
      %2104 = vmatprep.subr.mxu0 0.0
      %2105 = vmatpush1.msra.mxu0 0.0
      %2106 = vmatprep.subr.mxu0 0.0
      %2107 = vmatpush1.msra.mxu0 0.0
      %2108 = vmatprep.mubr.f32.mxu0 %v1829
      %2109 = vmatmul.mubr.f32.gmra.mrb[0].mxu0 %v1825
      %v2110 = vpop.f32.mrb[0].mxu0
      %v2111 = vadd.f32 0.0, %v2110
      %v2112 = vpop.f32.mrb[0].mxu0
      %2113 = vdwg.mxu0
      %v2114 = vld [vmem:[%s3] sm:$0xff]
      %v2116 = vlaneseq
      %v2117 = vshrl.u32 %v2116, 7
      %v2118 = vsub.s32 0, %v2117
      %v2119 = vrot.slane %v2114, %v2118
      %v2120 = vlaneseq
      %v2121 = vshrl.u32 %v2120, 7
      %v2122 = vsub.s32 1, %v2121
      %v2123 = vrot.slane %v2114, %v2122
      %v2124 = vlaneseq
      %v2125 = vshrl.u32 %v2124, 7
      %v2126 = vsub.s32 2, %v2125
      %v2127 = vrot.slane %v2114, %v2126
      %v2128 = vlaneseq
      %v2129 = vshrl.u32 %v2128, 7
      %v2130 = vsub.s32 3, %v2129
      %v2131 = vrot.slane %v2114, %v2130
      %v2132 = vlaneseq
      %v2133 = vshrl.u32 %v2132, 7
      %v2134 = vsub.s32 4, %v2133
      %v2135 = vrot.slane %v2114, %v2134
      %v2136 = vlaneseq
      %v2137 = vshrl.u32 %v2136, 7
      %v2138 = vsub.s32 5, %v2137
      %v2139 = vrot.slane %v2114, %v2138
      %v2140 = vlaneseq
      %v2141 = vshrl.u32 %v2140, 7
      %v2142 = vsub.s32 6, %v2141
      %v2143 = vrot.slane %v2114, %v2142
      %v2151 = vmul.f32 %v1898, %v2119
      %v2152 = vmul.f32 %v1900, %v2123
      %v2153 = vmul.f32 %v1969, %v2127
      %v2154 = vmul.f32 %v1971, %v2131
      %v2155 = vmul.f32 %v2040, %v2135
      %v2156 = vmul.f32 %v2042, %v2139
      %v2157 = vmul.f32 %v2111, %v2143
      %v2158 = vadd.f32 %v2151, %v2152
      %v2159 = vadd.f32 %v2158, %v2153
      %v2160 = vadd.f32 %v2159, %v2154
      %v2161 = vadd.f32 %v2160, %v2155
      %v2162 = vadd.f32 %v2161, %v2156
      %v2163 = vadd.f32 %v2162, %v2157
      %2164 = vadd.xlane.f32.xlu0 %v2163
      %v2165 = vpop.xlane.xlu0 %2164
      %v2166 = vmul.f32 %v2165, 0.001953125
      %v2167 = vsub.f32 %v1898, %v2166
      %v2168 = vsub.f32 %v1900, %v2166
      %v2169 = vsub.f32 %v1969, %v2166
      %v2170 = vsub.f32 %v1971, %v2166
      %v2171 = vsub.f32 %v2040, %v2166
      %v2172 = vsub.f32 %v2042, %v2166
      %v2173 = vsub.f32 %v2111, %v2166
      %v2174 = vmul.f32 %v2167, %v2167
      %v2175 = vmul.f32 %v2168, %v2168
      %v2176 = vmul.f32 %v2169, %v2169
      %v2177 = vmul.f32 %v2170, %v2170
      %v2178 = vmul.f32 %v2171, %v2171
      %v2179 = vmul.f32 %v2172, %v2172
      %v2180 = vmul.f32 %v2173, %v2173
      %v2181 = vmul.f32 %v2174, %v2119
      %v2182 = vmul.f32 %v2175, %v2123
      %v2183 = vmul.f32 %v2176, %v2127
      %v2184 = vmul.f32 %v2177, %v2131
      %v2185 = vmul.f32 %v2178, %v2135
      %v2186 = vmul.f32 %v2179, %v2139
      %v2187 = vmul.f32 %v2180, %v2143
      %v2188 = vadd.f32 %v2181, %v2182
      %v2189 = vadd.f32 %v2188, %v2183
      %v2190 = vadd.f32 %v2189, %v2184
      %v2191 = vadd.f32 %v2190, %v2185
      %v2192 = vadd.f32 %v2191, %v2186
      %v2193 = vadd.f32 %v2192, %v2187
      %2194 = vadd.xlane.f32.xlu0 %v2193
      %v2195 = vpop.xlane.xlu0 %2194
      %v2196 = vmul.f32 %v2195, 0.001953125
      %v2197 = vadd.f32 %v2196, 1e-05
      %v2198 = vrsqrt.pop %v2197
      %v2199 = vmul.f32 %v2167, %v2198
      %v2200 = vmul.f32 %v2168, %v2198
      %v2201 = vmul.f32 %v2169, %v2198
      %v2202 = vmul.f32 %v2170, %v2198
      %v2203 = vmul.f32 %v2171, %v2198
      %v2204 = vmul.f32 %v2172, %v2198
      %v2205 = vmul.f32 %v2173, %v2198
      %v2206 = vld [vmem:[%s212] sm:$0xff]
      %v2207 = vld [vmem:[%s212 + $0x8] sm:$0xff]
      %v2208 = vld [vmem:[%s212 + $0x10] sm:$0xff]
      %v2209 = vld [vmem:[%s212 + $0x18] sm:$0xff]
      %v2210 = vld [vmem:[%s212 + $0x20] sm:$0xff]
      %v2211 = vld [vmem:[%s212 + $0x28] sm:$0xff]
      %v2212 = vld [vmem:[%s212 + $0x30] sm:$0xff]
      %v2213 = vadd.f32 %v2199, %v2206
      %v2214 = vadd.f32 %v2200, %v2207
      %v2215 = vadd.f32 %v2201, %v2208
      %v2216 = vadd.f32 %v2202, %v2209
      %v2217 = vadd.f32 %v2203, %v2210
      %v2218 = vadd.f32 %v2204, %v2211
      %v2219 = vadd.f32 %v2205, %v2212
      %v2220 = vmul.f32 %v2213, 0.5
      %v2221 = vmul.f32 %v2214, 0.5
      %v2222 = vmul.f32 %v2215, 0.5
      %v2223 = vmul.f32 %v2216, 0.5
      %v2224 = vmul.f32 %v2217, 0.5
      %v2225 = vmul.f32 %v2218, 0.5
      %v2226 = vmul.f32 %v2219, 0.5
      %v2227 = vmul.f32 %v2213, 0.70710677
      %v2228 = vmul.f32 %v2214, 0.70710677
      %v2229 = vmul.f32 %v2215, 0.70710677
      %v2230 = vmul.f32 %v2216, 0.70710677
      %v2231 = vmul.f32 %v2217, 0.70710677
      %v2232 = vmul.f32 %v2218, 0.70710677
      %v2233 = vmul.f32 %v2219, 0.70710677
      %vm2234 = vcmp.ge.f32.partialorder %v2227, 0.0
      %vm2235 = vcmp.ge.f32.partialorder %v2228, 0.0
      %vm2236 = vcmp.ge.f32.partialorder %v2229, 0.0
      %vm2237 = vcmp.ge.f32.partialorder %v2230, 0.0
      %vm2238 = vcmp.ge.f32.partialorder %v2231, 0.0
      %vm2239 = vcmp.ge.f32.partialorder %v2232, 0.0
      %vm2240 = vcmp.ge.f32.partialorder %v2233, 0.0
      %v2241 = vsel %vm2234, 1.0, -1.0
      %v2242 = vsel %vm2235, 1.0, -1.0
      %v2243 = vsel %vm2236, 1.0, -1.0
      %v2244 = vsel %vm2237, 1.0, -1.0
      %v2245 = vsel %vm2238, 1.0, -1.0
      %v2246 = vsel %vm2239, 1.0, -1.0
      %v2247 = vsel %vm2240, 1.0, -1.0
      %v2248 = vand.u32 2147483647, %v2227
      %v2249 = vand.u32 2147483647, %v2228
      %v2250 = vand.u32 2147483647, %v2229
      %v2251 = vand.u32 2147483647, %v2230
      %v2252 = vand.u32 2147483647, %v2231
      %v2253 = vand.u32 2147483647, %v2232
      %v2254 = vand.u32 2147483647, %v2233
      %v2255 = vmul.f32 %v2248, 0.3275911
      %v2256 = vmul.f32 %v2249, 0.3275911
      %v2257 = vmul.f32 %v2250, 0.3275911
      %v2258 = vmul.f32 %v2251, 0.3275911
      %v2259 = vmul.f32 %v2252, 0.3275911
      %v2260 = vmul.f32 %v2253, 0.3275911
      %v2261 = vmul.f32 %v2254, 0.3275911
      %v2262 = vadd.f32 %v2255, 1.0
      %v2263 = vadd.f32 %v2256, 1.0
      %v2264 = vadd.f32 %v2257, 1.0
      %v2265 = vadd.f32 %v2258, 1.0
      %v2266 = vadd.f32 %v2259, 1.0
      %v2267 = vadd.f32 %v2260, 1.0
      %v2268 = vadd.f32 %v2261, 1.0
      %v2269 = vrcp.pop %v2262
      %v2270 = vrcp.pop %v2263
      %v2271 = vrcp.pop %v2264
      %v2272 = vrcp.pop %v2265
      %v2273 = vrcp.pop %v2266
      %v2274 = vrcp.pop %v2267
      %v2275 = vrcp.pop %v2268
      %v2276 = vmul.f32 %v2262, %v2269
      %v2277 = vmul.f32 %v2263, %v2270
      %v2278 = vmul.f32 %v2264, %v2271
      %v2279 = vmul.f32 %v2265, %v2272
      %v2280 = vmul.f32 %v2266, %v2273
      %v2281 = vmul.f32 %v2267, %v2274
      %v2282 = vmul.f32 %v2268, %v2275
      %v2283 = vsub.f32 2.0, %v2276
      %v2284 = vsub.f32 2.0, %v2277
      %v2285 = vsub.f32 2.0, %v2278
      %v2286 = vsub.f32 2.0, %v2279
      %v2287 = vsub.f32 2.0, %v2280
      %v2288 = vsub.f32 2.0, %v2281
      %v2289 = vsub.f32 2.0, %v2282
      %v2290 = vmul.f32 %v2269, %v2283
      %v2291 = vmul.f32 %v2270, %v2284
      %v2292 = vmul.f32 %v2271, %v2285
      %v2293 = vmul.f32 %v2272, %v2286
      %v2294 = vmul.f32 %v2273, %v2287
      %v2295 = vmul.f32 %v2274, %v2288
      %v2296 = vmul.f32 %v2275, %v2289
      %v2297 = vmul.f32 %v2290, 1.0614054
      %v2298 = vmul.f32 %v2291, 1.0614054
      %v2299 = vmul.f32 %v2292, 1.0614054
      %v2300 = vmul.f32 %v2293, 1.0614054
      %v2301 = vmul.f32 %v2294, 1.0614054
      %v2302 = vmul.f32 %v2295, 1.0614054
      %v2303 = vmul.f32 %v2296, 1.0614054
      %v2304 = vadd.f32 %v2297, -1.4531521
      %v2305 = vadd.f32 %v2298, -1.4531521
      %v2306 = vadd.f32 %v2299, -1.4531521
      %v2307 = vadd.f32 %v2300, -1.4531521
      %v2308 = vadd.f32 %v2301, -1.4531521
      %v2309 = vadd.f32 %v2302, -1.4531521
      %v2310 = vadd.f32 %v2303, -1.4531521
      %v2311 = vmul.f32 %v2304, %v2290
      %v2312 = vmul.f32 %v2305, %v2291
      %v2313 = vmul.f32 %v2306, %v2292
      %v2314 = vmul.f32 %v2307, %v2293
      %v2315 = vmul.f32 %v2308, %v2294
      %v2316 = vmul.f32 %v2309, %v2295
      %v2317 = vmul.f32 %v2310, %v2296
      %v2318 = vadd.f32 %v2311, 1.4214138
      %v2319 = vadd.f32 %v2312, 1.4214138
      %v2320 = vadd.f32 %v2313, 1.4214138
      %v2321 = vadd.f32 %v2314, 1.4214138
      %v2322 = vadd.f32 %v2315, 1.4214138
      %v2323 = vadd.f32 %v2316, 1.4214138
      %v2324 = vadd.f32 %v2317, 1.4214138
      %v2325 = vmul.f32 %v2318, %v2290
      %v2326 = vmul.f32 %v2319, %v2291
      %v2327 = vmul.f32 %v2320, %v2292
      %v2328 = vmul.f32 %v2321, %v2293
      %v2329 = vmul.f32 %v2322, %v2294
      %v2330 = vmul.f32 %v2323, %v2295
      %v2331 = vmul.f32 %v2324, %v2296
      %v2332 = vadd.f32 %v2325, -0.28449672
      %v2333 = vadd.f32 %v2326, -0.28449672
      %v2334 = vadd.f32 %v2327, -0.28449672
      %v2335 = vadd.f32 %v2328, -0.28449672
      %v2336 = vadd.f32 %v2329, -0.28449672
      %v2337 = vadd.f32 %v2330, -0.28449672
      %v2338 = vadd.f32 %v2331, -0.28449672
      %v2339 = vmul.f32 %v2332, %v2290
      %v2340 = vmul.f32 %v2333, %v2291
      %v2341 = vmul.f32 %v2334, %v2292
      %v2342 = vmul.f32 %v2335, %v2293
      %v2343 = vmul.f32 %v2336, %v2294
      %v2344 = vmul.f32 %v2337, %v2295
      %v2345 = vmul.f32 %v2338, %v2296
      %v2346 = vadd.f32 %v2339, 0.2548296
      %v2347 = vadd.f32 %v2340, 0.2548296
      %v2348 = vadd.f32 %v2341, 0.2548296
      %v2349 = vadd.f32 %v2342, 0.2548296
      %v2350 = vadd.f32 %v2343, 0.2548296
      %v2351 = vadd.f32 %v2344, 0.2548296
      %v2352 = vadd.f32 %v2345, 0.2548296
      %v2353 = vmul.f32 %v2346, %v2290
      %v2354 = vmul.f32 %v2347, %v2291
      %v2355 = vmul.f32 %v2348, %v2292
      %v2356 = vmul.f32 %v2349, %v2293
      %v2357 = vmul.f32 %v2350, %v2294
      %v2358 = vmul.f32 %v2351, %v2295
      %v2359 = vmul.f32 %v2352, %v2296
      %v2360 = vsub.f32 0.0, %v2248
      %v2361 = vsub.f32 0.0, %v2249
      %v2362 = vsub.f32 0.0, %v2250
      %v2363 = vsub.f32 0.0, %v2251
      %v2364 = vsub.f32 0.0, %v2252
      %v2365 = vsub.f32 0.0, %v2253
      %v2366 = vsub.f32 0.0, %v2254
      %v2367 = vmul.f32 %v2360, %v2248
      %v2368 = vmul.f32 %v2361, %v2249
      %v2369 = vmul.f32 %v2362, %v2250
      %v2370 = vmul.f32 %v2363, %v2251
      %v2371 = vmul.f32 %v2364, %v2252
      %v2372 = vmul.f32 %v2365, %v2253
      %v2373 = vmul.f32 %v2366, %v2254
      %v2374 = vmul.f32 %v2367, 1.442695
      %v2375 = vpow.pop %v2374
      %v2376 = vmul.f32 %v2368, 1.442695
      %v2377 = vpow.pop %v2376
      %v2378 = vmul.f32 %v2369, 1.442695
      %v2379 = vpow.pop %v2378
      %v2380 = vmul.f32 %v2370, 1.442695
      %v2381 = vpow.pop %v2380
      %v2382 = vmul.f32 %v2371, 1.442695
      %v2383 = vpow.pop %v2382
      %v2384 = vmul.f32 %v2372, 1.442695
      %v2385 = vpow.pop %v2384
      %v2386 = vmul.f32 %v2373, 1.442695
      %v2387 = vpow.pop %v2386
      %v2388 = vmul.f32 %v2353, %v2375
      %v2389 = vmul.f32 %v2354, %v2377
      %v2390 = vmul.f32 %v2355, %v2379
      %v2391 = vmul.f32 %v2356, %v2381
      %v2392 = vmul.f32 %v2357, %v2383
      %v2393 = vmul.f32 %v2358, %v2385
      %v2394 = vmul.f32 %v2359, %v2387
      %v2395 = vsub.f32 1.0, %v2388
      %v2396 = vsub.f32 1.0, %v2389
      %v2397 = vsub.f32 1.0, %v2390
      %v2398 = vsub.f32 1.0, %v2391
      %v2399 = vsub.f32 1.0, %v2392
      %v2400 = vsub.f32 1.0, %v2393
      %v2401 = vsub.f32 1.0, %v2394
      %v2402 = vmul.f32 %v2241, %v2395
      %v2403 = vmul.f32 %v2242, %v2396
      %v2404 = vmul.f32 %v2243, %v2397
      %v2405 = vmul.f32 %v2244, %v2398
      %v2406 = vmul.f32 %v2245, %v2399
      %v2407 = vmul.f32 %v2246, %v2400
      %v2408 = vmul.f32 %v2247, %v2401
      %v2409 = vadd.f32 %v2402, 1.0
      %v2410 = vadd.f32 %v2403, 1.0
      %v2411 = vadd.f32 %v2404, 1.0
      %v2412 = vadd.f32 %v2405, 1.0
      %v2413 = vadd.f32 %v2406, 1.0
      %v2414 = vadd.f32 %v2407, 1.0
      %v2415 = vadd.f32 %v2408, 1.0
      %v2416 = vmul.f32 %v2220, %v2409
      %v2417 = vmul.f32 %v2221, %v2410
      %v2418 = vmul.f32 %v2222, %v2411
      %v2419 = vmul.f32 %v2223, %v2412
      %v2420 = vmul.f32 %v2224, %v2413
      %v2421 = vmul.f32 %v2225, %v2414
      %v2422 = vmul.f32 %v2226, %v2415
      %2423 = vst [vmem:[%s217] sm:$0xff] %v2416
      %2424 = vst [vmem:[%s217 + $0x8] sm:$0xff] %v2417
      %2425 = vst [vmem:[%s217 + $0x10] sm:$0xff] %v2418
      %2426 = vst [vmem:[%s217 + $0x18] sm:$0xff] %v2419
      %2427 = vst [vmem:[%s217 + $0x20] sm:$0xff] %v2420
      %2428 = vst [vmem:[%s217 + $0x28] sm:$0xff] %v2421
      %2429 = vst [vmem:[%s217 + $0x30] sm:$0xff] %v2422
      %p2430 = scmp.lt.s32.totalorder %s15, 1
      %s2431 = scalar_select %p2430, %s15, 1
      %s2432 = smul.addr %s2431, 7
      %s2433 = smul.addr %s2432, 8
      %s2434 = scalar_lea.vmem %s4, %s2433
      // Predicated region
      $region37: #{res_conv_block.3} parent=35 // pred_check
        %p2435 = pneg %p127
      $region38: #{res_conv_block.3} parent=35 // pred_check_branch
        %2437 = sbr.rel (%p2435) target = $region40
      $region39: #{res_conv_block.3} parent=35 // pred_region
        _
      $region40: #{res_conv_block.3} parent=35 // pred_fallthru
        _
    $region36: #{res_conv_block.3} parent=5 // pred_fallthru
      _
    %p2438 = scmp.le.s32.totalorder 2, %s10
    // Predicated region
    $region41: #{res_conv_block.3} parent=5 // pred_check
      %p2439 = pneg %p2438
    $region42: #{res_conv_block.3} parent=5 // pred_check_branch
      %2441 = sbr.rel (%p2439) target = $region44
    $region43: #{res_conv_block.3} parent=5 // pred_region
      %s2442 = ssub.s32 %s10, 2
      // Predicated region
      $region45: #{res_conv_block.3} parent=43 // pred_check
        %p2443 = pneg %p133
      $region46: #{res_conv_block.3} parent=43 // pred_check_branch
        %2445 = sbr.rel (%p2443) target = $region48
      $region47: #{res_conv_block.3} parent=43 // pred_region
        %p2446 = scmp.lt.s32.totalorder %s16, 1
        %s2447 = scalar_select %p2446, %s16, 1
        %s2448 = smul.addr %s2447, 7
        %s2449 = smul.addr %s2448, 8
        %s2450 = scalar_lea.vmem %s4, %s2449
      $region48: #{res_conv_block.3} parent=43 // pred_fallthru
        _
    $region44: #{res_conv_block.3} parent=5 // pred_fallthru
      _
  $region6: #{res_conv_block.3} parent=0 // loop_footer
    %s14 = sadd.s32 1, %s10
  $region7: #{res_conv_block.3} parent=0 // loop_footer_branch
    %9 = sbr.rel target = $region3
  $region8: #{res_conv_block.3} parent=0 // loop_exit
    _

</llo_original>
